<compile_context>
chip_gen: v7x
topology: tpu7x:2x2x1
jax: 0.10.0
libtpu: 0.0.40
codegen_flags: <defaults>
</compile_context>

<pallas_src>
import functools

import jax
import jax.numpy as jnp
from jax.experimental import pallas as pl
from jax.experimental.pallas import tpu as pltpu

# explicit VMEM budget: safe on v7x (64 MiB physical) and v5e/v6e (128 MiB)
VMEM_LIMIT = 48 * 1024 * 1024


def _round_up(n, m):
    return (n + m - 1) // m * m


def _pick_row_tile(m, cap=512):
    """Row tile: >=2 grid steps when possible (v7x dual-TC), bf16 16-row
    multiples, capped at 512 (~85% of HBM roofline for streamed tiles)."""
    half = _round_up(max(pl.cdiv(m, 2), 16), 16)
    return min(cap, half)


# --------------------------------------------------------------------------
# Kernel 1: fused encoder patch-embedding + discrete key-value bottleneck
#   per row tile:   emb = relu(x @ enc_w + enc_b)               (MXU, f32 acc)
#                   dist = ||k||^2 - 2 emb.k                    (MXU + VPU)
#                   code = argmin(dist); out = onehot @ values  (MXU)
#   enc_w/enc_b/keys_t/keys_sq/values stay VMEM-resident (constant index_maps,
#   < 1 MiB total), only the patch rows / memory rows stream.
# --------------------------------------------------------------------------
def _enc_bottleneck_kernel(x_ref, enc_w_ref, enc_b_ref, keys_t_ref, keys_sq_ref,
                           values_ref, o_ref):
    emb = jnp.dot(x_ref[...], enc_w_ref[...],
                  preferred_element_type=jnp.float32)            # (TM, D) f32
    emb = jnp.maximum(emb + enc_b_ref[...], 0.0)
    emb_bf = emb.astype(jnp.bfloat16)

    scores = jnp.dot(emb_bf, keys_t_ref[...],
                     preferred_element_type=jnp.float32)         # (TM, C) f32
    dist = keys_sq_ref[...] - 2.0 * scores                       # ||x||^2 const per row
    C = dist.shape[-1]
    iota = jax.lax.broadcasted_iota(jnp.int32, dist.shape, 1)
    min_d = jnp.min(dist, axis=-1, keepdims=True)
    # first index achieving the minimum (min/where idiom for robust lowering)
    idx = jnp.min(jnp.where(dist == min_d, iota, C), axis=-1, keepdims=True)
    onehot = (iota == idx).astype(jnp.bfloat16)                  # (TM, C)
    o_ref[...] = jnp.dot(onehot, values_ref[...],
                         preferred_element_type=jnp.float32).astype(o_ref.dtype)


def encode_and_bottleneck(patches, enc_w, enc_b, keys_t, keys_sq, values):
    M, K = patches.shape
    D = enc_w.shape[1]
    C = keys_t.shape[1]
    Dm = values.shape[1]
    TM = _pick_row_tile(M)
    Mp = _round_up(M, TM)
    xb = patches.astype(jnp.bfloat16)
    if Mp != M:
        xb = jnp.pad(xb, ((0, Mp - M), (0, 0)))
    out = pl.pallas_call(
        _enc_bottleneck_kernel,
        out_shape=jax.ShapeDtypeStruct((Mp, Dm), jnp.bfloat16),
        grid=(Mp // TM,),
        in_specs=[
            pl.BlockSpec((TM, K), lambda i: (i, 0)),
            pl.BlockSpec((K, D), lambda i: (0, 0)),      # resident encoder weights
            pl.BlockSpec((1, D), lambda i: (0, 0)),      # resident encoder bias
            pl.BlockSpec((D, C), lambda i: (0, 0)),      # resident keys^T (bf16)
            pl.BlockSpec((1, C), lambda i: (0, 0)),      # resident ||key||^2 (f32)
            pl.BlockSpec((C, Dm), lambda i: (0, 0)),     # resident values (bf16)
        ],
        out_specs=pl.BlockSpec((TM, Dm), lambda i: (i, 0)),
        compiler_params=pltpu.CompilerParams(
            dimension_semantics=("parallel",),
            vmem_limit_bytes=VMEM_LIMIT),
    )(xb, enc_w, enc_b, keys_t, keys_sq, values)
    return out if Mp == M else out[:M]


# --------------------------------------------------------------------------
# Kernel 2: fused UpSimple stage = Upsample(2x, nearest) + Conv3x3(pad=1) + ReLU
#
# 9-slab / 4-phase decomposition: output pixel (2i+r, 2j+s) only sees input
# pixels (i-1..i+1, j-1..j+1).  There are 9 distinct flattened input slabs
# (dr, dc) in {0,1,2}^2; each slab multiplies a (Cin, 4*Cout) weight whose
# phase column block p=2r+s holds the summed 3x3 taps feeding that phase
# (zeros where the slab does not feed the phase).  All 9 matmuls accumulate
# into one (H*(W+2), 4*Cout) f32 accumulator, then bias+ReLU and a single
# lane-dense store.  No upsampled tensor, no im2col, no masked stores.
# --------------------------------------------------------------------------
def _upconv_kernel(x_ref, w_ref, b_ref, o_ref, *, H, W):
    # x_ref: (1, (H+3)*(W+2), Cin) bf16   w_ref: (9, Cin, 4*Cout) bf16
    # b_ref: (1, 4*Cout) f32              o_ref: (1, H*(W+2), 4*Cout) bf16
    Wp2 = W + 2
    N2 = H * Wp2
    acc = None
    for dr in range(3):
        for dc in range(3):
            q = dr * 3 + dc
            off = dr * Wp2 + dc                       # static slab offset
            slab = x_ref[0, off:off + N2, :]          # Ref slice -> (N2, Cin)
            part = jnp.dot(slab, w_ref[q], preferred_element_type=jnp.float32)
            acc = part if acc is None else acc + part
    acc = jnp.maximum(acc + b_ref[...], 0.0)
    o_ref[0, :, :] = acc.astype(o_ref.dtype)          # single lane-dense store


def upsample_conv_relu(feat_nhwc, w_slab, bias4):
    B, H, W, Cin = feat_nhwc.shape
    Cout4 = w_slab.shape[-1]
    Cout = Cout4 // 4
    Wp2 = W + 2
    N2 = H * Wp2
    # 1 row/col of conv zero-padding (+1 extra trailing pad row so flattened
    # slabs stay in-bounds; it only feeds the discarded junk columns).
    xp = jnp.pad(feat_nhwc.astype(jnp.bfloat16), ((0, 0), (1, 2), (1, 1), (0, 0)))
    xp = xp.reshape(B, (H + 3) * Wp2, Cin)
    out = pl.pallas_call(
        functools.partial(_upconv_kernel, H=H, W=W),
        out_shape=jax.ShapeDtypeStruct((B, N2, Cout4), jnp.bfloat16),
        grid=(B,),
        in_specs=[
            pl.BlockSpec((1, (H + 3) * Wp2, Cin), lambda b: (b, 0, 0)),
            pl.BlockSpec((9, Cin, Cout4), lambda b: (0, 0, 0)),  # resident weights
            pl.BlockSpec((1, Cout4), lambda b: (0, 0)),          # resident bias
        ],
        out_specs=pl.BlockSpec((1, N2, Cout4), lambda b: (b, 0, 0)),
        compiler_params=pltpu.CompilerParams(
            dimension_semantics=("parallel",),
            vmem_limit_bytes=VMEM_LIMIT),
    )(xp, w_slab, bias4)
    # phase-packed (B, H*(W+2), 4*Cout) -> drop junk cols -> interleave phases
    out = out.reshape(B, H, Wp2, 2, 2, Cout)[:, :, :W]           # (B,H,W,r,s,Cout)
    out = out.transpose(0, 1, 3, 2, 4, 5).reshape(B, 2 * H, 2 * W, Cout)
    return out


# phase/tap weight grouping: _ROW_GROUPS[parity][tap_group] -> contributing 3x3 rows (cols)
_ROW_GROUPS = (((0,), (1, 2)),      # parity 0
               ((0, 1), (2,)))      # parity 1


def make_slab_weights(w33):
    """(3,3,Cin,Cout) conv kernel -> (9, Cin, 4*Cout) slab-grouped, phase-blocked
    weights for the fused upsample(2x nearest)+conv3x3 decomposition."""
    Cin, Cout = w33.shape[2], w33.shape[3]
    slabs = []
    for dr in range(3):
        for dc in range(3):
            cols = []
            for r in range(2):
                for s in range(2):
                    g, h = dr - r, dc - s
                    if g in (0, 1) and h in (0, 1):
                        k = sum(w33[kh, kw]
                                for kh in _ROW_GROUPS[r][g]
                                for kw in _ROW_GROUPS[s][h])
                    else:
                        k = jnp.zeros((Cin, Cout), w33.dtype)
                    cols.append(k)
            slabs.append(jnp.concatenate(cols, axis=-1))          # (Cin, 4*Cout)
    return jnp.stack(slabs, axis=0).astype(jnp.bfloat16)          # (9, Cin, 4*Cout)


# --------------------------------------------------------------------------
# deterministic parameter construction (shapes implied by the module __init__)
# --------------------------------------------------------------------------
def init_params(key, in_channels=3, patch=16, embedding_dim=128,
                codebook_size=512, hidden_dims_decoder=(64, 32)):
    ks = jax.random.split(key, 8)
    D = embedding_dim
    p = {}
    # encoder stand-in (patch embedding replacing frozen dino_resnet50 conv1..layer3)
    p["enc_w"] = (0.02 * jax.random.normal(
        ks[0], (in_channels * patch * patch, D), jnp.float32)).astype(jnp.bfloat16)
    p["enc_b"] = jnp.zeros((1, D), jnp.float32)
    # bottleneck: codebook keys + memory values (num_codebooks = 1, dim_memory = D)
    keys = jax.random.normal(ks[1], (codebook_size, D), jnp.float32)
    keys_bf = keys.astype(jnp.bfloat16)
    p["keys_t"] = keys_bf.T                                           # (D, C) bf16
    # ||key||^2 from the bf16-rounded keys so distances use one key precision
    p["keys_sq"] = jnp.sum(keys_bf.astype(jnp.float32) ** 2,
                           axis=1, keepdims=True).T                   # (1, C) f32
    p["values"] = (0.02 * jax.random.normal(
        ks[2], (codebook_size, D), jnp.float32)).astype(jnp.bfloat16)
    # decoder: UpSimple(D, h0), UpSimple(h0, h1), OutConv(h1, 1)
    dims = (D,) + tuple(hidden_dims_decoder)
    p["dec"] = []
    for i in range(len(hidden_dims_decoder)):
        cin, cout = dims[i], dims[i + 1]
        w33 = 0.05 * jax.random.normal(ks[3 + i], (3, 3, cin, cout), jnp.float32)
        b = jnp.zeros((1, cout), jnp.float32)
        p["dec"].append((make_slab_weights(w33), jnp.tile(b, (1, 4))))  # (9,Cin,4Cout),(1,4Cout)
    p["out_w"] = 0.1 * jax.random.normal(ks[6], (dims[-1], 1), jnp.float32)
    p["out_b"] = jnp.zeros((1,), jnp.float32)
    return p


# --------------------------------------------------------------------------
# DKVBBin.forward (architecture_type = 'discrete_key_value_bottleneck')
# --------------------------------------------------------------------------
def dkvb_bin_forward(x, params, patch=16, embedding_dim=128):
    B, Cin, H, W = x.shape
    Hp, Wp = H // patch, W // patch
    D = embedding_dim

    # ---- frozen encoder + discrete key-value bottleneck (single fused kernel) ----
    # TODO(synk): pretrained dino_resnet50 (conv1..layer3) weights cannot be reproduced
    # in-script; this deterministic /16 patch-embedding + ReLU preserves the
    # (B, embedding_dim, H/16, W/16) output contract of the frozen encoder.
    patches = x.reshape(B, Cin, Hp, patch, Wp, patch)
    patches = patches.transpose(0, 2, 4, 1, 3, 5).reshape(B * Hp * Wp, Cin * patch * patch)
    # tokens-major layout = the reshape/permute in the PyTorch forward
    mem = encode_and_bottleneck(patches, params["enc_w"], params["enc_b"],
                                params["keys_t"], params["keys_sq"],
                                params["values"])                    # (B*n, D) bf16

    # memories (B, n, D) -> NHWC feature map (B, h, w, D)
    feat = mem.reshape(B, Hp, Wp, D)

    # ---- decoder: UpSimple blocks (fused upsample + 3x3 conv + ReLU kernel) ----
    # TODO(synk): exact UpSimple definition not provided; assumed Upsample(x2, nearest)
    # + 3x3 conv (pad=1) + ReLU.
    for (w_slab, b4) in params["dec"]:
        feat = upsample_conv_relu(feat, w_slab, b4)

    # ---- OutConv (1x1 conv, Cout=1) + Sigmoid ----
    # Cout=1 would use 1/128 of MXU lanes and force masked stores; this tiny
    # reduction + sigmoid is left to plain XLA on the VPU (bf16 in, f32 acc).
    logits = jnp.einsum("bhwc,co->bhwo", feat,
                        params["out_w"].astype(jnp.bfloat16),
                        preferred_element_type=jnp.float32)
    y = jax.nn.sigmoid(logits + params["out_b"])                  # (B, H', W', 1)
    return y.transpose(0, 3, 1, 2)                                # NCHW (B, 1, H', W')


if __name__ == "__main__":
    key = jax.random.PRNGKey(0)
    k_x, k_p = jax.random.split(key)

    # NCHW input, like the PyTorch module; /16 encoder, two x2 decoder stages.
    x = jax.random.normal(k_x, (2, 3, 64, 64), jnp.float32)
    params = init_params(k_p, in_channels=3, patch=16, embedding_dim=128,
                         codebook_size=512, hidden_dims_decoder=(64, 32))

    fwd = jax.jit(functools.partial(dkvb_bin_forward, patch=16, embedding_dim=128))
    y = fwd(x, params)
    jax.block_until_ready(y)

    assert y.shape == (2, 1, 16, 16), y.shape
    assert bool(jnp.all((y >= 0.0) & (y <= 1.0)))  # sigmoid output range
    print("KERNEL_OK")
</pallas_src>

<mosaic_0001>
module attributes {stable_mosaic.version = 11 : i64} {
  func.func @_enc_bottleneck_kernel(%arg0: i32, %arg1: memref<16x768xbf16, #tpu.memory_space<vmem>>, %arg2: memref<768x128xbf16, #tpu.memory_space<vmem>>, %arg3: memref<1x128xf32, #tpu.memory_space<vmem>>, %arg4: memref<128x512xbf16, #tpu.memory_space<vmem>>, %arg5: memref<1x512xf32, #tpu.memory_space<vmem>>, %arg6: memref<512x128xbf16, #tpu.memory_space<vmem>>, %arg7: memref<16x128xbf16, #tpu.memory_space<vmem>>) attributes {dimension_semantics = [#tpu.dimension_semantics<parallel>], iteration_bounds = array<i64: 2>, scalar_prefetch = 0 : i64, scratch_operands = 0 : i64, tpu.core_type = #tpu.core_type<tc>, window_params = [{transform_indices = @transform_0, window_bounds = array<i64: 16, 768>}, {pipeline_mode = #tpu.pipeline_mode<synchronous>, transform_indices = @transform_1, window_bounds = array<i64: 768, 128>}, {pipeline_mode = #tpu.pipeline_mode<synchronous>, transform_indices = @transform_2, window_bounds = array<i64: 1, 128>}, {pipeline_mode = #tpu.pipeline_mode<synchronous>, transform_indices = @transform_3, window_bounds = array<i64: 128, 512>}, {pipeline_mode = #tpu.pipeline_mode<synchronous>, transform_indices = @transform_4, window_bounds = array<i64: 1, 512>}, {pipeline_mode = #tpu.pipeline_mode<synchronous>, transform_indices = @transform_5, window_bounds = array<i64: 512, 128>}, {transform_indices = @transform_6, window_bounds = array<i64: 16, 128>}]} {
    %c0 = arith.constant 0 : index
    %c0_0 = arith.constant 0 : index
    %0 = vector.load %arg1[%c0, %c0_0] : memref<16x768xbf16, #tpu.memory_space<vmem>>, vector<16x768xbf16>
    %c0_1 = arith.constant 0 : index
    %c0_2 = arith.constant 0 : index
    %1 = vector.load %arg2[%c0_1, %c0_2] : memref<768x128xbf16, #tpu.memory_space<vmem>>, vector<768x128xbf16>
    %cst = arith.constant dense<0.000000e+00> : vector<16x128xf32>
    %2 = tpu.matmul %0, %1, %cst {dimension_numbers = #tpu.dot_dimension_numbers<[1], [0], [0], [1], [0, 0, 1, 1], [], []>} : vector<16x768xbf16>, vector<768x128xbf16>, vector<16x128xf32> -> vector<16x128xf32>
    %c0_3 = arith.constant 0 : index
    %c0_4 = arith.constant 0 : index
    %3 = vector.load %arg3[%c0_3, %c0_4] : memref<1x128xf32, #tpu.memory_space<vmem>>, vector<1x128xf32>
    %4 = vector.broadcast %3 : vector<1x128xf32> to vector<16x128xf32>
    %5 = arith.addf %2, %4 : vector<16x128xf32>
    %cst_5 = arith.constant 0.000000e+00 : f32
    %6 = vector.broadcast %cst_5 : f32 to vector<16x128xf32>
    %7 = arith.maximumf %5, %6 : vector<16x128xf32>
    %8 = arith.truncf %7 : vector<16x128xf32> to vector<16x128xbf16>
    %c0_6 = arith.constant 0 : index
    %c0_7 = arith.constant 0 : index
    %9 = vector.load %arg4[%c0_6, %c0_7] : memref<128x512xbf16, #tpu.memory_space<vmem>>, vector<128x512xbf16>
    %cst_8 = arith.constant dense<0.000000e+00> : vector<16x512xf32>
    %10 = tpu.matmul %8, %9, %cst_8 {dimension_numbers = #tpu.dot_dimension_numbers<[1], [0], [0], [1], [0, 0, 1, 1], [], []>} : vector<16x128xbf16>, vector<128x512xbf16>, vector<16x512xf32> -> vector<16x512xf32>
    %c0_9 = arith.constant 0 : index
    %c0_10 = arith.constant 0 : index
    %11 = vector.load %arg5[%c0_9, %c0_10] : memref<1x512xf32, #tpu.memory_space<vmem>>, vector<1x512xf32>
    %cst_11 = arith.constant 2.000000e+00 : f32
    %12 = vector.broadcast %cst_11 : f32 to vector<16x512xf32>
    %13 = arith.mulf %12, %10 : vector<16x512xf32>
    %14 = vector.broadcast %11 : vector<1x512xf32> to vector<16x512xf32>
    %15 = arith.subf %14, %13 : vector<16x512xf32>
    %16 = tpu.iota {dimensions = array<i32: 1>} : vector<16x512xi32>
    %cst_12 = arith.constant dense<0x7F800000> : vector<16xf32>
    %17 = vector.multi_reduction <minimumf>, %15, %cst_12 [1] : vector<16x512xf32> to vector<16xf32>
    %18 = vector.shape_cast %17 : vector<16xf32> to vector<16x1xf32>
    %19 = vector.broadcast %18 : vector<16x1xf32> to vector<16x512xf32>
    %20 = arith.cmpf oeq, %15, %19 : vector<16x512xf32>
    %c512_i32 = arith.constant 512 : i32
    %21 = vector.broadcast %c512_i32 : i32 to vector<16x512xi32>
    %22 = arith.select %20, %16, %21 : vector<16x512xi1>, vector<16x512xi32>
    %cst_13 = arith.constant dense<2147483647> : vector<16xi32>
    %23 = vector.multi_reduction <minsi>, %22, %cst_13 [1] : vector<16x512xi32> to vector<16xi32>
    %24 = vector.shape_cast %23 : vector<16xi32> to vector<16x1xi32>
    %25 = vector.broadcast %24 : vector<16x1xi32> to vector<16x512xi32>
    %26 = arith.cmpi eq, %16, %25 : vector<16x512xi32>
    %27 = arith.extui %26 : vector<16x512xi1> to vector<16x512xi32>
    %28 = arith.sitofp %27 : vector<16x512xi32> to vector<16x512xf32>
    %29 = arith.truncf %28 : vector<16x512xf32> to vector<16x512xbf16>
    %c0_14 = arith.constant 0 : index
    %c0_15 = arith.constant 0 : index
    %30 = vector.load %arg6[%c0_14, %c0_15] : memref<512x128xbf16, #tpu.memory_space<vmem>>, vector<512x128xbf16>
    %cst_16 = arith.constant dense<0.000000e+00> : vector<16x128xf32>
    %31 = tpu.matmul %29, %30, %cst_16 {dimension_numbers = #tpu.dot_dimension_numbers<[1], [0], [0], [1], [0, 0, 1, 1], [], []>} : vector<16x512xbf16>, vector<512x128xbf16>, vector<16x128xf32> -> vector<16x128xf32>
    %32 = arith.truncf %31 : vector<16x128xf32> to vector<16x128xbf16>
    %c0_17 = arith.constant 0 : index
    %c0_18 = arith.constant 0 : index
    %33 = vector.load %arg7[%c0_17, %c0_18] : memref<16x128xbf16, #tpu.memory_space<vmem>>, vector<16x128xbf16>
    tpu.vector_store %arg7[%c0_17, %c0_18], %32 {strides = array<i32>} : memref<16x128xbf16, #tpu.memory_space<vmem>>, vector<16x128xbf16>,
    return
  }
  func.func @transform_0(%arg0: i32) -> (i32, i32) {
    %c0_i32 = arith.constant 0 : i32
    %c0_i32_0 = arith.constant 0 : i32
    return %arg0, %c0_i32 : i32, i32
  }
  func.func @transform_1(%arg0: i32) -> (i32, i32) {
    %c0_i32 = arith.constant 0 : i32
    %c0_i32_0 = arith.constant 0 : i32
    %c0_i32_1 = arith.constant 0 : i32
    return %c0_i32, %c0_i32_0 : i32, i32
  }
  func.func @transform_2(%arg0: i32) -> (i32, i32) {
    %c0_i32 = arith.constant 0 : i32
    %c0_i32_0 = arith.constant 0 : i32
    %c0_i32_1 = arith.constant 0 : i32
    return %c0_i32, %c0_i32_0 : i32, i32
  }
  func.func @transform_3(%arg0: i32) -> (i32, i32) {
    %c0_i32 = arith.constant 0 : i32
    %c0_i32_0 = arith.constant 0 : i32
    %c0_i32_1 = arith.constant 0 : i32
    return %c0_i32, %c0_i32_0 : i32, i32
  }
  func.func @transform_4(%arg0: i32) -> (i32, i32) {
    %c0_i32 = arith.constant 0 : i32
    %c0_i32_0 = arith.constant 0 : i32
    %c0_i32_1 = arith.constant 0 : i32
    return %c0_i32, %c0_i32_0 : i32, i32
  }
  func.func @transform_5(%arg0: i32) -> (i32, i32) {
    %c0_i32 = arith.constant 0 : i32
    %c0_i32_0 = arith.constant 0 : i32
    %c0_i32_1 = arith.constant 0 : i32
    return %c0_i32, %c0_i32_0 : i32, i32
  }
  func.func @transform_6(%arg0: i32) -> (i32, i32) {
    %c0_i32 = arith.constant 0 : i32
    %c0_i32_0 = arith.constant 0 : i32
    return %arg0, %c0_i32 : i32, i32
  }
}

module attributes {stable_mosaic.version = 11 : i64} {
  func.func @_upconv_kernel(%arg0: i32, %arg1: memref<1x42x128xbf16, #tpu.memory_space<vmem>>, %arg2: memref<9x128x256xbf16, #tpu.memory_space<vmem>>, %arg3: memref<1x256xf32, #tpu.memory_space<vmem>>, %arg4: memref<1x24x256xbf16, #tpu.memory_space<vmem>>) attributes {dimension_semantics = [#tpu.dimension_semantics<parallel>], iteration_bounds = array<i64: 2>, scalar_prefetch = 0 : i64, scratch_operands = 0 : i64, tpu.core_type = #tpu.core_type<tc>, window_params = [{transform_indices = @transform_0, window_bounds = array<i64: 1, 42, 128>}, {pipeline_mode = #tpu.pipeline_mode<synchronous>, transform_indices = @transform_1, window_bounds = array<i64: 9, 128, 256>}, {pipeline_mode = #tpu.pipeline_mode<synchronous>, transform_indices = @transform_2, window_bounds = array<i64: 1, 256>}, {transform_indices = @transform_3, window_bounds = array<i64: 1, 24, 256>}]} {
    %c0 = arith.constant 0 : index
    %c0_0 = arith.constant 0 : index
    %c0_1 = arith.constant 0 : index
    %0 = vector.load %arg1[%c0, %c0_0, %c0_1] : memref<1x42x128xbf16, #tpu.memory_space<vmem>>, vector<1x24x128xbf16>
    %1 = vector.shape_cast %0 : vector<1x24x128xbf16> to vector<24x128xbf16>
    %c0_2 = arith.constant 0 : index
    %c0_3 = arith.constant 0 : index
    %c0_4 = arith.constant 0 : index
    %2 = vector.load %arg2[%c0_2, %c0_3, %c0_4] : memref<9x128x256xbf16, #tpu.memory_space<vmem>>, vector<1x128x256xbf16>
    %3 = vector.shape_cast %2 : vector<1x128x256xbf16> to vector<128x256xbf16>
    %cst = arith.constant dense<0.000000e+00> : vector<24x256xf32>
    %4 = tpu.matmul %1, %3, %cst {dimension_numbers = #tpu.dot_dimension_numbers<[1], [0], [0], [1], [0, 0, 1, 1], [], []>} : vector<24x128xbf16>, vector<128x256xbf16>, vector<24x256xf32> -> vector<24x256xf32>
    %c0_5 = arith.constant 0 : index
    %c1 = arith.constant 1 : index
    %c0_6 = arith.constant 0 : index
    %5 = vector.load %arg1[%c0_5, %c1, %c0_6] : memref<1x42x128xbf16, #tpu.memory_space<vmem>>, vector<1x24x128xbf16>
    %6 = vector.shape_cast %5 : vector<1x24x128xbf16> to vector<24x128xbf16>
    %c1_7 = arith.constant 1 : index
    %c0_8 = arith.constant 0 : index
    %c0_9 = arith.constant 0 : index
    %7 = vector.load %arg2[%c1_7, %c0_8, %c0_9] : memref<9x128x256xbf16, #tpu.memory_space<vmem>>, vector<1x128x256xbf16>
    %8 = vector.shape_cast %7 : vector<1x128x256xbf16> to vector<128x256xbf16>
    %cst_10 = arith.constant dense<0.000000e+00> : vector<24x256xf32>
    %9 = tpu.matmul %6, %8, %cst_10 {dimension_numbers = #tpu.dot_dimension_numbers<[1], [0], [0], [1], [0, 0, 1, 1], [], []>} : vector<24x128xbf16>, vector<128x256xbf16>, vector<24x256xf32> -> vector<24x256xf32>
    %10 = arith.addf %4, %9 : vector<24x256xf32>
    %c0_11 = arith.constant 0 : index
    %c2 = arith.constant 2 : index
    %c0_12 = arith.constant 0 : index
    %11 = vector.load %arg1[%c0_11, %c2, %c0_12] : memref<1x42x128xbf16, #tpu.memory_space<vmem>>, vector<1x24x128xbf16>
    %12 = vector.shape_cast %11 : vector<1x24x128xbf16> to vector<24x128xbf16>
    %c2_13 = arith.constant 2 : index
    %c0_14 = arith.constant 0 : index
    %c0_15 = arith.constant 0 : index
    %13 = vector.load %arg2[%c2_13, %c0_14, %c0_15] : memref<9x128x256xbf16, #tpu.memory_space<vmem>>, vector<1x128x256xbf16>
    %14 = vector.shape_cast %13 : vector<1x128x256xbf16> to vector<128x256xbf16>
    %cst_16 = arith.constant dense<0.000000e+00> : vector<24x256xf32>
    %15 = tpu.matmul %12, %14, %cst_16 {dimension_numbers = #tpu.dot_dimension_numbers<[1], [0], [0], [1], [0, 0, 1, 1], [], []>} : vector<24x128xbf16>, vector<128x256xbf16>, vector<24x256xf32> -> vector<24x256xf32>
    %16 = arith.addf %10, %15 : vector<24x256xf32>
    %c0_17 = arith.constant 0 : index
    %c6 = arith.constant 6 : index
    %c0_18 = arith.constant 0 : index
    %17 = vector.load %arg1[%c0_17, %c6, %c0_18] : memref<1x42x128xbf16, #tpu.memory_space<vmem>>, vector<1x24x128xbf16>
    %18 = vector.shape_cast %17 : vector<1x24x128xbf16> to vector<24x128xbf16>
    %c3 = arith.constant 3 : index
    %c0_19 = arith.constant 0 : index
    %c0_20 = arith.constant 0 : index
    %19 = vector.load %arg2[%c3, %c0_19, %c0_20] : memref<9x128x256xbf16, #tpu.memory_space<vmem>>, vector<1x128x256xbf16>
    %20 = vector.shape_cast %19 : vector<1x128x256xbf16> to vector<128x256xbf16>
    %cst_21 = arith.constant dense<0.000000e+00> : vector<24x256xf32>
    %21 = tpu.matmul %18, %20, %cst_21 {dimension_numbers = #tpu.dot_dimension_numbers<[1], [0], [0], [1], [0, 0, 1, 1], [], []>} : vector<24x128xbf16>, vector<128x256xbf16>, vector<24x256xf32> -> vector<24x256xf32>
    %22 = arith.addf %16, %21 : vector<24x256xf32>
    %c0_22 = arith.constant 0 : index
    %c7 = arith.constant 7 : index
    %c0_23 = arith.constant 0 : index
    %23 = vector.load %arg1[%c0_22, %c7, %c0_23] : memref<1x42x128xbf16, #tpu.memory_space<vmem>>, vector<1x24x128xbf16>
    %24 = vector.shape_cast %23 : vector<1x24x128xbf16> to vector<24x128xbf16>
    %c4 = arith.constant 4 : index
    %c0_24 = arith.constant 0 : index
    %c0_25 = arith.constant 0 : index
    %25 = vector.load %arg2[%c4, %c0_24, %c0_25] : memref<9x128x256xbf16, #tpu.memory_space<vmem>>, vector<1x128x256xbf16>
    %26 = vector.shape_cast %25 : vector<1x128x256xbf16> to vector<128x256xbf16>
    %cst_26 = arith.constant dense<0.000000e+00> : vector<24x256xf32>
    %27 = tpu.matmul %24, %26, %cst_26 {dimension_numbers = #tpu.dot_dimension_numbers<[1], [0], [0], [1], [0, 0, 1, 1], [], []>} : vector<24x128xbf16>, vector<128x256xbf16>, vector<24x256xf32> -> vector<24x256xf32>
    %28 = arith.addf %22, %27 : vector<24x256xf32>
    %c0_27 = arith.constant 0 : index
    %c8 = arith.constant 8 : index
    %c0_28 = arith.constant 0 : index
    %29 = vector.load %arg1[%c0_27, %c8, %c0_28] : memref<1x42x128xbf16, #tpu.memory_space<vmem>>, vector<1x24x128xbf16>
    %30 = vector.shape_cast %29 : vector<1x24x128xbf16> to vector<24x128xbf16>
    %c5 = arith.constant 5 : index
    %c0_29 = arith.constant 0 : index
    %c0_30 = arith.constant 0 : index
    %31 = vector.load %arg2[%c5, %c0_29, %c0_30] : memref<9x128x256xbf16, #tpu.memory_space<vmem>>, vector<1x128x256xbf16>
    %32 = vector.shape_cast %31 : vector<1x128x256xbf16> to vector<128x256xbf16>
    %cst_31 = arith.constant dense<0.000000e+00> : vector<24x256xf32>
    %33 = tpu.matmul %30, %32, %cst_31 {dimension_numbers = #tpu.dot_dimension_numbers<[1], [0], [0], [1], [0, 0, 1, 1], [], []>} : vector<24x128xbf16>, vector<128x256xbf16>, vector<24x256xf32> -> vector<24x256xf32>
    %34 = arith.addf %28, %33 : vector<24x256xf32>
    %c0_32 = arith.constant 0 : index
    %c12 = arith.constant 12 : index
    %c0_33 = arith.constant 0 : index
    %35 = vector.load %arg1[%c0_32, %c12, %c0_33] : memref<1x42x128xbf16, #tpu.memory_space<vmem>>, vector<1x24x128xbf16>
    %36 = vector.shape_cast %35 : vector<1x24x128xbf16> to vector<24x128xbf16>
    %c6_34 = arith.constant 6 : index
    %c0_35 = arith.constant 0 : index
    %c0_36 = arith.constant 0 : index
    %37 = vector.load %arg2[%c6_34, %c0_35, %c0_36] : memref<9x128x256xbf16, #tpu.memory_space<vmem>>, vector<1x128x256xbf16>
    %38 = vector.shape_cast %37 : vector<1x128x256xbf16> to vector<128x256xbf16>
    %cst_37 = arith.constant dense<0.000000e+00> : vector<24x256xf32>
    %39 = tpu.matmul %36, %38, %cst_37 {dimension_numbers = #tpu.dot_dimension_numbers<[1], [0], [0], [1], [0, 0, 1, 1], [], []>} : vector<24x128xbf16>, vector<128x256xbf16>, vector<24x256xf32> -> vector<24x256xf32>
    %40 = arith.addf %34, %39 : vector<24x256xf32>
    %c0_38 = arith.constant 0 : index
    %c13 = arith.constant 13 : index
    %c0_39 = arith.constant 0 : index
    %41 = vector.load %arg1[%c0_38, %c13, %c0_39] : memref<1x42x128xbf16, #tpu.memory_space<vmem>>, vector<1x24x128xbf16>
    %42 = vector.shape_cast %41 : vector<1x24x128xbf16> to vector<24x128xbf16>
    %c7_40 = arith.constant 7 : index
    %c0_41 = arith.constant 0 : index
    %c0_42 = arith.constant 0 : index
    %43 = vector.load %arg2[%c7_40, %c0_41, %c0_42] : memref<9x128x256xbf16, #tpu.memory_space<vmem>>, vector<1x128x256xbf16>
    %44 = vector.shape_cast %43 : vector<1x128x256xbf16> to vector<128x256xbf16>
    %cst_43 = arith.constant dense<0.000000e+00> : vector<24x256xf32>
    %45 = tpu.matmul %42, %44, %cst_43 {dimension_numbers = #tpu.dot_dimension_numbers<[1], [0], [0], [1], [0, 0, 1, 1], [], []>} : vector<24x128xbf16>, vector<128x256xbf16>, vector<24x256xf32> -> vector<24x256xf32>
    %46 = arith.addf %40, %45 : vector<24x256xf32>
    %c0_44 = arith.constant 0 : index
    %c14 = arith.constant 14 : index
    %c0_45 = arith.constant 0 : index
    %47 = vector.load %arg1[%c0_44, %c14, %c0_45] : memref<1x42x128xbf16, #tpu.memory_space<vmem>>, vector<1x24x128xbf16>
    %48 = vector.shape_cast %47 : vector<1x24x128xbf16> to vector<24x128xbf16>
    %c8_46 = arith.constant 8 : index
    %c0_47 = arith.constant 0 : index
    %c0_48 = arith.constant 0 : index
    %49 = vector.load %arg2[%c8_46, %c0_47, %c0_48] : memref<9x128x256xbf16, #tpu.memory_space<vmem>>, vector<1x128x256xbf16>
    %50 = vector.shape_cast %49 : vector<1x128x256xbf16> to vector<128x256xbf16>
    %cst_49 = arith.constant dense<0.000000e+00> : vector<24x256xf32>
    %51 = tpu.matmul %48, %50, %cst_49 {dimension_numbers = #tpu.dot_dimension_numbers<[1], [0], [0], [1], [0, 0, 1, 1], [], []>} : vector<24x128xbf16>, vector<128x256xbf16>, vector<24x256xf32> -> vector<24x256xf32>
    %52 = arith.addf %46, %51 : vector<24x256xf32>
    %c0_50 = arith.constant 0 : index
    %c0_51 = arith.constant 0 : index
    %53 = vector.load %arg3[%c0_50, %c0_51] : memref<1x256xf32, #tpu.memory_space<vmem>>, vector<1x256xf32>
    %54 = vector.broadcast %53 : vector<1x256xf32> to vector<24x256xf32>
    %55 = arith.addf %52, %54 : vector<24x256xf32>
    %cst_52 = arith.constant 0.000000e+00 : f32
    %56 = vector.broadcast %cst_52 : f32 to vector<24x256xf32>
    %57 = arith.maximumf %55, %56 : vector<24x256xf32>
    %58 = arith.truncf %57 : vector<24x256xf32> to vector<24x256xbf16>
    %c0_53 = arith.constant 0 : index
    %c0_54 = arith.constant 0 : index
    %c0_55 = arith.constant 0 : index
    %59 = vector.load %arg4[%c0_53, %c0_54, %c0_55] : memref<1x24x256xbf16, #tpu.memory_space<vmem>>, vector<1x24x256xbf16>
    %60 = vector.shape_cast %59 : vector<1x24x256xbf16> to vector<24x256xbf16>
    %61 = vector.shape_cast %58 : vector<24x256xbf16> to vector<1x24x256xbf16>
    tpu.vector_store %arg4[%c0_53, %c0_54, %c0_55], %61 {strides = array<i32>} : memref<1x24x256xbf16, #tpu.memory_space<vmem>>, vector<1x24x256xbf16>,
    return
  }
  func.func @transform_0(%arg0: i32) -> (i32, i32, i32) {
    %c0_i32 = arith.constant 0 : i32
    %c0_i32_0 = arith.constant 0 : i32
    %c0_i32_1 = arith.constant 0 : i32
    return %arg0, %c0_i32, %c0_i32_0 : i32, i32, i32
  }
  func.func @transform_1(%arg0: i32) -> (i32, i32, i32) {
    %c0_i32 = arith.constant 0 : i32
    %c0_i32_0 = arith.constant 0 : i32
    %c0_i32_1 = arith.constant 0 : i32
    %c0_i32_2 = arith.constant 0 : i32
    return %c0_i32, %c0_i32_0, %c0_i32_1 : i32, i32, i32
  }
  func.func @transform_2(%arg0: i32) -> (i32, i32) {
    %c0_i32 = arith.constant 0 : i32
    %c0_i32_0 = arith.constant 0 : i32
    %c0_i32_1 = arith.constant 0 : i32
    return %c0_i32, %c0_i32_0 : i32, i32
  }
  func.func @transform_3(%arg0: i32) -> (i32, i32, i32) {
    %c0_i32 = arith.constant 0 : i32
    %c0_i32_0 = arith.constant 0 : i32
    %c0_i32_1 = arith.constant 0 : i32
    return %arg0, %c0_i32, %c0_i32_0 : i32, i32, i32
  }
}

module attributes {stable_mosaic.version = 11 : i64} {
  func.func @_upconv_kernel(%arg0: i32, %arg1: memref<1x110x64xbf16, #tpu.memory_space<vmem>>, %arg2: memref<9x64x128xbf16, #tpu.memory_space<vmem>>, %arg3: memref<1x128xf32, #tpu.memory_space<vmem>>, %arg4: memref<1x80x128xbf16, #tpu.memory_space<vmem>>) attributes {dimension_semantics = [#tpu.dimension_semantics<parallel>], iteration_bounds = array<i64: 2>, scalar_prefetch = 0 : i64, scratch_operands = 0 : i64, tpu.core_type = #tpu.core_type<tc>, window_params = [{transform_indices = @transform_0, window_bounds = array<i64: 1, 110, 64>}, {pipeline_mode = #tpu.pipeline_mode<synchronous>, transform_indices = @transform_1, window_bounds = array<i64: 9, 64, 128>}, {pipeline_mode = #tpu.pipeline_mode<synchronous>, transform_indices = @transform_2, window_bounds = array<i64: 1, 128>}, {transform_indices = @transform_3, window_bounds = array<i64: 1, 80, 128>}]} {
    %c0 = arith.constant 0 : index
    %c0_0 = arith.constant 0 : index
    %c0_1 = arith.constant 0 : index
    %0 = vector.load %arg1[%c0, %c0_0, %c0_1] : memref<1x110x64xbf16, #tpu.memory_space<vmem>>, vector<1x80x64xbf16>
    %1 = vector.shape_cast %0 : vector<1x80x64xbf16> to vector<80x64xbf16>
    %c0_2 = arith.constant 0 : index
    %c0_3 = arith.constant 0 : index
    %c0_4 = arith.constant 0 : index
    %2 = vector.load %arg2[%c0_2, %c0_3, %c0_4] : memref<9x64x128xbf16, #tpu.memory_space<vmem>>, vector<1x64x128xbf16>
    %3 = vector.shape_cast %2 : vector<1x64x128xbf16> to vector<64x128xbf16>
    %cst = arith.constant dense<0.000000e+00> : vector<80x128xf32>
    %4 = tpu.matmul %1, %3, %cst {dimension_numbers = #tpu.dot_dimension_numbers<[1], [0], [0], [1], [0, 0, 1, 1], [], []>} : vector<80x64xbf16>, vector<64x128xbf16>, vector<80x128xf32> -> vector<80x128xf32>
    %c0_5 = arith.constant 0 : index
    %c1 = arith.constant 1 : index
    %c0_6 = arith.constant 0 : index
    %5 = vector.load %arg1[%c0_5, %c1, %c0_6] : memref<1x110x64xbf16, #tpu.memory_space<vmem>>, vector<1x80x64xbf16>
    %6 = vector.shape_cast %5 : vector<1x80x64xbf16> to vector<80x64xbf16>
    %c1_7 = arith.constant 1 : index
    %c0_8 = arith.constant 0 : index
    %c0_9 = arith.constant 0 : index
    %7 = vector.load %arg2[%c1_7, %c0_8, %c0_9] : memref<9x64x128xbf16, #tpu.memory_space<vmem>>, vector<1x64x128xbf16>
    %8 = vector.shape_cast %7 : vector<1x64x128xbf16> to vector<64x128xbf16>
    %cst_10 = arith.constant dense<0.000000e+00> : vector<80x128xf32>
    %9 = tpu.matmul %6, %8, %cst_10 {dimension_numbers = #tpu.dot_dimension_numbers<[1], [0], [0], [1], [0, 0, 1, 1], [], []>} : vector<80x64xbf16>, vector<64x128xbf16>, vector<80x128xf32> -> vector<80x128xf32>
    %10 = arith.addf %4, %9 : vector<80x128xf32>
    %c0_11 = arith.constant 0 : index
    %c2 = arith.constant 2 : index
    %c0_12 = arith.constant 0 : index
    %11 = vector.load %arg1[%c0_11, %c2, %c0_12] : memref<1x110x64xbf16, #tpu.memory_space<vmem>>, vector<1x80x64xbf16>
    %12 = vector.shape_cast %11 : vector<1x80x64xbf16> to vector<80x64xbf16>
    %c2_13 = arith.constant 2 : index
    %c0_14 = arith.constant 0 : index
    %c0_15 = arith.constant 0 : index
    %13 = vector.load %arg2[%c2_13, %c0_14, %c0_15] : memref<9x64x128xbf16, #tpu.memory_space<vmem>>, vector<1x64x128xbf16>
    %14 = vector.shape_cast %13 : vector<1x64x128xbf16> to vector<64x128xbf16>
    %cst_16 = arith.constant dense<0.000000e+00> : vector<80x128xf32>
    %15 = tpu.matmul %12, %14, %cst_16 {dimension_numbers = #tpu.dot_dimension_numbers<[1], [0], [0], [1], [0, 0, 1, 1], [], []>} : vector<80x64xbf16>, vector<64x128xbf16>, vector<80x128xf32> -> vector<80x128xf32>
    %16 = arith.addf %10, %15 : vector<80x128xf32>
    %c0_17 = arith.constant 0 : index
    %c10 = arith.constant 10 : index
    %c0_18 = arith.constant 0 : index
    %17 = vector.load %arg1[%c0_17, %c10, %c0_18] : memref<1x110x64xbf16, #tpu.memory_space<vmem>>, vector<1x80x64xbf16>
    %18 = vector.shape_cast %17 : vector<1x80x64xbf16> to vector<80x64xbf16>
    %c3 = arith.constant 3 : index
    %c0_19 = arith.constant 0 : index
    %c0_20 = arith.constant 0 : index
    %19 = vector.load %arg2[%c3, %c0_19, %c0_20] : memref<9x64x128xbf16, #tpu.memory_space<vmem>>, vector<1x64x128xbf16>
    %20 = vector.shape_cast %19 : vector<1x64x128xbf16> to vector<64x128xbf16>
    %cst_21 = arith.constant dense<0.000000e+00> : vector<80x128xf32>
    %21 = tpu.matmul %18, %20, %cst_21 {dimension_numbers = #tpu.dot_dimension_numbers<[1], [0], [0], [1], [0, 0, 1, 1], [], []>} : vector<80x64xbf16>, vector<64x128xbf16>, vector<80x128xf32> -> vector<80x128xf32>
    %22 = arith.addf %16, %21 : vector<80x128xf32>
    %c0_22 = arith.constant 0 : index
    %c11 = arith.constant 11 : index
    %c0_23 = arith.constant 0 : index
    %23 = vector.load %arg1[%c0_22, %c11, %c0_23] : memref<1x110x64xbf16, #tpu.memory_space<vmem>>, vector<1x80x64xbf16>
    %24 = vector.shape_cast %23 : vector<1x80x64xbf16> to vector<80x64xbf16>
    %c4 = arith.constant 4 : index
    %c0_24 = arith.constant 0 : index
    %c0_25 = arith.constant 0 : index
    %25 = vector.load %arg2[%c4, %c0_24, %c0_25] : memref<9x64x128xbf16, #tpu.memory_space<vmem>>, vector<1x64x128xbf16>
    %26 = vector.shape_cast %25 : vector<1x64x128xbf16> to vector<64x128xbf16>
    %cst_26 = arith.constant dense<0.000000e+00> : vector<80x128xf32>
    %27 = tpu.matmul %24, %26, %cst_26 {dimension_numbers = #tpu.dot_dimension_numbers<[1], [0], [0], [1], [0, 0, 1, 1], [], []>} : vector<80x64xbf16>, vector<64x128xbf16>, vector<80x128xf32> -> vector<80x128xf32>
    %28 = arith.addf %22, %27 : vector<80x128xf32>
    %c0_27 = arith.constant 0 : index
    %c12 = arith.constant 12 : index
    %c0_28 = arith.constant 0 : index
    %29 = vector.load %arg1[%c0_27, %c12, %c0_28] : memref<1x110x64xbf16, #tpu.memory_space<vmem>>, vector<1x80x64xbf16>
    %30 = vector.shape_cast %29 : vector<1x80x64xbf16> to vector<80x64xbf16>
    %c5 = arith.constant 5 : index
    %c0_29 = arith.constant 0 : index
    %c0_30 = arith.constant 0 : index
    %31 = vector.load %arg2[%c5, %c0_29, %c0_30] : memref<9x64x128xbf16, #tpu.memory_space<vmem>>, vector<1x64x128xbf16>
    %32 = vector.shape_cast %31 : vector<1x64x128xbf16> to vector<64x128xbf16>
    %cst_31 = arith.constant dense<0.000000e+00> : vector<80x128xf32>
    %33 = tpu.matmul %30, %32, %cst_31 {dimension_numbers = #tpu.dot_dimension_numbers<[1], [0], [0], [1], [0, 0, 1, 1], [], []>} : vector<80x64xbf16>, vector<64x128xbf16>, vector<80x128xf32> -> vector<80x128xf32>
    %34 = arith.addf %28, %33 : vector<80x128xf32>
    %c0_32 = arith.constant 0 : index
    %c20 = arith.constant 20 : index
    %c0_33 = arith.constant 0 : index
    %35 = vector.load %arg1[%c0_32, %c20, %c0_33] : memref<1x110x64xbf16, #tpu.memory_space<vmem>>, vector<1x80x64xbf16>
    %36 = vector.shape_cast %35 : vector<1x80x64xbf16> to vector<80x64xbf16>
    %c6 = arith.constant 6 : index
    %c0_34 = arith.constant 0 : index
    %c0_35 = arith.constant 0 : index
    %37 = vector.load %arg2[%c6, %c0_34, %c0_35] : memref<9x64x128xbf16, #tpu.memory_space<vmem>>, vector<1x64x128xbf16>
    %38 = vector.shape_cast %37 : vector<1x64x128xbf16> to vector<64x128xbf16>
    %cst_36 = arith.constant dense<0.000000e+00> : vector<80x128xf32>
    %39 = tpu.matmul %36, %38, %cst_36 {dimension_numbers = #tpu.dot_dimension_numbers<[1], [0], [0], [1], [0, 0, 1, 1], [], []>} : vector<80x64xbf16>, vector<64x128xbf16>, vector<80x128xf32> -> vector<80x128xf32>
    %40 = arith.addf %34, %39 : vector<80x128xf32>
    %c0_37 = arith.constant 0 : index
    %c21 = arith.constant 21 : index
    %c0_38 = arith.constant 0 : index
    %41 = vector.load %arg1[%c0_37, %c21, %c0_38] : memref<1x110x64xbf16, #tpu.memory_space<vmem>>, vector<1x80x64xbf16>
    %42 = vector.shape_cast %41 : vector<1x80x64xbf16> to vector<80x64xbf16>
    %c7 = arith.constant 7 : index
    %c0_39 = arith.constant 0 : index
    %c0_40 = arith.constant 0 : index
    %43 = vector.load %arg2[%c7, %c0_39, %c0_40] : memref<9x64x128xbf16, #tpu.memory_space<vmem>>, vector<1x64x128xbf16>
    %44 = vector.shape_cast %43 : vector<1x64x128xbf16> to vector<64x128xbf16>
    %cst_41 = arith.constant dense<0.000000e+00> : vector<80x128xf32>
    %45 = tpu.matmul %42, %44, %cst_41 {dimension_numbers = #tpu.dot_dimension_numbers<[1], [0], [0], [1], [0, 0, 1, 1], [], []>} : vector<80x64xbf16>, vector<64x128xbf16>, vector<80x128xf32> -> vector<80x128xf32>
    %46 = arith.addf %40, %45 : vector<80x128xf32>
    %c0_42 = arith.constant 0 : index
    %c22 = arith.constant 22 : index
    %c0_43 = arith.constant 0 : index
    %47 = vector.load %arg1[%c0_42, %c22, %c0_43] : memref<1x110x64xbf16, #tpu.memory_space<vmem>>, vector<1x80x64xbf16>
    %48 = vector.shape_cast %47 : vector<1x80x64xbf16> to vector<80x64xbf16>
    %c8 = arith.constant 8 : index
    %c0_44 = arith.constant 0 : index
    %c0_45 = arith.constant 0 : index
    %49 = vector.load %arg2[%c8, %c0_44, %c0_45] : memref<9x64x128xbf16, #tpu.memory_space<vmem>>, vector<1x64x128xbf16>
    %50 = vector.shape_cast %49 : vector<1x64x128xbf16> to vector<64x128xbf16>
    %cst_46 = arith.constant dense<0.000000e+00> : vector<80x128xf32>
    %51 = tpu.matmul %48, %50, %cst_46 {dimension_numbers = #tpu.dot_dimension_numbers<[1], [0], [0], [1], [0, 0, 1, 1], [], []>} : vector<80x64xbf16>, vector<64x128xbf16>, vector<80x128xf32> -> vector<80x128xf32>
    %52 = arith.addf %46, %51 : vector<80x128xf32>
    %c0_47 = arith.constant 0 : index
    %c0_48 = arith.constant 0 : index
    %53 = vector.load %arg3[%c0_47, %c0_48] : memref<1x128xf32, #tpu.memory_space<vmem>>, vector<1x128xf32>
    %54 = vector.broadcast %53 : vector<1x128xf32> to vector<80x128xf32>
    %55 = arith.addf %52, %54 : vector<80x128xf32>
    %cst_49 = arith.constant 0.000000e+00 : f32
    %56 = vector.broadcast %cst_49 : f32 to vector<80x128xf32>
    %57 = arith.maximumf %55, %56 : vector<80x128xf32>
    %58 = arith.truncf %57 : vector<80x128xf32> to vector<80x128xbf16>
    %c0_50 = arith.constant 0 : index
    %c0_51 = arith.constant 0 : index
    %c0_52 = arith.constant 0 : index
    %59 = vector.load %arg4[%c0_50, %c0_51, %c0_52] : memref<1x80x128xbf16, #tpu.memory_space<vmem>>, vector<1x80x128xbf16>
    %60 = vector.shape_cast %59 : vector<1x80x128xbf16> to vector<80x128xbf16>
    %61 = vector.shape_cast %58 : vector<80x128xbf16> to vector<1x80x128xbf16>
    tpu.vector_store %arg4[%c0_50, %c0_51, %c0_52], %61 {strides = array<i32>} : memref<1x80x128xbf16, #tpu.memory_space<vmem>>, vector<1x80x128xbf16>,
    return
  }
  func.func @transform_0(%arg0: i32) -> (i32, i32, i32) {
    %c0_i32 = arith.constant 0 : i32
    %c0_i32_0 = arith.constant 0 : i32
    %c0_i32_1 = arith.constant 0 : i32
    return %arg0, %c0_i32, %c0_i32_0 : i32, i32, i32
  }
  func.func @transform_1(%arg0: i32) -> (i32, i32, i32) {
    %c0_i32 = arith.constant 0 : i32
    %c0_i32_0 = arith.constant 0 : i32
    %c0_i32_1 = arith.constant 0 : i32
    %c0_i32_2 = arith.constant 0 : i32
    return %c0_i32, %c0_i32_0, %c0_i32_1 : i32, i32, i32
  }
  func.func @transform_2(%arg0: i32) -> (i32, i32) {
    %c0_i32 = arith.constant 0 : i32
    %c0_i32_0 = arith.constant 0 : i32
    %c0_i32_1 = arith.constant 0 : i32
    return %c0_i32, %c0_i32_0 : i32, i32
  }
  func.func @transform_3(%arg0: i32) -> (i32, i32, i32) {
    %c0_i32 = arith.constant 0 : i32
    %c0_i32_0 = arith.constant 0 : i32
    %c0_i32_1 = arith.constant 0 : i32
    return %arg0, %c0_i32, %c0_i32_0 : i32, i32, i32
  }
}

</mosaic_0001>

<llo_original>
// kernel: dkvb_bin_forward.3
$region0: #{dkvb_bin_forward.3}
  #allocation0 [shape = 'u32[]', space=smem, size = 0x4, offset = 0x4, fixed_abs, tag = 'smem constant byte address 0x4 - core index']
  #allocation1 [shape = 'u32[144,128]{1,0:T(1,128)}', space=vmem, size = 0x12000, scoped, tag = 'internal scratch']
  %s0 = inlined_call_operand.vmem [shape: bf16[32,768], index: 0, kind: input, shape index: {}]
  %s1 = inlined_call_operand.vmem [shape: bf16[768,128], index: 1, kind: input, shape index: {}]
  %s2 = inlined_call_operand.vmem [shape: f32[1,128], index: 2, kind: input, shape index: {}]
  %s3 = inlined_call_operand.vmem [shape: bf16[128,512], index: 3, kind: input, shape index: {}]
  %s4 = inlined_call_operand.vmem [shape: f32[1,512], index: 4, kind: input, shape index: {}]
  %s5 = inlined_call_operand.vmem [shape: bf16[512,128], index: 5, kind: input, shape index: {}]
  %s6 = inlined_call_operand.vmem [shape: bf16[32,128], index: 6, kind: output, shape index: {}]
  %s7 = sld [smem:[#allocation0]]
  $region57: #{dkvb_bin_forward.3} parent=0
    _
  %s9 = ssub.s32 1, %s7
  %s10 = scalar_select 0, %s9, %s7
  loop: start=0, step=1, limit=4
  $region2: #{dkvb_bin_forward.3} parent=0 // loop_pre_header
    _
  $region3: #{dkvb_bin_forward.3} parent=0 // loop_header
    %s12 = sphi 0, %s16
    %p13 = scmp.ge.s32.totalorder %s12, 4
    %s22 = sphi 0, %s24
    %s25 = sphi 0, %s22
    %s26 = sphi 0, %s25
    %s42 = sphi 0, %s26
    %s46 = sphi 0, %s46
    %s48 = sphi 0, %s46
    %s49 = sphi 0, %s48
    %s63 = sphi 0, %s49
    %s67 = sphi 0, %s67
    %s69 = sphi 0, %s67
    %s70 = sphi 0, %s69
    %s84 = sphi 0, %s70
    %s88 = sphi 0, %s88
    %s90 = sphi 0, %s88
    %s91 = sphi 0, %s90
    %s105 = sphi 0, %s91
    %s109 = sphi 0, %s109
    %s111 = sphi 0, %s109
    %s112 = sphi 0, %s111
    %s126 = sphi 0, %s112
    %s130 = sphi 0, %s130
    %s132 = sphi 0, %s130
    %s133 = sphi 0, %s132
    %s147 = sphi 0, %s133
    %s153 = sphi 0, %s155
    %s156 = sphi 0, %s153
    %s157 = sphi 0, %s156
    %s173 = sphi 0, %s157
  $region4: #{dkvb_bin_forward.3} parent=0 // loop_header_branch
    %15 = sbr.rel (%p13) target = $region8
  $region5: #{dkvb_bin_forward.3} parent=0 // loop_body
    %s17 = ssub.s32 %s12, 1
    %s18 = ssub.s32 %s12, 2
    %s19 = sadd.s32 %s12, 1
    %s20 = ssub.s32 %s12, %s19
    %p21 = scmp.eq.s32.totalorder %s20, 0
    %s23 = sadd.s32 %s22, 1
    %s24 = scalar_select %p21, %s22, %s23
    %p27 = pneg %p21
    %p28 = scmp.eq.s32.totalorder %s12, 1
    %p29 = por %p27, %p28
    %p30 = scmp.ne.s32.totalorder %s22, %s25
    %p31 = scmp.eq.s32.totalorder %s12, 0
    %p32 = por %p30, %p31
    %p33 = scmp.ne.s32.totalorder %s22, %s25
    %p34 = scmp.eq.s32.totalorder %s17, 1
    %p35 = por %p33, %p34
    %p36 = scmp.ne.s32.totalorder %s25, %s26
    %p37 = scmp.eq.s32.totalorder %s17, 0
    %p38 = por %p36, %p37
    %p39 = scmp.ne.s32.totalorder %s25, %s26
    %p40 = scmp.eq.s32.totalorder %s18, 1
    %p41 = por %p39, %p40
    %p43 = scmp.ne.s32.totalorder %s26, %s42
    %p44 = scmp.eq.s32.totalorder %s18, 0
    %p45 = por %p43, %p44
    %s47 = sadd.s32 %s46, 1
    %p50 = scmp.eq.s32.totalorder %s12, 1
    %p51 = scmp.ne.s32.totalorder %s46, %s48
    %p52 = scmp.eq.s32.totalorder %s12, 0
    %p53 = por %p51, %p52
    %p54 = scmp.ne.s32.totalorder %s46, %s48
    %p55 = scmp.eq.s32.totalorder %s17, 1
    %p56 = por %p54, %p55
    %p57 = scmp.ne.s32.totalorder %s48, %s49
    %p58 = scmp.eq.s32.totalorder %s17, 0
    %p59 = por %p57, %p58
    %p60 = scmp.ne.s32.totalorder %s48, %s49
    %p61 = scmp.eq.s32.totalorder %s18, 1
    %p62 = por %p60, %p61
    %p64 = scmp.ne.s32.totalorder %s49, %s63
    %p65 = scmp.eq.s32.totalorder %s18, 0
    %p66 = por %p64, %p65
    %s68 = sadd.s32 %s67, 1
    %p71 = scmp.eq.s32.totalorder %s12, 1
    %p72 = scmp.ne.s32.totalorder %s67, %s69
    %p73 = scmp.eq.s32.totalorder %s12, 0
    %p74 = por %p72, %p73
    %p75 = scmp.ne.s32.totalorder %s67, %s69
    %p76 = scmp.eq.s32.totalorder %s17, 1
    %p77 = por %p75, %p76
    %p78 = scmp.ne.s32.totalorder %s69, %s70
    %p79 = scmp.eq.s32.totalorder %s17, 0
    %p80 = por %p78, %p79
    %p81 = scmp.ne.s32.totalorder %s69, %s70
    %p82 = scmp.eq.s32.totalorder %s18, 1
    %p83 = por %p81, %p82
    %p85 = scmp.ne.s32.totalorder %s70, %s84
    %p86 = scmp.eq.s32.totalorder %s18, 0
    %p87 = por %p85, %p86
    %s89 = sadd.s32 %s88, 1
    %p92 = scmp.eq.s32.totalorder %s12, 1
    %p93 = scmp.ne.s32.totalorder %s88, %s90
    %p94 = scmp.eq.s32.totalorder %s12, 0
    %p95 = por %p93, %p94
    %p96 = scmp.ne.s32.totalorder %s88, %s90
    %p97 = scmp.eq.s32.totalorder %s17, 1
    %p98 = por %p96, %p97
    %p99 = scmp.ne.s32.totalorder %s90, %s91
    %p100 = scmp.eq.s32.totalorder %s17, 0
    %p101 = por %p99, %p100
    %p102 = scmp.ne.s32.totalorder %s90, %s91
    %p103 = scmp.eq.s32.totalorder %s18, 1
    %p104 = por %p102, %p103
    %p106 = scmp.ne.s32.totalorder %s91, %s105
    %p107 = scmp.eq.s32.totalorder %s18, 0
    %p108 = por %p106, %p107
    %s110 = sadd.s32 %s109, 1
    %p113 = scmp.eq.s32.totalorder %s12, 1
    %p114 = scmp.ne.s32.totalorder %s109, %s111
    %p115 = scmp.eq.s32.totalorder %s12, 0
    %p116 = por %p114, %p115
    %p117 = scmp.ne.s32.totalorder %s109, %s111
    %p118 = scmp.eq.s32.totalorder %s17, 1
    %p119 = por %p117, %p118
    %p120 = scmp.ne.s32.totalorder %s111, %s112
    %p121 = scmp.eq.s32.totalorder %s17, 0
    %p122 = por %p120, %p121
    %p123 = scmp.ne.s32.totalorder %s111, %s112
    %p124 = scmp.eq.s32.totalorder %s18, 1
    %p125 = por %p123, %p124
    %p127 = scmp.ne.s32.totalorder %s112, %s126
    %p128 = scmp.eq.s32.totalorder %s18, 0
    %p129 = por %p127, %p128
    %s131 = sadd.s32 %s130, 1
    %p134 = scmp.eq.s32.totalorder %s12, 1
    %p135 = scmp.ne.s32.totalorder %s130, %s132
    %p136 = scmp.eq.s32.totalorder %s12, 0
    %p137 = por %p135, %p136
    %p138 = scmp.ne.s32.totalorder %s130, %s132
    %p139 = scmp.eq.s32.totalorder %s17, 1
    %p140 = por %p138, %p139
    %p141 = scmp.ne.s32.totalorder %s132, %s133
    %p142 = scmp.eq.s32.totalorder %s17, 0
    %p143 = por %p141, %p142
    %p144 = scmp.ne.s32.totalorder %s132, %s133
    %p145 = scmp.eq.s32.totalorder %s18, 1
    %p146 = por %p144, %p145
    %p148 = scmp.ne.s32.totalorder %s133, %s147
    %p149 = scmp.eq.s32.totalorder %s18, 0
    %p150 = por %p148, %p149
    %s151 = ssub.s32 %s12, %s19
    %p152 = scmp.eq.s32.totalorder %s151, 0
    %s154 = sadd.s32 %s153, 1
    %s155 = scalar_select %p152, %s153, %s154
    %p158 = pneg %p152
    %p159 = scmp.eq.s32.totalorder %s12, 1
    %p160 = por %p158, %p159
    %p161 = scmp.ne.s32.totalorder %s153, %s156
    %p162 = scmp.eq.s32.totalorder %s12, 0
    %p163 = por %p161, %p162
    %p164 = scmp.ne.s32.totalorder %s153, %s156
    %p165 = scmp.eq.s32.totalorder %s17, 1
    %p166 = por %p164, %p165
    %p167 = scmp.ne.s32.totalorder %s156, %s157
    %p168 = scmp.eq.s32.totalorder %s17, 0
    %p169 = por %p167, %p168
    %p170 = scmp.ne.s32.totalorder %s156, %s157
    %p171 = scmp.eq.s32.totalorder %s18, 1
    %p172 = por %p170, %p171
    %p174 = scmp.ne.s32.totalorder %s157, %s173
    %p175 = scmp.eq.s32.totalorder %s18, 0
    %p176 = por %p174, %p175
    %p177 = scmp.le.s32.totalorder 1, %s12
    %p178 = scmp.lt.s32.totalorder %s12, 3
    %p179 = pnand %p177, %p178
    %p180 = pneg %p179
    // Predicated region
    $region9: #{dkvb_bin_forward.3} parent=5 // pred_check
      _
    $region10: #{dkvb_bin_forward.3} parent=5 // pred_check_branch
      %182 = sbr.rel (%p179) target = $region12
    $region11: #{dkvb_bin_forward.3} parent=5 // pred_region
      %s183 = ssub.s32 %s12, 1
      // Predicated region
      $region13: #{dkvb_bin_forward.3} parent=11 // pred_check
        %p184 = pneg %p59
      $region14: #{dkvb_bin_forward.3} parent=11 // pred_check_branch
        %186 = sbr.rel (%p184) target = $region16
      $region15: #{dkvb_bin_forward.3} parent=11 // pred_region
        _
      $region16: #{dkvb_bin_forward.3} parent=11 // pred_fallthru
        _
      // Predicated region
      $region17: #{dkvb_bin_forward.3} parent=11 // pred_check
        %p187 = pneg %p80
      $region18: #{dkvb_bin_forward.3} parent=11 // pred_check_branch
        %189 = sbr.rel (%p187) target = $region20
      $region19: #{dkvb_bin_forward.3} parent=11 // pred_region
        _
      $region20: #{dkvb_bin_forward.3} parent=11 // pred_fallthru
        _
      // Predicated region
      $region21: #{dkvb_bin_forward.3} parent=11 // pred_check
        %p190 = pneg %p101
      $region22: #{dkvb_bin_forward.3} parent=11 // pred_check_branch
        %192 = sbr.rel (%p190) target = $region24
      $region23: #{dkvb_bin_forward.3} parent=11 // pred_region
        _
      $region24: #{dkvb_bin_forward.3} parent=11 // pred_fallthru
        _
      // Predicated region
      $region25: #{dkvb_bin_forward.3} parent=11 // pred_check
        %p193 = pneg %p122
      $region26: #{dkvb_bin_forward.3} parent=11 // pred_check_branch
        %195 = sbr.rel (%p193) target = $region28
      $region27: #{dkvb_bin_forward.3} parent=11 // pred_region
        _
      $region28: #{dkvb_bin_forward.3} parent=11 // pred_fallthru
        _
      // Predicated region
      $region29: #{dkvb_bin_forward.3} parent=11 // pred_check
        %p196 = pneg %p143
      $region30: #{dkvb_bin_forward.3} parent=11 // pred_check_branch
        %198 = sbr.rel (%p196) target = $region32
      $region31: #{dkvb_bin_forward.3} parent=11 // pred_region
        _
      $region32: #{dkvb_bin_forward.3} parent=11 // pred_fallthru
        _
    $region12: #{dkvb_bin_forward.3} parent=5 // pred_fallthru
      _
    %p199 = scmp.lt.s32.totalorder %s12, 2
    // Predicated region
    $region33: #{dkvb_bin_forward.3} parent=5 // pred_check
      %p200 = pneg %p199
    $region34: #{dkvb_bin_forward.3} parent=5 // pred_check_branch
      %202 = sbr.rel (%p200) target = $region36
    $region35: #{dkvb_bin_forward.3} parent=5 // pred_region
      // Predicated region
      $region37: #{dkvb_bin_forward.3} parent=35 // pred_check
        %p203 = pneg %p32
      $region38: #{dkvb_bin_forward.3} parent=35 // pred_check_branch
        %205 = sbr.rel (%p203) target = $region40
      $region39: #{dkvb_bin_forward.3} parent=35 // pred_region
        %s206 = smul.u32 2, %s12
        %p207 = scmp.lt.s32.totalorder %s206, 3
        %s208 = scalar_select %p207, %s206, 3
        %s209 = smul.addr %s208, 6
        %s210 = smul.addr %s209, 4
        %s211 = scalar_lea.vmem %s0, %s210
        %s212 = smul.u32 2, %s12
      $region40: #{dkvb_bin_forward.3} parent=35 // pred_fallthru
        _
    $region36: #{dkvb_bin_forward.3} parent=5 // pred_fallthru
      _
    %p213 = scmp.le.s32.totalorder 1, %s12
    %p214 = scmp.lt.s32.totalorder %s12, 3
    %p215 = pnand %p213, %p214
    %p216 = pneg %p215
    // Predicated region
    $region41: #{dkvb_bin_forward.3} parent=5 // pred_check
      _
    $region42: #{dkvb_bin_forward.3} parent=5 // pred_check_branch
      %218 = sbr.rel (%p215) target = $region44
    $region43: #{dkvb_bin_forward.3} parent=5 // pred_region
      %s219 = ssub.s32 %s12, 1
      %s220 = smul.u32 2, %s17
      %p221 = scmp.lt.s32.totalorder %s220, 3
      %s222 = scalar_select %p221, %s220, 3
      %s223 = smul.addr %s222, 6
      %s224 = smul.addr %s223, 4
      %s225 = scalar_lea.vmem %s0, %s224
      %p226 = pneg %p38
      %p227 = pneg %p35
      %p228 = pneg %p59
      %p229 = pneg %p56
      %p230 = pneg %p80
      %p231 = pneg %p77
      %p232 = pneg %p101
      %p233 = pneg %p98
      %p234 = pneg %p122
      %p235 = pneg %p119
      %p236 = pneg %p143
      %p237 = pneg %p140
      %p238 = pneg %p169
      %p239 = pneg %p166
      %s240 = smul.u32 2, %s17
      %p241 = scmp.lt.s32.totalorder %s240, 3
      %s242 = scalar_select %p241, %s240, 3
      %s243 = smul.addr %s242, 4
      %s244 = scalar_lea.vmem %s6, %s243
      %s245 = smul.u32 2, %s17
      %p246 = scmp.lt.s32.totalorder %s245, 3
      %s247 = scalar_select %p246, %s245, 3
      %s248 = smul.addr %s247, 6
      %s249 = smul.addr %s248, 4
      %s250 = scalar_lea.vmem %s0, %s249
      %s251 = smul.u32 2, %s17
      %s252 = smul.u32 2, %s17
      %p253 = scmp.lt.s32.totalorder %s252, 3
      %s254 = scalar_select %p253, %s252, 3
      %s255 = smul.addr %s254, 4
      %s256 = scalar_lea.vmem %s6, %s255
      %s257 = smul.u32 2, %s17
      %v259 = vld [vmem:[%s250] sm:$0xff]
      %v260 = vld [vmem:[%s250 + $0x8] sm:$0xff]
      %v261 = vld [vmem:[%s250 + $0x10] sm:$0xff]
      %v262 = vld [vmem:[%s250 + $0x18] sm:$0xff]
      %v263 = vld [vmem:[%s250 + $0x20] sm:$0xff]
      %v264 = vld [vmem:[%s250 + $0x28] sm:$0xff]
      %v265 = vld [vmem:[%s1] sm:$0xf]
      %v266 = vld [vmem:[%s1 + $0x4] sm:$0xf]
      %v267 = vld [vmem:[%s1 + $0x8] sm:$0xf]
      %v268 = vld [vmem:[%s1 + $0xc] sm:$0xf]
      %v269 = vld [vmem:[%s1 + $0x10] sm:$0xf]
      %v270 = vld [vmem:[%s1 + $0x14] sm:$0xf]
      %v271 = vld [vmem:[%s1 + $0x18] sm:$0xf]
      %v272 = vld [vmem:[%s1 + $0x1c] sm:$0xf]
      %v273 = vld [vmem:[%s1 + $0x20] sm:$0xf]
      %v274 = vld [vmem:[%s1 + $0x24] sm:$0xf]
      %v275 = vld [vmem:[%s1 + $0x28] sm:$0xf]
      %v276 = vld [vmem:[%s1 + $0x2c] sm:$0xf]
      %v277 = vld [vmem:[%s1 + $0x30] sm:$0xf]
      %v278 = vld [vmem:[%s1 + $0x34] sm:$0xf]
      %v279 = vld [vmem:[%s1 + $0x38] sm:$0xf]
      %v280 = vld [vmem:[%s1 + $0x3c] sm:$0xf]
      %v281 = vld [vmem:[%s1 + $0x40] sm:$0xf]
      %v282 = vld [vmem:[%s1 + $0x44] sm:$0xf]
      %v283 = vld [vmem:[%s1 + $0x48] sm:$0xf]
      %v284 = vld [vmem:[%s1 + $0x4c] sm:$0xf]
      %v285 = vld [vmem:[%s1 + $0x50] sm:$0xf]
      %v286 = vld [vmem:[%s1 + $0x54] sm:$0xf]
      %v287 = vld [vmem:[%s1 + $0x58] sm:$0xf]
      %v288 = vld [vmem:[%s1 + $0x5c] sm:$0xf]
      %v289 = vld [vmem:[%s1 + $0x60] sm:$0xf]
      %v290 = vld [vmem:[%s1 + $0x64] sm:$0xf]
      %v291 = vld [vmem:[%s1 + $0x68] sm:$0xf]
      %v292 = vld [vmem:[%s1 + $0x6c] sm:$0xf]
      %v293 = vld [vmem:[%s1 + $0x70] sm:$0xf]
      %v294 = vld [vmem:[%s1 + $0x74] sm:$0xf]
      %v295 = vld [vmem:[%s1 + $0x78] sm:$0xf]
      %v296 = vld [vmem:[%s1 + $0x7c] sm:$0xf]
      %v297 = vld [vmem:[%s1 + $0x80] sm:$0xf]
      %v298 = vld [vmem:[%s1 + $0x84] sm:$0xf]
      %v299 = vld [vmem:[%s1 + $0x88] sm:$0xf]
      %v300 = vld [vmem:[%s1 + $0x8c] sm:$0xf]
      %v301 = vld [vmem:[%s1 + $0x90] sm:$0xf]
      %v302 = vld [vmem:[%s1 + $0x94] sm:$0xf]
      %v303 = vld [vmem:[%s1 + $0x98] sm:$0xf]
      %v304 = vld [vmem:[%s1 + $0x9c] sm:$0xf]
      %v305 = vld [vmem:[%s1 + $0xa0] sm:$0xf]
      %v306 = vld [vmem:[%s1 + $0xa4] sm:$0xf]
      %v307 = vld [vmem:[%s1 + $0xa8] sm:$0xf]
      %v308 = vld [vmem:[%s1 + $0xac] sm:$0xf]
      %v309 = vld [vmem:[%s1 + $0xb0] sm:$0xf]
      %v310 = vld [vmem:[%s1 + $0xb4] sm:$0xf]
      %v311 = vld [vmem:[%s1 + $0xb8] sm:$0xf]
      %v312 = vld [vmem:[%s1 + $0xbc] sm:$0xf]
      %v313 = vld [vmem:[%s1 + $0xc0] sm:$0xf]
      %v314 = vld [vmem:[%s1 + $0xc4] sm:$0xf]
      %v315 = vld [vmem:[%s1 + $0xc8] sm:$0xf]
      %v316 = vld [vmem:[%s1 + $0xcc] sm:$0xf]
      %v317 = vld [vmem:[%s1 + $0xd0] sm:$0xf]
      %v318 = vld [vmem:[%s1 + $0xd4] sm:$0xf]
      %v319 = vld [vmem:[%s1 + $0xd8] sm:$0xf]
      %v320 = vld [vmem:[%s1 + $0xdc] sm:$0xf]
      %v321 = vld [vmem:[%s1 + $0xe0] sm:$0xf]
      %v322 = vld [vmem:[%s1 + $0xe4] sm:$0xf]
      %v323 = vld [vmem:[%s1 + $0xe8] sm:$0xf]
      %v324 = vld [vmem:[%s1 + $0xec] sm:$0xf]
      %v325 = vld [vmem:[%s1 + $0xf0] sm:$0xf]
      %v326 = vld [vmem:[%s1 + $0xf4] sm:$0xf]
      %v327 = vld [vmem:[%s1 + $0xf8] sm:$0xf]
      %v328 = vld [vmem:[%s1 + $0xfc] sm:$0xf]
      %v329 = vld [vmem:[%s1 + $0x100] sm:$0xf]
      %v330 = vld [vmem:[%s1 + $0x104] sm:$0xf]
      %v331 = vld [vmem:[%s1 + $0x108] sm:$0xf]
      %v332 = vld [vmem:[%s1 + $0x10c] sm:$0xf]
      %v333 = vld [vmem:[%s1 + $0x110] sm:$0xf]
      %v334 = vld [vmem:[%s1 + $0x114] sm:$0xf]
      %v335 = vld [vmem:[%s1 + $0x118] sm:$0xf]
      %v336 = vld [vmem:[%s1 + $0x11c] sm:$0xf]
      %v337 = vld [vmem:[%s1 + $0x120] sm:$0xf]
      %v338 = vld [vmem:[%s1 + $0x124] sm:$0xf]
      %v339 = vld [vmem:[%s1 + $0x128] sm:$0xf]
      %v340 = vld [vmem:[%s1 + $0x12c] sm:$0xf]
      %v341 = vld [vmem:[%s1 + $0x130] sm:$0xf]
      %v342 = vld [vmem:[%s1 + $0x134] sm:$0xf]
      %v343 = vld [vmem:[%s1 + $0x138] sm:$0xf]
      %v344 = vld [vmem:[%s1 + $0x13c] sm:$0xf]
      %v345 = vld [vmem:[%s1 + $0x140] sm:$0xf]
      %v346 = vld [vmem:[%s1 + $0x144] sm:$0xf]
      %v347 = vld [vmem:[%s1 + $0x148] sm:$0xf]
      %v348 = vld [vmem:[%s1 + $0x14c] sm:$0xf]
      %v349 = vld [vmem:[%s1 + $0x150] sm:$0xf]
      %v350 = vld [vmem:[%s1 + $0x154] sm:$0xf]
      %v351 = vld [vmem:[%s1 + $0x158] sm:$0xf]
      %v352 = vld [vmem:[%s1 + $0x15c] sm:$0xf]
      %v353 = vld [vmem:[%s1 + $0x160] sm:$0xf]
      %v354 = vld [vmem:[%s1 + $0x164] sm:$0xf]
      %v355 = vld [vmem:[%s1 + $0x168] sm:$0xf]
      %v356 = vld [vmem:[%s1 + $0x16c] sm:$0xf]
      %v357 = vld [vmem:[%s1 + $0x170] sm:$0xf]
      %v358 = vld [vmem:[%s1 + $0x174] sm:$0xf]
      %v359 = vld [vmem:[%s1 + $0x178] sm:$0xf]
      %v360 = vld [vmem:[%s1 + $0x17c] sm:$0xf]
      %v361 = vld [vmem:[%s2] sm:$0x1]
      %v363 = vlaneseq
      %v364 = vshrl.u32 %v363, 7
      %v365 = vsub.s32 0, %v364
      %v366 = vrot.slane %v361, %v365
      %v374 = vunpack.c.l.b16 %v259
      %v375 = vunpack.c.h.b16 %v259
      %v376 = vunpack.c.l.b16 %v260
      %v377 = vunpack.c.h.b16 %v260
      %v378 = vunpack.c.l.b16 %v261
      %v379 = vunpack.c.h.b16 %v261
      %v380 = vunpack.c.l.b16 %v262
      %v381 = vunpack.c.h.b16 %v262
      %v382 = vunpack.c.l.b16 %v263
      %v383 = vunpack.c.h.b16 %v263
      %v384 = vunpack.c.l.b16 %v264
      %v385 = vunpack.c.h.b16 %v264
      %v386 = vpack.c.b16 %v380, %v374
      %v387 = vpack.c.b16 %v381, %v375
      %v388 = vpack.c.b16 %v382, %v376
      %v389 = vpack.c.b16 %v383, %v377
      %v390 = vpack.c.b16 %v384, %v378
      %v391 = vpack.c.b16 %v385, %v379
      %v494 = vunpack.c.l.b16 %v265
      %v495 = vunpack.c.l.b16 %v266
      %v496 = vunpack.c.l.b16 %v267
      %v497 = vunpack.c.l.b16 %v268
      %v498 = vunpack.c.l.b16 %v269
      %v499 = vunpack.c.l.b16 %v270
      %v500 = vunpack.c.l.b16 %v271
      %v501 = vunpack.c.l.b16 %v272
      %v502 = vunpack.c.l.b16 %v273
      %v503 = vunpack.c.l.b16 %v274
      %v504 = vunpack.c.l.b16 %v275
      %v505 = vunpack.c.l.b16 %v276
      %v506 = vunpack.c.l.b16 %v277
      %v507 = vunpack.c.l.b16 %v278
      %v508 = vunpack.c.l.b16 %v279
      %v509 = vunpack.c.l.b16 %v280
      %v510 = vunpack.c.l.b16 %v281
      %v511 = vunpack.c.l.b16 %v282
      %v512 = vunpack.c.l.b16 %v283
      %v513 = vunpack.c.l.b16 %v284
      %v514 = vunpack.c.l.b16 %v285
      %v515 = vunpack.c.l.b16 %v286
      %v516 = vunpack.c.l.b16 %v287
      %v517 = vunpack.c.l.b16 %v288
      %v518 = vunpack.c.l.b16 %v289
      %v519 = vunpack.c.l.b16 %v290
      %v520 = vunpack.c.l.b16 %v291
      %v521 = vunpack.c.l.b16 %v292
      %v522 = vunpack.c.l.b16 %v293
      %v523 = vunpack.c.l.b16 %v294
      %v524 = vunpack.c.l.b16 %v295
      %v525 = vunpack.c.l.b16 %v296
      %v526 = vunpack.c.l.b16 %v297
      %v527 = vunpack.c.l.b16 %v298
      %v528 = vunpack.c.l.b16 %v299
      %v529 = vunpack.c.l.b16 %v300
      %v530 = vunpack.c.l.b16 %v301
      %v531 = vunpack.c.l.b16 %v302
      %v532 = vunpack.c.l.b16 %v303
      %v533 = vunpack.c.l.b16 %v304
      %v534 = vunpack.c.l.b16 %v305
      %v535 = vunpack.c.l.b16 %v306
      %v536 = vunpack.c.l.b16 %v307
      %v537 = vunpack.c.l.b16 %v308
      %v538 = vunpack.c.l.b16 %v309
      %v539 = vunpack.c.l.b16 %v310
      %v540 = vunpack.c.l.b16 %v311
      %v541 = vunpack.c.l.b16 %v312
      %v542 = vunpack.c.l.b16 %v313
      %v543 = vunpack.c.l.b16 %v314
      %v544 = vunpack.c.l.b16 %v315
      %v545 = vunpack.c.l.b16 %v316
      %v546 = vunpack.c.l.b16 %v317
      %v547 = vunpack.c.l.b16 %v318
      %v548 = vunpack.c.l.b16 %v319
      %v549 = vunpack.c.l.b16 %v320
      %v550 = vunpack.c.l.b16 %v321
      %v551 = vunpack.c.l.b16 %v322
      %v552 = vunpack.c.l.b16 %v323
      %v553 = vunpack.c.l.b16 %v324
      %v554 = vunpack.c.l.b16 %v325
      %v555 = vunpack.c.l.b16 %v326
      %v556 = vunpack.c.l.b16 %v327
      %v557 = vunpack.c.l.b16 %v328
      %v558 = vunpack.c.l.b16 %v329
      %v559 = vunpack.c.l.b16 %v330
      %v560 = vunpack.c.l.b16 %v331
      %v561 = vunpack.c.l.b16 %v332
      %v562 = vunpack.c.l.b16 %v333
      %v563 = vunpack.c.l.b16 %v334
      %v564 = vunpack.c.l.b16 %v335
      %v565 = vunpack.c.l.b16 %v336
      %v566 = vunpack.c.l.b16 %v337
      %v567 = vunpack.c.l.b16 %v338
      %v568 = vunpack.c.l.b16 %v339
      %v569 = vunpack.c.l.b16 %v340
      %v570 = vunpack.c.l.b16 %v341
      %v571 = vunpack.c.l.b16 %v342
      %v572 = vunpack.c.l.b16 %v343
      %v573 = vunpack.c.l.b16 %v344
      %v574 = vunpack.c.l.b16 %v345
      %v575 = vunpack.c.l.b16 %v346
      %v576 = vunpack.c.l.b16 %v347
      %v577 = vunpack.c.l.b16 %v348
      %v578 = vunpack.c.l.b16 %v349
      %v579 = vunpack.c.l.b16 %v350
      %v580 = vunpack.c.l.b16 %v351
      %v581 = vunpack.c.l.b16 %v352
      %v582 = vunpack.c.l.b16 %v353
      %v583 = vunpack.c.l.b16 %v354
      %v584 = vunpack.c.l.b16 %v355
      %v585 = vunpack.c.l.b16 %v356
      %v586 = vunpack.c.l.b16 %v357
      %v587 = vunpack.c.l.b16 %v358
      %v588 = vunpack.c.l.b16 %v359
      %v589 = vunpack.c.l.b16 %v360
      %v590 = vpack.c.b16 %v495, %v494
      %v591 = vpack.c.b16 %v497, %v496
      %v592 = vpack.c.b16 %v499, %v498
      %v593 = vpack.c.b16 %v501, %v500
      %v594 = vpack.c.b16 %v503, %v502
      %v595 = vpack.c.b16 %v505, %v504
      %v596 = vpack.c.b16 %v507, %v506
      %v597 = vpack.c.b16 %v509, %v508
      %v598 = vpack.c.b16 %v511, %v510
      %v599 = vpack.c.b16 %v513, %v512
      %v600 = vpack.c.b16 %v515, %v514
      %v601 = vpack.c.b16 %v517, %v516
      %v602 = vpack.c.b16 %v519, %v518
      %v603 = vpack.c.b16 %v521, %v520
      %v604 = vpack.c.b16 %v523, %v522
      %v605 = vpack.c.b16 %v525, %v524
      %v606 = vpack.c.b16 %v527, %v526
      %v607 = vpack.c.b16 %v529, %v528
      %v608 = vpack.c.b16 %v531, %v530
      %v609 = vpack.c.b16 %v533, %v532
      %v610 = vpack.c.b16 %v535, %v534
      %v611 = vpack.c.b16 %v537, %v536
      %v612 = vpack.c.b16 %v539, %v538
      %v613 = vpack.c.b16 %v541, %v540
      %v614 = vpack.c.b16 %v543, %v542
      %v615 = vpack.c.b16 %v545, %v544
      %v616 = vpack.c.b16 %v547, %v546
      %v617 = vpack.c.b16 %v549, %v548
      %v618 = vpack.c.b16 %v551, %v550
      %v619 = vpack.c.b16 %v553, %v552
      %v620 = vpack.c.b16 %v555, %v554
      %v621 = vpack.c.b16 %v557, %v556
      %v622 = vpack.c.b16 %v559, %v558
      %v623 = vpack.c.b16 %v561, %v560
      %v624 = vpack.c.b16 %v563, %v562
      %v625 = vpack.c.b16 %v565, %v564
      %v626 = vpack.c.b16 %v567, %v566
      %v627 = vpack.c.b16 %v569, %v568
      %v628 = vpack.c.b16 %v571, %v570
      %v629 = vpack.c.b16 %v573, %v572
      %v630 = vpack.c.b16 %v575, %v574
      %v631 = vpack.c.b16 %v577, %v576
      %v632 = vpack.c.b16 %v579, %v578
      %v633 = vpack.c.b16 %v581, %v580
      %v634 = vpack.c.b16 %v583, %v582
      %v635 = vpack.c.b16 %v585, %v584
      %v636 = vpack.c.b16 %v587, %v586
      %v637 = vpack.c.b16 %v589, %v588
      %686 = vmatprep.subr.bf16.mxu0 0
      %687 = vmatpush1.bf16.msra.mxu0 %v590
      %688 = vmatprep.subr.bf16.mxu0 0
      %689 = vmatpush1.bf16.msra.mxu0 %v591
      %690 = vmatprep.subr.bf16.mxu0 0
      %691 = vmatpush1.bf16.msra.mxu0 %v592
      %692 = vmatprep.subr.bf16.mxu0 0
      %693 = vmatpush1.bf16.msra.mxu0 %v593
      %694 = vmatprep.subr.bf16.mxu0 0
      %695 = vmatpush1.bf16.msra.mxu0 %v594
      %696 = vmatprep.subr.bf16.mxu0 0
      %697 = vmatpush1.bf16.msra.mxu0 %v595
      %698 = vmatprep.subr.bf16.mxu0 0
      %699 = vmatpush1.bf16.msra.mxu0 %v596
      %700 = vmatprep.subr.bf16.mxu0 0
      %701 = vmatpush1.bf16.msra.mxu0 %v597
      %702 = vmatprep.subr.bf16.mxu0 0
      %703 = vmatpush1.bf16.msra.mxu0 %v598
      %704 = vmatprep.subr.bf16.mxu0 0
      %705 = vmatpush1.bf16.msra.mxu0 %v599
      %706 = vmatprep.subr.bf16.mxu0 0
      %707 = vmatpush1.bf16.msra.mxu0 %v600
      %708 = vmatprep.subr.bf16.mxu0 0
      %709 = vmatpush1.bf16.msra.mxu0 %v601
      %710 = vmatprep.subr.bf16.mxu0 0
      %711 = vmatpush1.bf16.msra.mxu0 %v602
      %712 = vmatprep.subr.bf16.mxu0 0
      %713 = vmatpush1.bf16.msra.mxu0 %v603
      %714 = vmatprep.subr.bf16.mxu0 0
      %715 = vmatpush1.bf16.msra.mxu0 %v604
      %716 = vmatprep.subr.bf16.mxu0 0
      %717 = vmatpush1.bf16.msra.mxu0 %v605
      %718 = vmatprep.mubr.bf16.mxu0 %v387
      %719 = vmatmul.mubr.bf16.gmra.mrb[0].mxu0 %v386
      %v720 = vpop.f32.mrb[0].mxu0
      %v721 = vadd.f32 %v366, %v720
      %v722 = vpop.f32.mrb[0].mxu0
      %v723 = vpop.f32.mrb[0].mxu0
      %v724 = vadd.f32 %v366, %v723
      %v725 = vpop.f32.mrb[0].mxu0
      %726 = vdwg.mxu0
      %727 = vmatprep.subr.bf16.mxu0 0
      %728 = vmatpush1.bf16.msra.mxu0 %v606
      %729 = vmatprep.subr.bf16.mxu0 0
      %730 = vmatpush1.bf16.msra.mxu0 %v607
      %731 = vmatprep.subr.bf16.mxu0 0
      %732 = vmatpush1.bf16.msra.mxu0 %v608
      %733 = vmatprep.subr.bf16.mxu0 0
      %734 = vmatpush1.bf16.msra.mxu0 %v609
      %735 = vmatprep.subr.bf16.mxu0 0
      %736 = vmatpush1.bf16.msra.mxu0 %v610
      %737 = vmatprep.subr.bf16.mxu0 0
      %738 = vmatpush1.bf16.msra.mxu0 %v611
      %739 = vmatprep.subr.bf16.mxu0 0
      %740 = vmatpush1.bf16.msra.mxu0 %v612
      %741 = vmatprep.subr.bf16.mxu0 0
      %742 = vmatpush1.bf16.msra.mxu0 %v613
      %743 = vmatprep.subr.bf16.mxu0 0
      %744 = vmatpush1.bf16.msra.mxu0 %v614
      %745 = vmatprep.subr.bf16.mxu0 0
      %746 = vmatpush1.bf16.msra.mxu0 %v615
      %747 = vmatprep.subr.bf16.mxu0 0
      %748 = vmatpush1.bf16.msra.mxu0 %v616
      %749 = vmatprep.subr.bf16.mxu0 0
      %750 = vmatpush1.bf16.msra.mxu0 %v617
      %751 = vmatprep.subr.bf16.mxu0 0
      %752 = vmatpush1.bf16.msra.mxu0 %v618
      %753 = vmatprep.subr.bf16.mxu0 0
      %754 = vmatpush1.bf16.msra.mxu0 %v619
      %755 = vmatprep.subr.bf16.mxu0 0
      %756 = vmatpush1.bf16.msra.mxu0 %v620
      %757 = vmatprep.subr.bf16.mxu0 0
      %758 = vmatpush1.bf16.msra.mxu0 %v621
      %759 = vmatprep.mubr.bf16.mxu0 %v389
      %760 = vmatmul.mubr.bf16.gmra.mrb[0].mxu0 %v388
      %v761 = vpop.f32.mrb[0].mxu0
      %v762 = vadd.f32 %v721, %v761
      %v763 = vpop.f32.mrb[0].mxu0
      %v764 = vpop.f32.mrb[0].mxu0
      %v765 = vadd.f32 %v724, %v764
      %v766 = vpop.f32.mrb[0].mxu0
      %767 = vdwg.mxu0
      %768 = vmatprep.subr.bf16.mxu0 0
      %769 = vmatpush1.bf16.msra.mxu0 %v622
      %770 = vmatprep.subr.bf16.mxu0 0
      %771 = vmatpush1.bf16.msra.mxu0 %v623
      %772 = vmatprep.subr.bf16.mxu0 0
      %773 = vmatpush1.bf16.msra.mxu0 %v624
      %774 = vmatprep.subr.bf16.mxu0 0
      %775 = vmatpush1.bf16.msra.mxu0 %v625
      %776 = vmatprep.subr.bf16.mxu0 0
      %777 = vmatpush1.bf16.msra.mxu0 %v626
      %778 = vmatprep.subr.bf16.mxu0 0
      %779 = vmatpush1.bf16.msra.mxu0 %v627
      %780 = vmatprep.subr.bf16.mxu0 0
      %781 = vmatpush1.bf16.msra.mxu0 %v628
      %782 = vmatprep.subr.bf16.mxu0 0
      %783 = vmatpush1.bf16.msra.mxu0 %v629
      %784 = vmatprep.subr.bf16.mxu0 0
      %785 = vmatpush1.bf16.msra.mxu0 %v630
      %786 = vmatprep.subr.bf16.mxu0 0
      %787 = vmatpush1.bf16.msra.mxu0 %v631
      %788 = vmatprep.subr.bf16.mxu0 0
      %789 = vmatpush1.bf16.msra.mxu0 %v632
      %790 = vmatprep.subr.bf16.mxu0 0
      %791 = vmatpush1.bf16.msra.mxu0 %v633
      %792 = vmatprep.subr.bf16.mxu0 0
      %793 = vmatpush1.bf16.msra.mxu0 %v634
      %794 = vmatprep.subr.bf16.mxu0 0
      %795 = vmatpush1.bf16.msra.mxu0 %v635
      %796 = vmatprep.subr.bf16.mxu0 0
      %797 = vmatpush1.bf16.msra.mxu0 %v636
      %798 = vmatprep.subr.bf16.mxu0 0
      %799 = vmatpush1.bf16.msra.mxu0 %v637
      %800 = vmatprep.mubr.bf16.mxu0 %v391
      %801 = vmatmul.mubr.bf16.gmra.mrb[0].mxu0 %v390
      %v802 = vpop.f32.mrb[0].mxu0
      %v803 = vadd.f32 %v762, %v802
      %v804 = vpop.f32.mrb[0].mxu0
      %v805 = vpop.f32.mrb[0].mxu0
      %v806 = vadd.f32 %v765, %v805
      %v807 = vpop.f32.mrb[0].mxu0
      %808 = vdwg.mxu0
      %v809 = vmax.f32 %v803, 0.0
      %v810 = vmax.f32 %v806, 0.0
      %v811 = vpack.c.bf16 %v810, %v809
      %v812 = vld [vmem:[%s3] sm:$0xff]
      %v813 = vld [vmem:[%s3 + $0x8] sm:$0xff]
      %v814 = vld [vmem:[%s3 + $0x10] sm:$0xff]
      %v815 = vld [vmem:[%s3 + $0x18] sm:$0xff]
      %v816 = vld [vmem:[%s3 + $0x20] sm:$0xff]
      %v817 = vld [vmem:[%s3 + $0x28] sm:$0xff]
      %v818 = vld [vmem:[%s3 + $0x30] sm:$0xff]
      %v819 = vld [vmem:[%s3 + $0x38] sm:$0xff]
      %v820 = vld [vmem:[%s3 + $0x40] sm:$0xff]
      %v821 = vld [vmem:[%s3 + $0x48] sm:$0xff]
      %v822 = vld [vmem:[%s3 + $0x50] sm:$0xff]
      %v823 = vld [vmem:[%s3 + $0x58] sm:$0xff]
      %v824 = vld [vmem:[%s3 + $0x60] sm:$0xff]
      %v825 = vld [vmem:[%s3 + $0x68] sm:$0xff]
      %v826 = vld [vmem:[%s3 + $0x70] sm:$0xff]
      %v827 = vld [vmem:[%s3 + $0x78] sm:$0xff]
      %v828 = vld [vmem:[%s3 + $0x80] sm:$0xff]
      %v829 = vld [vmem:[%s3 + $0x88] sm:$0xff]
      %v830 = vld [vmem:[%s3 + $0x90] sm:$0xff]
      %v831 = vld [vmem:[%s3 + $0x98] sm:$0xff]
      %v832 = vld [vmem:[%s3 + $0xa0] sm:$0xff]
      %v833 = vld [vmem:[%s3 + $0xa8] sm:$0xff]
      %v834 = vld [vmem:[%s3 + $0xb0] sm:$0xff]
      %v835 = vld [vmem:[%s3 + $0xb8] sm:$0xff]
      %v836 = vld [vmem:[%s3 + $0xc0] sm:$0xff]
      %v837 = vld [vmem:[%s3 + $0xc8] sm:$0xff]
      %v838 = vld [vmem:[%s3 + $0xd0] sm:$0xff]
      %v839 = vld [vmem:[%s3 + $0xd8] sm:$0xff]
      %v840 = vld [vmem:[%s3 + $0xe0] sm:$0xff]
      %v841 = vld [vmem:[%s3 + $0xe8] sm:$0xff]
      %v842 = vld [vmem:[%s3 + $0xf0] sm:$0xff]
      %v843 = vld [vmem:[%s3 + $0xf8] sm:$0xff]
      %v876 = vunpack.c.l.b16 %v812
      %v877 = vunpack.c.h.b16 %v812
      %v878 = vunpack.c.l.b16 %v813
      %v879 = vunpack.c.h.b16 %v813
      %v880 = vunpack.c.l.b16 %v814
      %v881 = vunpack.c.h.b16 %v814
      %v882 = vunpack.c.l.b16 %v815
      %v883 = vunpack.c.h.b16 %v815
      %v884 = vunpack.c.l.b16 %v816
      %v885 = vunpack.c.h.b16 %v816
      %v886 = vunpack.c.l.b16 %v817
      %v887 = vunpack.c.h.b16 %v817
      %v888 = vunpack.c.l.b16 %v818
      %v889 = vunpack.c.h.b16 %v818
      %v890 = vunpack.c.l.b16 %v819
      %v891 = vunpack.c.h.b16 %v819
      %v892 = vunpack.c.l.b16 %v820
      %v893 = vunpack.c.h.b16 %v820
      %v894 = vunpack.c.l.b16 %v821
      %v895 = vunpack.c.h.b16 %v821
      %v896 = vunpack.c.l.b16 %v822
      %v897 = vunpack.c.h.b16 %v822
      %v898 = vunpack.c.l.b16 %v823
      %v899 = vunpack.c.h.b16 %v823
      %v900 = vunpack.c.l.b16 %v824
      %v901 = vunpack.c.h.b16 %v824
      %v902 = vunpack.c.l.b16 %v825
      %v903 = vunpack.c.h.b16 %v825
      %v904 = vunpack.c.l.b16 %v826
      %v905 = vunpack.c.h.b16 %v826
      %v906 = vunpack.c.l.b16 %v827
      %v907 = vunpack.c.h.b16 %v827
      %v908 = vunpack.c.l.b16 %v828
      %v909 = vunpack.c.h.b16 %v828
      %v910 = vunpack.c.l.b16 %v829
      %v911 = vunpack.c.h.b16 %v829
      %v912 = vunpack.c.l.b16 %v830
      %v913 = vunpack.c.h.b16 %v830
      %v914 = vunpack.c.l.b16 %v831
      %v915 = vunpack.c.h.b16 %v831
      %v916 = vunpack.c.l.b16 %v832
      %v917 = vunpack.c.h.b16 %v832
      %v918 = vunpack.c.l.b16 %v833
      %v919 = vunpack.c.h.b16 %v833
      %v920 = vunpack.c.l.b16 %v834
      %v921 = vunpack.c.h.b16 %v834
      %v922 = vunpack.c.l.b16 %v835
      %v923 = vunpack.c.h.b16 %v835
      %v924 = vunpack.c.l.b16 %v836
      %v925 = vunpack.c.h.b16 %v836
      %v926 = vunpack.c.l.b16 %v837
      %v927 = vunpack.c.h.b16 %v837
      %v928 = vunpack.c.l.b16 %v838
      %v929 = vunpack.c.h.b16 %v838
      %v930 = vunpack.c.l.b16 %v839
      %v931 = vunpack.c.h.b16 %v839
      %v932 = vunpack.c.l.b16 %v840
      %v933 = vunpack.c.h.b16 %v840
      %v934 = vunpack.c.l.b16 %v841
      %v935 = vunpack.c.h.b16 %v841
      %v936 = vunpack.c.l.b16 %v842
      %v937 = vunpack.c.h.b16 %v842
      %v938 = vunpack.c.l.b16 %v843
      %v939 = vunpack.c.h.b16 %v843
      %v940 = vpack.c.b16 %v880, %v876
      %v941 = vpack.c.b16 %v881, %v877
      %v942 = vpack.c.b16 %v882, %v878
      %v943 = vpack.c.b16 %v883, %v879
      %v944 = vpack.c.b16 %v888, %v884
      %v945 = vpack.c.b16 %v889, %v885
      %v946 = vpack.c.b16 %v890, %v886
      %v947 = vpack.c.b16 %v891, %v887
      %v948 = vpack.c.b16 %v896, %v892
      %v949 = vpack.c.b16 %v897, %v893
      %v950 = vpack.c.b16 %v898, %v894
      %v951 = vpack.c.b16 %v899, %v895
      %v952 = vpack.c.b16 %v904, %v900
      %v953 = vpack.c.b16 %v905, %v901
      %v954 = vpack.c.b16 %v906, %v902
      %v955 = vpack.c.b16 %v907, %v903
      %v956 = vpack.c.b16 %v912, %v908
      %v957 = vpack.c.b16 %v913, %v909
      %v958 = vpack.c.b16 %v914, %v910
      %v959 = vpack.c.b16 %v915, %v911
      %v960 = vpack.c.b16 %v920, %v916
      %v961 = vpack.c.b16 %v921, %v917
      %v962 = vpack.c.b16 %v922, %v918
      %v963 = vpack.c.b16 %v923, %v919
      %v964 = vpack.c.b16 %v928, %v924
      %v965 = vpack.c.b16 %v929, %v925
      %v966 = vpack.c.b16 %v930, %v926
      %v967 = vpack.c.b16 %v931, %v927
      %v968 = vpack.c.b16 %v936, %v932
      %v969 = vpack.c.b16 %v937, %v933
      %v970 = vpack.c.b16 %v938, %v934
      %v971 = vpack.c.b16 %v939, %v935
      %1004 = vmatprep.subr.bf16.mxu0 %v941
      %1005 = vmatpush1.bf16.msra.mxu0 %v940
      %1006 = vmatprep.subr.bf16.mxu0 %v945
      %1007 = vmatpush1.bf16.msra.mxu0 %v944
      %1008 = vmatprep.subr.bf16.mxu0 %v949
      %1009 = vmatpush1.bf16.msra.mxu0 %v948
      %1010 = vmatprep.subr.bf16.mxu0 %v953
      %1011 = vmatpush1.bf16.msra.mxu0 %v952
      %1012 = vmatprep.subr.bf16.mxu0 %v957
      %1013 = vmatpush1.bf16.msra.mxu0 %v956
      %1014 = vmatprep.subr.bf16.mxu0 %v961
      %1015 = vmatpush1.bf16.msra.mxu0 %v960
      %1016 = vmatprep.subr.bf16.mxu0 %v965
      %1017 = vmatpush1.bf16.msra.mxu0 %v964
      %1018 = vmatprep.subr.bf16.mxu0 %v969
      %1019 = vmatpush1.bf16.msra.mxu0 %v968
      %1020 = vmatprep.subr.bf16.mxu0 0
      %1021 = vmatpush1.bf16.msra.mxu0 0
      %1022 = vmatprep.subr.bf16.mxu0 0
      %1023 = vmatpush1.bf16.msra.mxu0 0
      %1024 = vmatprep.subr.bf16.mxu0 0
      %1025 = vmatpush1.bf16.msra.mxu0 0
      %1026 = vmatprep.subr.bf16.mxu0 0
      %1027 = vmatpush1.bf16.msra.mxu0 0
      %1028 = vmatprep.subr.bf16.mxu0 0
      %1029 = vmatpush1.bf16.msra.mxu0 0
      %1030 = vmatprep.subr.bf16.mxu0 0
      %1031 = vmatpush1.bf16.msra.mxu0 0
      %1032 = vmatprep.subr.bf16.mxu0 0
      %1033 = vmatpush1.bf16.msra.mxu0 0
      %1034 = vmatprep.subr.bf16.mxu0 0
      %1035 = vmatpush1.bf16.msra.mxu0 0
      %1036 = vmatprep.mubr.bf16.mxu0 0
      %1037 = vmatmul.mubr.bf16.gmra.mrb[0].mxu0 %v811
      %v1038 = vpop.f32.mrb[0].mxu0
      %v1039 = vadd.f32 0.0, %v1038
      %v1040 = vpop.f32.mrb[0].mxu0
      %v1041 = vadd.f32 0.0, %v1040
      %v1042 = vpop.f32.mrb[0].mxu0
      %v1043 = vadd.f32 0.0, %v1042
      %v1044 = vpop.f32.mrb[0].mxu0
      %v1045 = vadd.f32 0.0, %v1044
      %1046 = vdwg.mxu0
      %1047 = vmatprep.subr.bf16.mxu0 %v943
      %1048 = vmatpush1.bf16.msra.mxu0 %v942
      %1049 = vmatprep.subr.bf16.mxu0 %v947
      %1050 = vmatpush1.bf16.msra.mxu0 %v946
      %1051 = vmatprep.subr.bf16.mxu0 %v951
      %1052 = vmatpush1.bf16.msra.mxu0 %v950
      %1053 = vmatprep.subr.bf16.mxu0 %v955
      %1054 = vmatpush1.bf16.msra.mxu0 %v954
      %1055 = vmatprep.subr.bf16.mxu0 %v959
      %1056 = vmatpush1.bf16.msra.mxu0 %v958
      %1057 = vmatprep.subr.bf16.mxu0 %v963
      %1058 = vmatpush1.bf16.msra.mxu0 %v962
      %1059 = vmatprep.subr.bf16.mxu0 %v967
      %1060 = vmatpush1.bf16.msra.mxu0 %v966
      %1061 = vmatprep.subr.bf16.mxu0 %v971
      %1062 = vmatpush1.bf16.msra.mxu0 %v970
      %1063 = vmatprep.subr.bf16.mxu0 0
      %1064 = vmatpush1.bf16.msra.mxu0 0
      %1065 = vmatprep.subr.bf16.mxu0 0
      %1066 = vmatpush1.bf16.msra.mxu0 0
      %1067 = vmatprep.subr.bf16.mxu0 0
      %1068 = vmatpush1.bf16.msra.mxu0 0
      %1069 = vmatprep.subr.bf16.mxu0 0
      %1070 = vmatpush1.bf16.msra.mxu0 0
      %1071 = vmatprep.subr.bf16.mxu0 0
      %1072 = vmatpush1.bf16.msra.mxu0 0
      %1073 = vmatprep.subr.bf16.mxu0 0
      %1074 = vmatpush1.bf16.msra.mxu0 0
      %1075 = vmatprep.subr.bf16.mxu0 0
      %1076 = vmatpush1.bf16.msra.mxu0 0
      %1077 = vmatprep.subr.bf16.mxu0 0
      %1078 = vmatpush1.bf16.msra.mxu0 0
      %1079 = vmatprep.mubr.bf16.mxu0 0
      %1080 = vmatmul.mubr.bf16.gmra.mrb[0].mxu0 %v811
      %v1081 = vpop.f32.mrb[0].mxu0
      %v1082 = vadd.f32 0.0, %v1081
      %v1083 = vpop.f32.mrb[0].mxu0
      %v1084 = vadd.f32 0.0, %v1083
      %v1085 = vpop.f32.mrb[0].mxu0
      %v1086 = vadd.f32 0.0, %v1085
      %v1087 = vpop.f32.mrb[0].mxu0
      %v1088 = vadd.f32 0.0, %v1087
      %1089 = vdwg.mxu0
      %v1090 = vld [vmem:[%s4] sm:$0xf]
      %v1091 = vmul.f32 %v1039, 2.0
      %v1092 = vmul.f32 %v1041, 2.0
      %v1093 = vmul.f32 %v1082, 2.0
      %v1094 = vmul.f32 %v1084, 2.0
      %v1095 = vmul.f32 %v1043, 2.0
      %v1096 = vmul.f32 %v1045, 2.0
      %v1097 = vmul.f32 %v1086, 2.0
      %v1098 = vmul.f32 %v1088, 2.0
      %v1100 = vlaneseq
      %v1101 = vshrl.u32 %v1100, 7
      %v1102 = vsub.s32 0, %v1101
      %v1103 = vrot.slane %v1090, %v1102
      %v1104 = vlaneseq
      %v1105 = vshrl.u32 %v1104, 7
      %v1106 = vsub.s32 1, %v1105
      %v1107 = vrot.slane %v1090, %v1106
      %v1108 = vlaneseq
      %v1109 = vshrl.u32 %v1108, 7
      %v1110 = vsub.s32 2, %v1109
      %v1111 = vrot.slane %v1090, %v1110
      %v1112 = vlaneseq
      %v1113 = vshrl.u32 %v1112, 7
      %v1114 = vsub.s32 3, %v1113
      %v1115 = vrot.slane %v1090, %v1114
      %v1120 = vsub.f32 %v1103, %v1091
      %v1121 = vsub.f32 %v1107, %v1092
      %v1122 = vsub.f32 %v1111, %v1093
      %v1123 = vsub.f32 %v1115, %v1094
      %v1124 = vsub.f32 %v1103, %v1095
      %v1125 = vsub.f32 %v1107, %v1096
      %v1126 = vsub.f32 %v1111, %v1097
      %v1127 = vsub.f32 %v1115, %v1098
      %v1128 = vlaneseq
      %v1129 = vand.u32 %v1128, 127
      %v1130 = vadd.s32 %v1129, 128
      %v1131 = vadd.s32 %v1129, 256
      %v1132 = vadd.s32 %v1129, 384
      %v1133 = vmin.f32 %v1120, %v1122
      %v1134 = vmin.f32 %v1121, %v1123
      %v1135 = vmin.f32 %v1133, %v1134
      %1136 = vmin.xlane.f32.xlu0 %v1135
      %v1137 = vpop.xlane.xlu0 %1136
      %v1138 = vmin.f32 %v1124, %v1126
      %v1139 = vmin.f32 %v1125, %v1127
      %v1140 = vmin.f32 %v1138, %v1139
      %1141 = vmin.xlane.f32.xlu0 %v1140
      %v1142 = vpop.xlane.xlu0 %1141
      %vm1143 = vcmp.eq.f32.partialorder %v1120, %v1137
      %vm1144 = vcmp.eq.f32.partialorder %v1121, %v1137
      %vm1145 = vcmp.eq.f32.partialorder %v1122, %v1137
      %vm1146 = vcmp.eq.f32.partialorder %v1123, %v1137
      %vm1147 = vcmp.eq.f32.partialorder %v1124, %v1142
      %vm1148 = vcmp.eq.f32.partialorder %v1125, %v1142
      %vm1149 = vcmp.eq.f32.partialorder %v1126, %v1142
      %vm1150 = vcmp.eq.f32.partialorder %v1127, %v1142
      %v1151 = vsel %vm1143, %v1129, 512
      %v1152 = vsel %vm1144, %v1130, 512
      %v1153 = vsel %vm1145, %v1131, 512
      %v1154 = vsel %vm1146, %v1132, 512
      %v1155 = vsel %vm1147, %v1129, 512
      %v1156 = vsel %vm1148, %v1130, 512
      %v1157 = vsel %vm1149, %v1131, 512
      %v1158 = vsel %vm1150, %v1132, 512
      %vm1159 = vcmp.lt.s32.totalorder %v1151, %v1153
      %v1160 = vsel %vm1159, %v1151, %v1153
      %vm1161 = vcmp.lt.s32.totalorder %v1152, %v1154
      %v1162 = vsel %vm1161, %v1152, %v1154
      %vm1163 = vcmp.lt.s32.totalorder %v1160, %v1162
      %v1164 = vsel %vm1163, %v1160, %v1162
      %v1165 = vand.u32 %v1164, 65535
      %v1166 = vshra.s32 %v1164, 16
      %v1167 = vcvt.s32.f32 %v1165
      %v1168 = vcvt.s32.f32 %v1166
      %1169 = vmin.xlane.f32.xlu0 %v1168
      %v1170 = vpop.xlane.xlu0 %1169
      %vm1171 = vcmp.eq.f32.partialorder %v1168, %v1170
      %v1172 = vsel %vm1171, %v1167, inf
      %1173 = vmin.xlane.f32.xlu0 %v1172
      %v1174 = vpop.xlane.xlu0 %1173
      %v1175 = vcvt.f32.s32 %v1174
      %v1176 = vcvt.f32.s32 %v1170
      %v1177 = vshll.u32 %v1176, 16
      %v1178 = vadd.s32 %v1177, %v1175
      %vm1179 = vcmp.lt.s32.totalorder %v1155, %v1157
      %v1180 = vsel %vm1179, %v1155, %v1157
      %vm1181 = vcmp.lt.s32.totalorder %v1156, %v1158
      %v1182 = vsel %vm1181, %v1156, %v1158
      %vm1183 = vcmp.lt.s32.totalorder %v1180, %v1182
      %v1184 = vsel %vm1183, %v1180, %v1182
      %v1185 = vand.u32 %v1184, 65535
      %v1186 = vshra.s32 %v1184, 16
      %v1187 = vcvt.s32.f32 %v1185
      %v1188 = vcvt.s32.f32 %v1186
      %1189 = vmin.xlane.f32.xlu0 %v1188
      %v1190 = vpop.xlane.xlu0 %1189
      %vm1191 = vcmp.eq.f32.partialorder %v1188, %v1190
      %v1192 = vsel %vm1191, %v1187, inf
      %1193 = vmin.xlane.f32.xlu0 %v1192
      %v1194 = vpop.xlane.xlu0 %1193
      %v1195 = vcvt.f32.s32 %v1194
      %v1196 = vcvt.f32.s32 %v1190
      %v1197 = vshll.u32 %v1196, 16
      %v1198 = vadd.s32 %v1197, %v1195
      %vm1199 = vcmp.eq.s32.totalorder %v1129, %v1178
      %vm1200 = vcmp.eq.s32.totalorder %v1130, %v1178
      %vm1201 = vcmp.eq.s32.totalorder %v1131, %v1178
      %vm1202 = vcmp.eq.s32.totalorder %v1132, %v1178
      %vm1203 = vcmp.eq.s32.totalorder %v1129, %v1198
      %vm1204 = vcmp.eq.s32.totalorder %v1130, %v1198
      %vm1205 = vcmp.eq.s32.totalorder %v1131, %v1198
      %vm1206 = vcmp.eq.s32.totalorder %v1132, %v1198
      %v1207 = vsel %vm1199, 1, 0
      %v1208 = vsel %vm1200, 1, 0
      %v1209 = vsel %vm1201, 1, 0
      %v1210 = vsel %vm1202, 1, 0
      %v1211 = vsel %vm1203, 1, 0
      %v1212 = vsel %vm1204, 1, 0
      %v1213 = vsel %vm1205, 1, 0
      %v1214 = vsel %vm1206, 1, 0
      %v1215 = vcvt.s32.f32 %v1207
      %v1216 = vcvt.s32.f32 %v1208
      %v1217 = vcvt.s32.f32 %v1209
      %v1218 = vcvt.s32.f32 %v1210
      %v1219 = vcvt.s32.f32 %v1211
      %v1220 = vcvt.s32.f32 %v1212
      %v1221 = vcvt.s32.f32 %v1213
      %v1222 = vcvt.s32.f32 %v1214
      %v1223 = vpack.c.bf16 %v1219, %v1215
      %v1224 = vpack.c.bf16 %v1220, %v1216
      %v1225 = vpack.c.bf16 %v1221, %v1217
      %v1226 = vpack.c.bf16 %v1222, %v1218
      %v1227 = vld [vmem:[%s5] sm:$0xf]
      %v1228 = vld [vmem:[%s5 + $0x4] sm:$0xf]
      %v1229 = vld [vmem:[%s5 + $0x8] sm:$0xf]
      %v1230 = vld [vmem:[%s5 + $0xc] sm:$0xf]
      %v1231 = vld [vmem:[%s5 + $0x10] sm:$0xf]
      %v1232 = vld [vmem:[%s5 + $0x14] sm:$0xf]
      %v1233 = vld [vmem:[%s5 + $0x18] sm:$0xf]
      %v1234 = vld [vmem:[%s5 + $0x1c] sm:$0xf]
      %v1235 = vld [vmem:[%s5 + $0x20] sm:$0xf]
      %v1236 = vld [vmem:[%s5 + $0x24] sm:$0xf]
      %v1237 = vld [vmem:[%s5 + $0x28] sm:$0xf]
      %v1238 = vld [vmem:[%s5 + $0x2c] sm:$0xf]
      %v1239 = vld [vmem:[%s5 + $0x30] sm:$0xf]
      %v1240 = vld [vmem:[%s5 + $0x34] sm:$0xf]
      %v1241 = vld [vmem:[%s5 + $0x38] sm:$0xf]
      %v1242 = vld [vmem:[%s5 + $0x3c] sm:$0xf]
      %v1243 = vld [vmem:[%s5 + $0x40] sm:$0xf]
      %v1244 = vld [vmem:[%s5 + $0x44] sm:$0xf]
      %v1245 = vld [vmem:[%s5 + $0x48] sm:$0xf]
      %v1246 = vld [vmem:[%s5 + $0x4c] sm:$0xf]
      %v1247 = vld [vmem:[%s5 + $0x50] sm:$0xf]
      %v1248 = vld [vmem:[%s5 + $0x54] sm:$0xf]
      %v1249 = vld [vmem:[%s5 + $0x58] sm:$0xf]
      %v1250 = vld [vmem:[%s5 + $0x5c] sm:$0xf]
      %v1251 = vld [vmem:[%s5 + $0x60] sm:$0xf]
      %v1252 = vld [vmem:[%s5 + $0x64] sm:$0xf]
      %v1253 = vld [vmem:[%s5 + $0x68] sm:$0xf]
      %v1254 = vld [vmem:[%s5 + $0x6c] sm:$0xf]
      %v1255 = vld [vmem:[%s5 + $0x70] sm:$0xf]
      %v1256 = vld [vmem:[%s5 + $0x74] sm:$0xf]
      %v1257 = vld [vmem:[%s5 + $0x78] sm:$0xf]
      %v1258 = vld [vmem:[%s5 + $0x7c] sm:$0xf]
      %v1259 = vld [vmem:[%s5 + $0x80] sm:$0xf]
      %v1260 = vld [vmem:[%s5 + $0x84] sm:$0xf]
      %v1261 = vld [vmem:[%s5 + $0x88] sm:$0xf]
      %v1262 = vld [vmem:[%s5 + $0x8c] sm:$0xf]
      %v1263 = vld [vmem:[%s5 + $0x90] sm:$0xf]
      %v1264 = vld [vmem:[%s5 + $0x94] sm:$0xf]
      %v1265 = vld [vmem:[%s5 + $0x98] sm:$0xf]
      %v1266 = vld [vmem:[%s5 + $0x9c] sm:$0xf]
      %v1267 = vld [vmem:[%s5 + $0xa0] sm:$0xf]
      %v1268 = vld [vmem:[%s5 + $0xa4] sm:$0xf]
      %v1269 = vld [vmem:[%s5 + $0xa8] sm:$0xf]
      %v1270 = vld [vmem:[%s5 + $0xac] sm:$0xf]
      %v1271 = vld [vmem:[%s5 + $0xb0] sm:$0xf]
      %v1272 = vld [vmem:[%s5 + $0xb4] sm:$0xf]
      %v1273 = vld [vmem:[%s5 + $0xb8] sm:$0xf]
      %v1274 = vld [vmem:[%s5 + $0xbc] sm:$0xf]
      %v1275 = vld [vmem:[%s5 + $0xc0] sm:$0xf]
      %v1276 = vld [vmem:[%s5 + $0xc4] sm:$0xf]
      %v1277 = vld [vmem:[%s5 + $0xc8] sm:$0xf]
      %v1278 = vld [vmem:[%s5 + $0xcc] sm:$0xf]
      %v1279 = vld [vmem:[%s5 + $0xd0] sm:$0xf]
      %v1280 = vld [vmem:[%s5 + $0xd4] sm:$0xf]
      %v1281 = vld [vmem:[%s5 + $0xd8] sm:$0xf]
      %v1282 = vld [vmem:[%s5 + $0xdc] sm:$0xf]
      %v1283 = vld [vmem:[%s5 + $0xe0] sm:$0xf]
      %v1284 = vld [vmem:[%s5 + $0xe4] sm:$0xf]
      %v1285 = vld [vmem:[%s5 + $0xe8] sm:$0xf]
      %v1286 = vld [vmem:[%s5 + $0xec] sm:$0xf]
      %v1287 = vld [vmem:[%s5 + $0xf0] sm:$0xf]
      %v1288 = vld [vmem:[%s5 + $0xf4] sm:$0xf]
      %v1289 = vld [vmem:[%s5 + $0xf8] sm:$0xf]
      %v1290 = vld [vmem:[%s5 + $0xfc] sm:$0xf]
      %v1355 = vunpack.c.l.b16 %v1227
      %v1356 = vunpack.c.l.b16 %v1228
      %v1357 = vunpack.c.l.b16 %v1229
      %v1358 = vunpack.c.l.b16 %v1230
      %v1359 = vunpack.c.l.b16 %v1231
      %v1360 = vunpack.c.l.b16 %v1232
      %v1361 = vunpack.c.l.b16 %v1233
      %v1362 = vunpack.c.l.b16 %v1234
      %v1363 = vunpack.c.l.b16 %v1235
      %v1364 = vunpack.c.l.b16 %v1236
      %v1365 = vunpack.c.l.b16 %v1237
      %v1366 = vunpack.c.l.b16 %v1238
      %v1367 = vunpack.c.l.b16 %v1239
      %v1368 = vunpack.c.l.b16 %v1240
      %v1369 = vunpack.c.l.b16 %v1241
      %v1370 = vunpack.c.l.b16 %v1242
      %v1371 = vunpack.c.l.b16 %v1243
      %v1372 = vunpack.c.l.b16 %v1244
      %v1373 = vunpack.c.l.b16 %v1245
      %v1374 = vunpack.c.l.b16 %v1246
      %v1375 = vunpack.c.l.b16 %v1247
      %v1376 = vunpack.c.l.b16 %v1248
      %v1377 = vunpack.c.l.b16 %v1249
      %v1378 = vunpack.c.l.b16 %v1250
      %v1379 = vunpack.c.l.b16 %v1251
      %v1380 = vunpack.c.l.b16 %v1252
      %v1381 = vunpack.c.l.b16 %v1253
      %v1382 = vunpack.c.l.b16 %v1254
      %v1383 = vunpack.c.l.b16 %v1255
      %v1384 = vunpack.c.l.b16 %v1256
      %v1385 = vunpack.c.l.b16 %v1257
      %v1386 = vunpack.c.l.b16 %v1258
      %v1387 = vunpack.c.l.b16 %v1259
      %v1388 = vunpack.c.l.b16 %v1260
      %v1389 = vunpack.c.l.b16 %v1261
      %v1390 = vunpack.c.l.b16 %v1262
      %v1391 = vunpack.c.l.b16 %v1263
      %v1392 = vunpack.c.l.b16 %v1264
      %v1393 = vunpack.c.l.b16 %v1265
      %v1394 = vunpack.c.l.b16 %v1266
      %v1395 = vunpack.c.l.b16 %v1267
      %v1396 = vunpack.c.l.b16 %v1268
      %v1397 = vunpack.c.l.b16 %v1269
      %v1398 = vunpack.c.l.b16 %v1270
      %v1399 = vunpack.c.l.b16 %v1271
      %v1400 = vunpack.c.l.b16 %v1272
      %v1401 = vunpack.c.l.b16 %v1273
      %v1402 = vunpack.c.l.b16 %v1274
      %v1403 = vunpack.c.l.b16 %v1275
      %v1404 = vunpack.c.l.b16 %v1276
      %v1405 = vunpack.c.l.b16 %v1277
      %v1406 = vunpack.c.l.b16 %v1278
      %v1407 = vunpack.c.l.b16 %v1279
      %v1408 = vunpack.c.l.b16 %v1280
      %v1409 = vunpack.c.l.b16 %v1281
      %v1410 = vunpack.c.l.b16 %v1282
      %v1411 = vunpack.c.l.b16 %v1283
      %v1412 = vunpack.c.l.b16 %v1284
      %v1413 = vunpack.c.l.b16 %v1285
      %v1414 = vunpack.c.l.b16 %v1286
      %v1415 = vunpack.c.l.b16 %v1287
      %v1416 = vunpack.c.l.b16 %v1288
      %v1417 = vunpack.c.l.b16 %v1289
      %v1418 = vunpack.c.l.b16 %v1290
      %v1419 = vpack.c.b16 %v1356, %v1355
      %v1420 = vpack.c.b16 %v1358, %v1357
      %v1421 = vpack.c.b16 %v1360, %v1359
      %v1422 = vpack.c.b16 %v1362, %v1361
      %v1423 = vpack.c.b16 %v1364, %v1363
      %v1424 = vpack.c.b16 %v1366, %v1365
      %v1425 = vpack.c.b16 %v1368, %v1367
      %v1426 = vpack.c.b16 %v1370, %v1369
      %v1427 = vpack.c.b16 %v1372, %v1371
      %v1428 = vpack.c.b16 %v1374, %v1373
      %v1429 = vpack.c.b16 %v1376, %v1375
      %v1430 = vpack.c.b16 %v1378, %v1377
      %v1431 = vpack.c.b16 %v1380, %v1379
      %v1432 = vpack.c.b16 %v1382, %v1381
      %v1433 = vpack.c.b16 %v1384, %v1383
      %v1434 = vpack.c.b16 %v1386, %v1385
      %v1435 = vpack.c.b16 %v1388, %v1387
      %v1436 = vpack.c.b16 %v1390, %v1389
      %v1437 = vpack.c.b16 %v1392, %v1391
      %v1438 = vpack.c.b16 %v1394, %v1393
      %v1439 = vpack.c.b16 %v1396, %v1395
      %v1440 = vpack.c.b16 %v1398, %v1397
      %v1441 = vpack.c.b16 %v1400, %v1399
      %v1442 = vpack.c.b16 %v1402, %v1401
      %v1443 = vpack.c.b16 %v1404, %v1403
      %v1444 = vpack.c.b16 %v1406, %v1405
      %v1445 = vpack.c.b16 %v1408, %v1407
      %v1446 = vpack.c.b16 %v1410, %v1409
      %v1447 = vpack.c.b16 %v1412, %v1411
      %v1448 = vpack.c.b16 %v1414, %v1413
      %v1449 = vpack.c.b16 %v1416, %v1415
      %v1450 = vpack.c.b16 %v1418, %v1417
      %1483 = vmatprep.subr.bf16.mxu0 0
      %1484 = vmatpush1.bf16.msra.mxu0 %v1419
      %1485 = vmatprep.subr.bf16.mxu0 0
      %1486 = vmatpush1.bf16.msra.mxu0 %v1420
      %1487 = vmatprep.subr.bf16.mxu0 0
      %1488 = vmatpush1.bf16.msra.mxu0 %v1421
      %1489 = vmatprep.subr.bf16.mxu0 0
      %1490 = vmatpush1.bf16.msra.mxu0 %v1422
      %1491 = vmatprep.subr.bf16.mxu0 0
      %1492 = vmatpush1.bf16.msra.mxu0 %v1423
      %1493 = vmatprep.subr.bf16.mxu0 0
      %1494 = vmatpush1.bf16.msra.mxu0 %v1424
      %1495 = vmatprep.subr.bf16.mxu0 0
      %1496 = vmatpush1.bf16.msra.mxu0 %v1425
      %1497 = vmatprep.subr.bf16.mxu0 0
      %1498 = vmatpush1.bf16.msra.mxu0 %v1426
      %1499 = vmatprep.subr.bf16.mxu0 0
      %1500 = vmatpush1.bf16.msra.mxu0 %v1427
      %1501 = vmatprep.subr.bf16.mxu0 0
      %1502 = vmatpush1.bf16.msra.mxu0 %v1428
      %1503 = vmatprep.subr.bf16.mxu0 0
      %1504 = vmatpush1.bf16.msra.mxu0 %v1429
      %1505 = vmatprep.subr.bf16.mxu0 0
      %1506 = vmatpush1.bf16.msra.mxu0 %v1430
      %1507 = vmatprep.subr.bf16.mxu0 0
      %1508 = vmatpush1.bf16.msra.mxu0 %v1431
      %1509 = vmatprep.subr.bf16.mxu0 0
      %1510 = vmatpush1.bf16.msra.mxu0 %v1432
      %1511 = vmatprep.subr.bf16.mxu0 0
      %1512 = vmatpush1.bf16.msra.mxu0 %v1433
      %1513 = vmatprep.subr.bf16.mxu0 0
      %1514 = vmatpush1.bf16.msra.mxu0 %v1434
      %1515 = vmatprep.mubr.bf16.mxu0 %v1224
      %1516 = vmatmul.mubr.bf16.gmra.mrb[0].mxu0 %v1223
      %v1517 = vpop.f32.mrb[0].mxu0
      %v1518 = vadd.f32 0.0, %v1517
      %v1519 = vpop.f32.mrb[0].mxu0
      %v1520 = vpop.f32.mrb[0].mxu0
      %v1521 = vadd.f32 0.0, %v1520
      %v1522 = vpop.f32.mrb[0].mxu0
      %1523 = vdwg.mxu0
      %1524 = vmatprep.subr.bf16.mxu0 0
      %1525 = vmatpush1.bf16.msra.mxu0 %v1435
      %1526 = vmatprep.subr.bf16.mxu0 0
      %1527 = vmatpush1.bf16.msra.mxu0 %v1436
      %1528 = vmatprep.subr.bf16.mxu0 0
      %1529 = vmatpush1.bf16.msra.mxu0 %v1437
      %1530 = vmatprep.subr.bf16.mxu0 0
      %1531 = vmatpush1.bf16.msra.mxu0 %v1438
      %1532 = vmatprep.subr.bf16.mxu0 0
      %1533 = vmatpush1.bf16.msra.mxu0 %v1439
      %1534 = vmatprep.subr.bf16.mxu0 0
      %1535 = vmatpush1.bf16.msra.mxu0 %v1440
      %1536 = vmatprep.subr.bf16.mxu0 0
      %1537 = vmatpush1.bf16.msra.mxu0 %v1441
      %1538 = vmatprep.subr.bf16.mxu0 0
      %1539 = vmatpush1.bf16.msra.mxu0 %v1442
      %1540 = vmatprep.subr.bf16.mxu0 0
      %1541 = vmatpush1.bf16.msra.mxu0 %v1443
      %1542 = vmatprep.subr.bf16.mxu0 0
      %1543 = vmatpush1.bf16.msra.mxu0 %v1444
      %1544 = vmatprep.subr.bf16.mxu0 0
      %1545 = vmatpush1.bf16.msra.mxu0 %v1445
      %1546 = vmatprep.subr.bf16.mxu0 0
      %1547 = vmatpush1.bf16.msra.mxu0 %v1446
      %1548 = vmatprep.subr.bf16.mxu0 0
      %1549 = vmatpush1.bf16.msra.mxu0 %v1447
      %1550 = vmatprep.subr.bf16.mxu0 0
      %1551 = vmatpush1.bf16.msra.mxu0 %v1448
      %1552 = vmatprep.subr.bf16.mxu0 0
      %1553 = vmatpush1.bf16.msra.mxu0 %v1449
      %1554 = vmatprep.subr.bf16.mxu0 0
      %1555 = vmatpush1.bf16.msra.mxu0 %v1450
      %1556 = vmatprep.mubr.bf16.mxu0 %v1226
      %1557 = vmatmul.mubr.bf16.gmra.mrb[0].mxu0 %v1225
      %v1558 = vpop.f32.mrb[0].mxu0
      %v1559 = vadd.f32 %v1518, %v1558
      %v1560 = vpop.f32.mrb[0].mxu0
      %v1561 = vpop.f32.mrb[0].mxu0
      %v1562 = vadd.f32 %v1521, %v1561
      %v1563 = vpop.f32.mrb[0].mxu0
      %1564 = vdwg.mxu0
      %v1565 = vpack.c.bf16 %v1562, %v1559
      %v1567 = vunpack.c.l.b16 %v1565
      %v1568 = vunpack.c.h.b16 %v1565
      %v1569 = vpack.c.b16 %v1567, %v1567
      %v1570 = vpack.c.b16 %v1568, %v1568
      %1573 = vst [vmem:[%s256] sm:$0xf] %v1569
      %1574 = vst [vmem:[%s256 + $0x4] sm:$0xf] %v1570
      %s1575 = smul.u32 2, %s17
      %p1576 = scmp.lt.s32.totalorder %s1575, 3
      %s1577 = scalar_select %p1576, %s1575, 3
      %s1578 = smul.addr %s1577, 4
      %s1579 = scalar_lea.vmem %s6, %s1578
      // Predicated region
      $region45: #{dkvb_bin_forward.3} parent=43 // pred_check
        %p1580 = pneg %p166
      $region46: #{dkvb_bin_forward.3} parent=43 // pred_check_branch
        %1582 = sbr.rel (%p1580) target = $region48
      $region47: #{dkvb_bin_forward.3} parent=43 // pred_region
        %s1583 = smul.u32 2, %s17
      $region48: #{dkvb_bin_forward.3} parent=43 // pred_fallthru
        _
    $region44: #{dkvb_bin_forward.3} parent=5 // pred_fallthru
      _
    %p1584 = scmp.le.s32.totalorder 2, %s12
    // Predicated region
    $region49: #{dkvb_bin_forward.3} parent=5 // pred_check
      %p1585 = pneg %p1584
    $region50: #{dkvb_bin_forward.3} parent=5 // pred_check_branch
      %1587 = sbr.rel (%p1585) target = $region52
    $region51: #{dkvb_bin_forward.3} parent=5 // pred_region
      %s1588 = ssub.s32 %s12, 2
      // Predicated region
      $region53: #{dkvb_bin_forward.3} parent=51 // pred_check
        %p1589 = pneg %p172
      $region54: #{dkvb_bin_forward.3} parent=51 // pred_check_branch
        %1591 = sbr.rel (%p1589) target = $region56
      $region55: #{dkvb_bin_forward.3} parent=51 // pred_region
        %s1592 = smul.u32 2, %s18
        %p1593 = scmp.lt.s32.totalorder %s1592, 3
        %s1594 = scalar_select %p1593, %s1592, 3
        %s1595 = smul.addr %s1594, 4
        %s1596 = scalar_lea.vmem %s6, %s1595
      $region56: #{dkvb_bin_forward.3} parent=51 // pred_fallthru
        _
    $region52: #{dkvb_bin_forward.3} parent=5 // pred_fallthru
      _
  $region6: #{dkvb_bin_forward.3} parent=0 // loop_footer
    %s16 = sadd.s32 1, %s12
  $region7: #{dkvb_bin_forward.3} parent=0 // loop_footer_branch
    %11 = sbr.rel target = $region3
  $region8: #{dkvb_bin_forward.3} parent=0 // loop_exit
    _

// kernel: dkvb_bin_forward.4
$region0: #{dkvb_bin_forward.4}
  #allocation0 [shape = 'u32[]', space=smem, size = 0x4, offset = 0x4, fixed_abs, tag = 'smem constant byte address 0x4 - core index']
  #allocation1 [shape = 'u32[144,128]{1,0:T(1,128)}', space=vmem, size = 0x12000, scoped, tag = 'internal scratch']
  %s0 = inlined_call_operand.vmem [shape: bf16[2,42,128], index: 0, kind: input, shape index: {}]
  %s1 = inlined_call_operand.vmem [shape: bf16[9,128,256], index: 1, kind: input, shape index: {}]
  %s2 = inlined_call_operand.vmem [shape: f32[1,256], index: 2, kind: input, shape index: {}]
  %s3 = inlined_call_operand.vmem [shape: bf16[2,24,256], index: 3, kind: output, shape index: {}]
  %s4 = sld [smem:[#allocation0]]
  $region45: #{dkvb_bin_forward.4} parent=0
    _
  %s6 = ssub.s32 1, %s4
  %s7 = scalar_select 0, %s6, %s4
  loop: start=0, step=1, limit=4
  $region2: #{dkvb_bin_forward.4} parent=0 // loop_pre_header
    _
  $region3: #{dkvb_bin_forward.4} parent=0 // loop_header
    %s9 = sphi 0, %s13
    %p10 = scmp.ge.s32.totalorder %s9, 4
    %s19 = sphi 0, %s21
    %s22 = sphi 0, %s19
    %s23 = sphi 0, %s22
    %s39 = sphi 0, %s23
    %s43 = sphi 0, %s43
    %s45 = sphi 0, %s43
    %s46 = sphi 0, %s45
    %s60 = sphi 0, %s46
    %s64 = sphi 0, %s64
    %s66 = sphi 0, %s64
    %s67 = sphi 0, %s66
    %s81 = sphi 0, %s67
    %s87 = sphi 0, %s89
    %s90 = sphi 0, %s87
    %s91 = sphi 0, %s90
    %s107 = sphi 0, %s91
  $region4: #{dkvb_bin_forward.4} parent=0 // loop_header_branch
    %12 = sbr.rel (%p10) target = $region8
  $region5: #{dkvb_bin_forward.4} parent=0 // loop_body
    %s14 = ssub.s32 %s9, 1
    %s15 = ssub.s32 %s9, 2
    %s16 = sadd.s32 %s9, 1
    %s17 = ssub.s32 %s9, %s16
    %p18 = scmp.eq.s32.totalorder %s17, 0
    %s20 = sadd.s32 %s19, 1
    %s21 = scalar_select %p18, %s19, %s20
    %p24 = pneg %p18
    %p25 = scmp.eq.s32.totalorder %s9, 1
    %p26 = por %p24, %p25
    %p27 = scmp.ne.s32.totalorder %s19, %s22
    %p28 = scmp.eq.s32.totalorder %s9, 0
    %p29 = por %p27, %p28
    %p30 = scmp.ne.s32.totalorder %s19, %s22
    %p31 = scmp.eq.s32.totalorder %s14, 1
    %p32 = por %p30, %p31
    %p33 = scmp.ne.s32.totalorder %s22, %s23
    %p34 = scmp.eq.s32.totalorder %s14, 0
    %p35 = por %p33, %p34
    %p36 = scmp.ne.s32.totalorder %s22, %s23
    %p37 = scmp.eq.s32.totalorder %s15, 1
    %p38 = por %p36, %p37
    %p40 = scmp.ne.s32.totalorder %s23, %s39
    %p41 = scmp.eq.s32.totalorder %s15, 0
    %p42 = por %p40, %p41
    %s44 = sadd.s32 %s43, 1
    %p47 = scmp.eq.s32.totalorder %s9, 1
    %p48 = scmp.ne.s32.totalorder %s43, %s45
    %p49 = scmp.eq.s32.totalorder %s9, 0
    %p50 = por %p48, %p49
    %p51 = scmp.ne.s32.totalorder %s43, %s45
    %p52 = scmp.eq.s32.totalorder %s14, 1
    %p53 = por %p51, %p52
    %p54 = scmp.ne.s32.totalorder %s45, %s46
    %p55 = scmp.eq.s32.totalorder %s14, 0
    %p56 = por %p54, %p55
    %p57 = scmp.ne.s32.totalorder %s45, %s46
    %p58 = scmp.eq.s32.totalorder %s15, 1
    %p59 = por %p57, %p58
    %p61 = scmp.ne.s32.totalorder %s46, %s60
    %p62 = scmp.eq.s32.totalorder %s15, 0
    %p63 = por %p61, %p62
    %s65 = sadd.s32 %s64, 1
    %p68 = scmp.eq.s32.totalorder %s9, 1
    %p69 = scmp.ne.s32.totalorder %s64, %s66
    %p70 = scmp.eq.s32.totalorder %s9, 0
    %p71 = por %p69, %p70
    %p72 = scmp.ne.s32.totalorder %s64, %s66
    %p73 = scmp.eq.s32.totalorder %s14, 1
    %p74 = por %p72, %p73
    %p75 = scmp.ne.s32.totalorder %s66, %s67
    %p76 = scmp.eq.s32.totalorder %s14, 0
    %p77 = por %p75, %p76
    %p78 = scmp.ne.s32.totalorder %s66, %s67
    %p79 = scmp.eq.s32.totalorder %s15, 1
    %p80 = por %p78, %p79
    %p82 = scmp.ne.s32.totalorder %s67, %s81
    %p83 = scmp.eq.s32.totalorder %s15, 0
    %p84 = por %p82, %p83
    %s85 = ssub.s32 %s9, %s16
    %p86 = scmp.eq.s32.totalorder %s85, 0
    %s88 = sadd.s32 %s87, 1
    %s89 = scalar_select %p86, %s87, %s88
    %p92 = pneg %p86
    %p93 = scmp.eq.s32.totalorder %s9, 1
    %p94 = por %p92, %p93
    %p95 = scmp.ne.s32.totalorder %s87, %s90
    %p96 = scmp.eq.s32.totalorder %s9, 0
    %p97 = por %p95, %p96
    %p98 = scmp.ne.s32.totalorder %s87, %s90
    %p99 = scmp.eq.s32.totalorder %s14, 1
    %p100 = por %p98, %p99
    %p101 = scmp.ne.s32.totalorder %s90, %s91
    %p102 = scmp.eq.s32.totalorder %s14, 0
    %p103 = por %p101, %p102
    %p104 = scmp.ne.s32.totalorder %s90, %s91
    %p105 = scmp.eq.s32.totalorder %s15, 1
    %p106 = por %p104, %p105
    %p108 = scmp.ne.s32.totalorder %s91, %s107
    %p109 = scmp.eq.s32.totalorder %s15, 0
    %p110 = por %p108, %p109
    %p111 = scmp.le.s32.totalorder 1, %s9
    %p112 = scmp.lt.s32.totalorder %s9, 3
    %p113 = pnand %p111, %p112
    %p114 = pneg %p113
    // Predicated region
    $region9: #{dkvb_bin_forward.4} parent=5 // pred_check
      _
    $region10: #{dkvb_bin_forward.4} parent=5 // pred_check_branch
      %116 = sbr.rel (%p113) target = $region12
    $region11: #{dkvb_bin_forward.4} parent=5 // pred_region
      %s117 = ssub.s32 %s9, 1
      // Predicated region
      $region13: #{dkvb_bin_forward.4} parent=11 // pred_check
        %p118 = pneg %p56
      $region14: #{dkvb_bin_forward.4} parent=11 // pred_check_branch
        %120 = sbr.rel (%p118) target = $region16
      $region15: #{dkvb_bin_forward.4} parent=11 // pred_region
        _
      $region16: #{dkvb_bin_forward.4} parent=11 // pred_fallthru
        _
      // Predicated region
      $region17: #{dkvb_bin_forward.4} parent=11 // pred_check
        %p121 = pneg %p77
      $region18: #{dkvb_bin_forward.4} parent=11 // pred_check_branch
        %123 = sbr.rel (%p121) target = $region20
      $region19: #{dkvb_bin_forward.4} parent=11 // pred_region
        _
      $region20: #{dkvb_bin_forward.4} parent=11 // pred_fallthru
        _
    $region12: #{dkvb_bin_forward.4} parent=5 // pred_fallthru
      _
    %p124 = scmp.lt.s32.totalorder %s9, 2
    // Predicated region
    $region21: #{dkvb_bin_forward.4} parent=5 // pred_check
      %p125 = pneg %p124
    $region22: #{dkvb_bin_forward.4} parent=5 // pred_check_branch
      %127 = sbr.rel (%p125) target = $region24
    $region23: #{dkvb_bin_forward.4} parent=5 // pred_region
      // Predicated region
      $region25: #{dkvb_bin_forward.4} parent=23 // pred_check
        %p128 = pneg %p29
      $region26: #{dkvb_bin_forward.4} parent=23 // pred_check_branch
        %130 = sbr.rel (%p128) target = $region28
      $region27: #{dkvb_bin_forward.4} parent=23 // pred_region
        %p131 = scmp.lt.s32.totalorder %s9, 1
        %s132 = scalar_select %p131, %s9, 1
        %s133 = smul.addr %s132, 6
        %s134 = smul.addr %s133, 4
        %s135 = scalar_lea.vmem %s0, %s134
      $region28: #{dkvb_bin_forward.4} parent=23 // pred_fallthru
        _
    $region24: #{dkvb_bin_forward.4} parent=5 // pred_fallthru
      _
    %p136 = scmp.le.s32.totalorder 1, %s9
    %p137 = scmp.lt.s32.totalorder %s9, 3
    %p138 = pnand %p136, %p137
    %p139 = pneg %p138
    // Predicated region
    $region29: #{dkvb_bin_forward.4} parent=5 // pred_check
      _
    $region30: #{dkvb_bin_forward.4} parent=5 // pred_check_branch
      %141 = sbr.rel (%p138) target = $region32
    $region31: #{dkvb_bin_forward.4} parent=5 // pred_region
      %s142 = ssub.s32 %s9, 1
      %p143 = scmp.lt.s32.totalorder %s14, 1
      %s144 = scalar_select %p143, %s14, 1
      %s145 = smul.addr %s144, 6
      %s146 = smul.addr %s145, 4
      %s147 = scalar_lea.vmem %s0, %s146
      %p148 = pneg %p35
      %p149 = pneg %p32
      %p150 = pneg %p56
      %p151 = pneg %p53
      %p152 = pneg %p77
      %p153 = pneg %p74
      %p154 = pneg %p103
      %p155 = pneg %p100
      %p156 = scmp.lt.s32.totalorder %s14, 1
      %s157 = scalar_select %p156, %s14, 1
      %s158 = smul.addr %s157, 6
      %s159 = smul.addr %s158, 4
      %s160 = scalar_lea.vmem %s3, %s159
      %p161 = scmp.lt.s32.totalorder %s14, 1
      %s162 = scalar_select %p161, %s14, 1
      %s163 = smul.addr %s162, 6
      %s164 = smul.addr %s163, 4
      %s165 = scalar_lea.vmem %s0, %s164
      %p166 = scmp.lt.s32.totalorder %s14, 1
      %s167 = scalar_select %p166, %s14, 1
      %s168 = smul.addr %s167, 6
      %s169 = smul.addr %s168, 4
      %s170 = scalar_lea.vmem %s3, %s169
      %v172 = vld [vmem:[%s165] sm:$0xf]
      %v173 = vld [vmem:[%s165 + $0x4] sm:$0xf]
      %v174 = vld [vmem:[%s165 + $0x8] sm:$0xf]
      %v175 = vld [vmem:[%s1] sm:$0xff]
      %v176 = vld [vmem:[%s1 + $0x8] sm:$0xff]
      %v177 = vld [vmem:[%s1 + $0x10] sm:$0xff]
      %v178 = vld [vmem:[%s1 + $0x18] sm:$0xff]
      %v179 = vld [vmem:[%s1 + $0x20] sm:$0xff]
      %v180 = vld [vmem:[%s1 + $0x28] sm:$0xff]
      %v181 = vld [vmem:[%s1 + $0x30] sm:$0xff]
      %v182 = vld [vmem:[%s1 + $0x38] sm:$0xff]
      %v183 = vld [vmem:[%s1 + $0x40] sm:$0xff]
      %v184 = vld [vmem:[%s1 + $0x48] sm:$0xff]
      %v185 = vld [vmem:[%s1 + $0x50] sm:$0xff]
      %v186 = vld [vmem:[%s1 + $0x58] sm:$0xff]
      %v187 = vld [vmem:[%s1 + $0x60] sm:$0xff]
      %v188 = vld [vmem:[%s1 + $0x68] sm:$0xff]
      %v189 = vld [vmem:[%s1 + $0x70] sm:$0xff]
      %v190 = vld [vmem:[%s1 + $0x78] sm:$0xff]
      %v191 = vld [vmem:[%s165 + $0xc] sm:$0x1]
      %s192 = scalar_lea.vmem %s1, 128
      %v193 = vld [vmem:[%s192] sm:$0xff]
      %v194 = vld [vmem:[%s192 + $0x8] sm:$0xff]
      %v195 = vld [vmem:[%s192 + $0x10] sm:$0xff]
      %v196 = vld [vmem:[%s192 + $0x18] sm:$0xff]
      %v197 = vld [vmem:[%s192 + $0x20] sm:$0xff]
      %v198 = vld [vmem:[%s192 + $0x28] sm:$0xff]
      %v199 = vld [vmem:[%s192 + $0x30] sm:$0xff]
      %v200 = vld [vmem:[%s192 + $0x38] sm:$0xff]
      %v201 = vld [vmem:[%s192 + $0x40] sm:$0xff]
      %v202 = vld [vmem:[%s192 + $0x48] sm:$0xff]
      %v203 = vld [vmem:[%s192 + $0x50] sm:$0xff]
      %v204 = vld [vmem:[%s192 + $0x58] sm:$0xff]
      %v205 = vld [vmem:[%s192 + $0x60] sm:$0xff]
      %v206 = vld [vmem:[%s192 + $0x68] sm:$0xff]
      %v207 = vld [vmem:[%s192 + $0x70] sm:$0xff]
      %v208 = vld [vmem:[%s192 + $0x78] sm:$0xff]
      %v213 = vunpack.c.l.b16 %v172
      %v214 = vunpack.c.l.b16 %v173
      %v215 = vunpack.c.l.b16 %v174
      %v216 = vunpack.c.l.b16 %v191
      %v217 = vpack.c.b16 %v214, %v213
      %v218 = vpack.c.b16 %v216, %v215
      %vm219 = vsmask.f32 7424
      %v221 = vshrl.u32 %v217, 16
      %v223 = vshll.u32 %v217, 16
      %v225 = vrot.slane %v223, 1
      %v226 = vor.u32 %v221, %v225
      %v228 = vshll.u32 %v218, 16
      %v230 = vrot.slane %v228, 1
      %v231 = vsel %vm219, %v226, %v230
      %v232 = vshrl.u32 %v218, 16
      %v234 = vor.u32 %v232, %v230
      %v253 = vunpack.c.l.b16 %v193
      %v254 = vunpack.c.h.b16 %v193
      %v255 = vunpack.c.l.b16 %v194
      %v256 = vunpack.c.h.b16 %v194
      %v257 = vunpack.c.l.b16 %v195
      %v258 = vunpack.c.h.b16 %v195
      %v259 = vunpack.c.l.b16 %v196
      %v260 = vunpack.c.h.b16 %v196
      %v261 = vunpack.c.l.b16 %v197
      %v262 = vunpack.c.h.b16 %v197
      %v263 = vunpack.c.l.b16 %v198
      %v264 = vunpack.c.h.b16 %v198
      %v265 = vunpack.c.l.b16 %v199
      %v266 = vunpack.c.h.b16 %v199
      %v267 = vunpack.c.l.b16 %v200
      %v268 = vunpack.c.h.b16 %v200
      %v269 = vunpack.c.l.b16 %v201
      %v270 = vunpack.c.h.b16 %v201
      %v271 = vunpack.c.l.b16 %v202
      %v272 = vunpack.c.h.b16 %v202
      %v273 = vunpack.c.l.b16 %v203
      %v274 = vunpack.c.h.b16 %v203
      %v275 = vunpack.c.l.b16 %v204
      %v276 = vunpack.c.h.b16 %v204
      %v277 = vunpack.c.l.b16 %v205
      %v278 = vunpack.c.h.b16 %v205
      %v279 = vunpack.c.l.b16 %v206
      %v280 = vunpack.c.h.b16 %v206
      %v281 = vunpack.c.l.b16 %v207
      %v282 = vunpack.c.h.b16 %v207
      %v283 = vunpack.c.l.b16 %v208
      %v284 = vunpack.c.h.b16 %v208
      %v285 = vpack.c.b16 %v255, %v253
      %v286 = vpack.c.b16 %v256, %v254
      %v287 = vpack.c.b16 %v259, %v257
      %v288 = vpack.c.b16 %v260, %v258
      %v289 = vpack.c.b16 %v263, %v261
      %v290 = vpack.c.b16 %v264, %v262
      %v291 = vpack.c.b16 %v267, %v265
      %v292 = vpack.c.b16 %v268, %v266
      %v293 = vpack.c.b16 %v271, %v269
      %v294 = vpack.c.b16 %v272, %v270
      %v295 = vpack.c.b16 %v275, %v273
      %v296 = vpack.c.b16 %v276, %v274
      %v297 = vpack.c.b16 %v279, %v277
      %v298 = vpack.c.b16 %v280, %v278
      %v299 = vpack.c.b16 %v283, %v281
      %v300 = vpack.c.b16 %v284, %v282
      %317 = vmatprep.subr.bf16.mxu0 %v286
      %318 = vmatpush1.bf16.msra.mxu0 %v285
      %319 = vmatprep.subr.bf16.mxu0 %v288
      %320 = vmatpush1.bf16.msra.mxu0 %v287
      %321 = vmatprep.subr.bf16.mxu0 %v290
      %322 = vmatpush1.bf16.msra.mxu0 %v289
      %323 = vmatprep.subr.bf16.mxu0 %v292
      %324 = vmatpush1.bf16.msra.mxu0 %v291
      %325 = vmatprep.subr.bf16.mxu0 %v294
      %326 = vmatpush1.bf16.msra.mxu0 %v293
      %327 = vmatprep.subr.bf16.mxu0 %v296
      %328 = vmatpush1.bf16.msra.mxu0 %v295
      %329 = vmatprep.subr.bf16.mxu0 %v298
      %330 = vmatpush1.bf16.msra.mxu0 %v297
      %331 = vmatprep.subr.bf16.mxu0 %v300
      %332 = vmatpush1.bf16.msra.mxu0 %v299
      %333 = vmatprep.subr.bf16.mxu0 0
      %334 = vmatpush1.bf16.msra.mxu0 0
      %335 = vmatprep.subr.bf16.mxu0 0
      %336 = vmatpush1.bf16.msra.mxu0 0
      %337 = vmatprep.subr.bf16.mxu0 0
      %338 = vmatpush1.bf16.msra.mxu0 0
      %339 = vmatprep.subr.bf16.mxu0 0
      %340 = vmatpush1.bf16.msra.mxu0 0
      %341 = vmatprep.subr.bf16.mxu0 0
      %342 = vmatpush1.bf16.msra.mxu0 0
      %343 = vmatprep.subr.bf16.mxu0 0
      %344 = vmatpush1.bf16.msra.mxu0 0
      %345 = vmatprep.subr.bf16.mxu0 0
      %346 = vmatpush1.bf16.msra.mxu0 0
      %347 = vmatprep.subr.bf16.mxu0 0
      %348 = vmatpush1.bf16.msra.mxu0 0
      %349 = vmatprep.mubr.bf16.mxu0 0
      %350 = vmatmul.mubr.bf16.gmra.mrb[0].mxu0 %v231
      %v351 = vpop.f32.mrb[0].mxu0
      %v352 = vadd.f32 0.0, %v351
      %v353 = vpop.f32.mrb[0].mxu0
      %v354 = vadd.f32 0.0, %v353
      %v355 = vpop.f32.mrb[0].mxu0
      %v356 = vadd.f32 0.0, %v355
      %v357 = vpop.f32.mrb[0].mxu0
      %v358 = vadd.f32 0.0, %v357
      %359 = vmatprep.mubr.bf16.mxu0 0
      %360 = vmatmul.mubr.bf16.gmra.mrb[0].mxu0 %v234
      %v361 = vpop.f32.mrb[0].mxu0
      %v362 = vadd.f32 0.0, %v361
      %v363 = vpop.f32.mrb[0].mxu0
      %v364 = vadd.f32 0.0, %v363
      %v365 = vpop.f32.mrb[0].mxu0
      %v366 = vpop.f32.mrb[0].mxu0
      %367 = vdwg.mxu0
      %v368 = vpack.c.b16 %v215, %v215
      %v387 = vunpack.c.l.b16 %v175
      %v388 = vunpack.c.h.b16 %v175
      %v389 = vunpack.c.l.b16 %v176
      %v390 = vunpack.c.h.b16 %v176
      %v391 = vunpack.c.l.b16 %v177
      %v392 = vunpack.c.h.b16 %v177
      %v393 = vunpack.c.l.b16 %v178
      %v394 = vunpack.c.h.b16 %v178
      %v395 = vunpack.c.l.b16 %v179
      %v396 = vunpack.c.h.b16 %v179
      %v397 = vunpack.c.l.b16 %v180
      %v398 = vunpack.c.h.b16 %v180
      %v399 = vunpack.c.l.b16 %v181
      %v400 = vunpack.c.h.b16 %v181
      %v401 = vunpack.c.l.b16 %v182
      %v402 = vunpack.c.h.b16 %v182
      %v403 = vunpack.c.l.b16 %v183
      %v404 = vunpack.c.h.b16 %v183
      %v405 = vunpack.c.l.b16 %v184
      %v406 = vunpack.c.h.b16 %v184
      %v407 = vunpack.c.l.b16 %v185
      %v408 = vunpack.c.h.b16 %v185
      %v409 = vunpack.c.l.b16 %v186
      %v410 = vunpack.c.h.b16 %v186
      %v411 = vunpack.c.l.b16 %v187
      %v412 = vunpack.c.h.b16 %v187
      %v413 = vunpack.c.l.b16 %v188
      %v414 = vunpack.c.h.b16 %v188
      %v415 = vunpack.c.l.b16 %v189
      %v416 = vunpack.c.h.b16 %v189
      %v417 = vunpack.c.l.b16 %v190
      %v418 = vunpack.c.h.b16 %v190
      %v419 = vpack.c.b16 %v389, %v387
      %v420 = vpack.c.b16 %v390, %v388
      %v421 = vpack.c.b16 %v393, %v391
      %v422 = vpack.c.b16 %v394, %v392
      %v423 = vpack.c.b16 %v397, %v395
      %v424 = vpack.c.b16 %v398, %v396
      %v425 = vpack.c.b16 %v401, %v399
      %v426 = vpack.c.b16 %v402, %v400
      %v427 = vpack.c.b16 %v405, %v403
      %v428 = vpack.c.b16 %v406, %v404
      %v429 = vpack.c.b16 %v409, %v407
      %v430 = vpack.c.b16 %v410, %v408
      %v431 = vpack.c.b16 %v413, %v411
      %v432 = vpack.c.b16 %v414, %v412
      %v433 = vpack.c.b16 %v417, %v415
      %v434 = vpack.c.b16 %v418, %v416
      %451 = vmatprep.subr.bf16.mxu0 %v420
      %452 = vmatpush1.bf16.msra.mxu0 %v419
      %453 = vmatprep.subr.bf16.mxu0 %v422
      %454 = vmatpush1.bf16.msra.mxu0 %v421
      %455 = vmatprep.subr.bf16.mxu0 %v424
      %456 = vmatpush1.bf16.msra.mxu0 %v423
      %457 = vmatprep.subr.bf16.mxu0 %v426
      %458 = vmatpush1.bf16.msra.mxu0 %v425
      %459 = vmatprep.subr.bf16.mxu0 %v428
      %460 = vmatpush1.bf16.msra.mxu0 %v427
      %461 = vmatprep.subr.bf16.mxu0 %v430
      %462 = vmatpush1.bf16.msra.mxu0 %v429
      %463 = vmatprep.subr.bf16.mxu0 %v432
      %464 = vmatpush1.bf16.msra.mxu0 %v431
      %465 = vmatprep.subr.bf16.mxu0 %v434
      %466 = vmatpush1.bf16.msra.mxu0 %v433
      %467 = vmatprep.subr.bf16.mxu0 0
      %468 = vmatpush1.bf16.msra.mxu0 0
      %469 = vmatprep.subr.bf16.mxu0 0
      %470 = vmatpush1.bf16.msra.mxu0 0
      %471 = vmatprep.subr.bf16.mxu0 0
      %472 = vmatpush1.bf16.msra.mxu0 0
      %473 = vmatprep.subr.bf16.mxu0 0
      %474 = vmatpush1.bf16.msra.mxu0 0
      %475 = vmatprep.subr.bf16.mxu0 0
      %476 = vmatpush1.bf16.msra.mxu0 0
      %477 = vmatprep.subr.bf16.mxu0 0
      %478 = vmatpush1.bf16.msra.mxu0 0
      %479 = vmatprep.subr.bf16.mxu0 0
      %480 = vmatpush1.bf16.msra.mxu0 0
      %481 = vmatprep.subr.bf16.mxu0 0
      %482 = vmatpush1.bf16.msra.mxu0 0
      %483 = vmatprep.mubr.bf16.mxu0 0
      %484 = vmatmul.mubr.bf16.gmra.mrb[0].mxu0 %v217
      %v485 = vpop.f32.mrb[0].mxu0
      %v486 = vadd.f32 %v352, %v485
      %v487 = vpop.f32.mrb[0].mxu0
      %v488 = vadd.f32 %v354, %v487
      %v489 = vpop.f32.mrb[0].mxu0
      %v490 = vadd.f32 %v356, %v489
      %v491 = vpop.f32.mrb[0].mxu0
      %v492 = vadd.f32 %v358, %v491
      %493 = vmatprep.mubr.bf16.mxu0 0
      %494 = vmatmul.mubr.bf16.gmra.mrb[0].mxu0 %v368
      %v495 = vpop.f32.mrb[0].mxu0
      %v496 = vadd.f32 %v362, %v495
      %v497 = vpop.f32.mrb[0].mxu0
      %v498 = vadd.f32 %v364, %v497
      %v499 = vpop.f32.mrb[0].mxu0
      %v500 = vpop.f32.mrb[0].mxu0
      %501 = vdwg.mxu0
      %v502 = vld [vmem:[%s165] sm:$0xe]
      %s503 = scalar_lea.vmem %s1, 256
      %v504 = vld [vmem:[%s503] sm:$0xff]
      %v505 = vld [vmem:[%s503 + $0x8] sm:$0xff]
      %v506 = vld [vmem:[%s503 + $0x10] sm:$0xff]
      %v507 = vld [vmem:[%s503 + $0x18] sm:$0xff]
      %v508 = vld [vmem:[%s503 + $0x20] sm:$0xff]
      %v509 = vld [vmem:[%s503 + $0x28] sm:$0xff]
      %v510 = vld [vmem:[%s503 + $0x30] sm:$0xff]
      %v511 = vld [vmem:[%s503 + $0x38] sm:$0xff]
      %v512 = vld [vmem:[%s503 + $0x40] sm:$0xff]
      %v513 = vld [vmem:[%s503 + $0x48] sm:$0xff]
      %v514 = vld [vmem:[%s503 + $0x50] sm:$0xff]
      %v515 = vld [vmem:[%s503 + $0x58] sm:$0xff]
      %v516 = vld [vmem:[%s503 + $0x60] sm:$0xff]
      %v517 = vld [vmem:[%s503 + $0x68] sm:$0xff]
      %v518 = vld [vmem:[%s503 + $0x70] sm:$0xff]
      %v519 = vld [vmem:[%s503 + $0x78] sm:$0xff]
      %v521 = vunpack.c.l.b16 %v502
      %v522 = vpack.c.b16 %v214, %v521
      %vm523 = vcmask 1046528
      %v524 = vrot.slane %v522, 1
      %v525 = vrot.slane %v218, 1
      %v526 = vsel %vm523, %v524, %v525
      %v545 = vunpack.c.l.b16 %v504
      %v546 = vunpack.c.h.b16 %v504
      %v547 = vunpack.c.l.b16 %v505
      %v548 = vunpack.c.h.b16 %v505
      %v549 = vunpack.c.l.b16 %v506
      %v550 = vunpack.c.h.b16 %v506
      %v551 = vunpack.c.l.b16 %v507
      %v552 = vunpack.c.h.b16 %v507
      %v553 = vunpack.c.l.b16 %v508
      %v554 = vunpack.c.h.b16 %v508
      %v555 = vunpack.c.l.b16 %v509
      %v556 = vunpack.c.h.b16 %v509
      %v557 = vunpack.c.l.b16 %v510
      %v558 = vunpack.c.h.b16 %v510
      %v559 = vunpack.c.l.b16 %v511
      %v560 = vunpack.c.h.b16 %v511
      %v561 = vunpack.c.l.b16 %v512
      %v562 = vunpack.c.h.b16 %v512
      %v563 = vunpack.c.l.b16 %v513
      %v564 = vunpack.c.h.b16 %v513
      %v565 = vunpack.c.l.b16 %v514
      %v566 = vunpack.c.h.b16 %v514
      %v567 = vunpack.c.l.b16 %v515
      %v568 = vunpack.c.h.b16 %v515
      %v569 = vunpack.c.l.b16 %v516
      %v570 = vunpack.c.h.b16 %v516
      %v571 = vunpack.c.l.b16 %v517
      %v572 = vunpack.c.h.b16 %v517
      %v573 = vunpack.c.l.b16 %v518
      %v574 = vunpack.c.h.b16 %v518
      %v575 = vunpack.c.l.b16 %v519
      %v576 = vunpack.c.h.b16 %v519
      %v577 = vpack.c.b16 %v547, %v545
      %v578 = vpack.c.b16 %v548, %v546
      %v579 = vpack.c.b16 %v551, %v549
      %v580 = vpack.c.b16 %v552, %v550
      %v581 = vpack.c.b16 %v555, %v553
      %v582 = vpack.c.b16 %v556, %v554
      %v583 = vpack.c.b16 %v559, %v557
      %v584 = vpack.c.b16 %v560, %v558
      %v585 = vpack.c.b16 %v563, %v561
      %v586 = vpack.c.b16 %v564, %v562
      %v587 = vpack.c.b16 %v567, %v565
      %v588 = vpack.c.b16 %v568, %v566
      %v589 = vpack.c.b16 %v571, %v569
      %v590 = vpack.c.b16 %v572, %v570
      %v591 = vpack.c.b16 %v575, %v573
      %v592 = vpack.c.b16 %v576, %v574
      %609 = vmatprep.subr.bf16.mxu0 %v578
      %610 = vmatpush1.bf16.msra.mxu0 %v577
      %611 = vmatprep.subr.bf16.mxu0 %v580
      %612 = vmatpush1.bf16.msra.mxu0 %v579
      %613 = vmatprep.subr.bf16.mxu0 %v582
      %614 = vmatpush1.bf16.msra.mxu0 %v581
      %615 = vmatprep.subr.bf16.mxu0 %v584
      %616 = vmatpush1.bf16.msra.mxu0 %v583
      %617 = vmatprep.subr.bf16.mxu0 %v586
      %618 = vmatpush1.bf16.msra.mxu0 %v585
      %619 = vmatprep.subr.bf16.mxu0 %v588
      %620 = vmatpush1.bf16.msra.mxu0 %v587
      %621 = vmatprep.subr.bf16.mxu0 %v590
      %622 = vmatpush1.bf16.msra.mxu0 %v589
      %623 = vmatprep.subr.bf16.mxu0 %v592
      %624 = vmatpush1.bf16.msra.mxu0 %v591
      %625 = vmatprep.subr.bf16.mxu0 0
      %626 = vmatpush1.bf16.msra.mxu0 0
      %627 = vmatprep.subr.bf16.mxu0 0
      %628 = vmatpush1.bf16.msra.mxu0 0
      %629 = vmatprep.subr.bf16.mxu0 0
      %630 = vmatpush1.bf16.msra.mxu0 0
      %631 = vmatprep.subr.bf16.mxu0 0
      %632 = vmatpush1.bf16.msra.mxu0 0
      %633 = vmatprep.subr.bf16.mxu0 0
      %634 = vmatpush1.bf16.msra.mxu0 0
      %635 = vmatprep.subr.bf16.mxu0 0
      %636 = vmatpush1.bf16.msra.mxu0 0
      %637 = vmatprep.subr.bf16.mxu0 0
      %638 = vmatpush1.bf16.msra.mxu0 0
      %639 = vmatprep.subr.bf16.mxu0 0
      %640 = vmatpush1.bf16.msra.mxu0 0
      %641 = vmatprep.mubr.bf16.mxu0 0
      %642 = vmatmul.mubr.bf16.gmra.mrb[0].mxu0 %v526
      %v643 = vpop.f32.mrb[0].mxu0
      %v644 = vadd.f32 0.0, %v643
      %v645 = vpop.f32.mrb[0].mxu0
      %v646 = vadd.f32 0.0, %v645
      %v647 = vpop.f32.mrb[0].mxu0
      %v648 = vadd.f32 0.0, %v647
      %v649 = vpop.f32.mrb[0].mxu0
      %v650 = vadd.f32 0.0, %v649
      %651 = vmatprep.mubr.bf16.mxu0 0
      %652 = vmatmul.mubr.bf16.gmra.mrb[0].mxu0 %v525
      %v653 = vpop.f32.mrb[0].mxu0
      %v654 = vadd.f32 0.0, %v653
      %v655 = vpop.f32.mrb[0].mxu0
      %v656 = vadd.f32 0.0, %v655
      %v657 = vpop.f32.mrb[0].mxu0
      %v658 = vpop.f32.mrb[0].mxu0
      %659 = vdwg.mxu0
      %v660 = vadd.f32 %v486, %v644
      %v661 = vadd.f32 %v488, %v646
      %v662 = vadd.f32 %v490, %v648
      %v663 = vadd.f32 %v492, %v650
      %v664 = vadd.f32 %v496, %v654
      %v665 = vadd.f32 %v498, %v656
      %v666 = vld [vmem:[%s165] sm:$0x8]
      %v667 = vld [vmem:[%s165 + $0xc] sm:$0x7]
      %s668 = scalar_lea.vmem %s1, 384
      %v669 = vld [vmem:[%s668] sm:$0xff]
      %v670 = vld [vmem:[%s668 + $0x8] sm:$0xff]
      %v671 = vld [vmem:[%s668 + $0x10] sm:$0xff]
      %v672 = vld [vmem:[%s668 + $0x18] sm:$0xff]
      %v673 = vld [vmem:[%s668 + $0x20] sm:$0xff]
      %v674 = vld [vmem:[%s668 + $0x28] sm:$0xff]
      %v675 = vld [vmem:[%s668 + $0x30] sm:$0xff]
      %v676 = vld [vmem:[%s668 + $0x38] sm:$0xff]
      %v677 = vld [vmem:[%s668 + $0x40] sm:$0xff]
      %v678 = vld [vmem:[%s668 + $0x48] sm:$0xff]
      %v679 = vld [vmem:[%s668 + $0x50] sm:$0xff]
      %v680 = vld [vmem:[%s668 + $0x58] sm:$0xff]
      %v681 = vld [vmem:[%s668 + $0x60] sm:$0xff]
      %v682 = vld [vmem:[%s668 + $0x68] sm:$0xff]
      %v683 = vld [vmem:[%s668 + $0x70] sm:$0xff]
      %v684 = vld [vmem:[%s668 + $0x78] sm:$0xff]
      %v687 = vunpack.c.l.b16 %v666
      %v688 = vunpack.c.l.b16 %v667
      %v689 = vpack.c.b16 %v214, %v687
      %v690 = vpack.c.b16 %v688, %v215
      %vm691 = vcmask 1044480
      %v692 = vrot.slane %v689, 3
      %v693 = vrot.slane %v690, 3
      %v694 = vsel %vm691, %v692, %v693
      %v713 = vunpack.c.l.b16 %v669
      %v714 = vunpack.c.h.b16 %v669
      %v715 = vunpack.c.l.b16 %v670
      %v716 = vunpack.c.h.b16 %v670
      %v717 = vunpack.c.l.b16 %v671
      %v718 = vunpack.c.h.b16 %v671
      %v719 = vunpack.c.l.b16 %v672
      %v720 = vunpack.c.h.b16 %v672
      %v721 = vunpack.c.l.b16 %v673
      %v722 = vunpack.c.h.b16 %v673
      %v723 = vunpack.c.l.b16 %v674
      %v724 = vunpack.c.h.b16 %v674
      %v725 = vunpack.c.l.b16 %v675
      %v726 = vunpack.c.h.b16 %v675
      %v727 = vunpack.c.l.b16 %v676
      %v728 = vunpack.c.h.b16 %v676
      %v729 = vunpack.c.l.b16 %v677
      %v730 = vunpack.c.h.b16 %v677
      %v731 = vunpack.c.l.b16 %v678
      %v732 = vunpack.c.h.b16 %v678
      %v733 = vunpack.c.l.b16 %v679
      %v734 = vunpack.c.h.b16 %v679
      %v735 = vunpack.c.l.b16 %v680
      %v736 = vunpack.c.h.b16 %v680
      %v737 = vunpack.c.l.b16 %v681
      %v738 = vunpack.c.h.b16 %v681
      %v739 = vunpack.c.l.b16 %v682
      %v740 = vunpack.c.h.b16 %v682
      %v741 = vunpack.c.l.b16 %v683
      %v742 = vunpack.c.h.b16 %v683
      %v743 = vunpack.c.l.b16 %v684
      %v744 = vunpack.c.h.b16 %v684
      %v745 = vpack.c.b16 %v715, %v713
      %v746 = vpack.c.b16 %v716, %v714
      %v747 = vpack.c.b16 %v719, %v717
      %v748 = vpack.c.b16 %v720, %v718
      %v749 = vpack.c.b16 %v723, %v721
      %v750 = vpack.c.b16 %v724, %v722
      %v751 = vpack.c.b16 %v727, %v725
      %v752 = vpack.c.b16 %v728, %v726
      %v753 = vpack.c.b16 %v731, %v729
      %v754 = vpack.c.b16 %v732, %v730
      %v755 = vpack.c.b16 %v735, %v733
      %v756 = vpack.c.b16 %v736, %v734
      %v757 = vpack.c.b16 %v739, %v737
      %v758 = vpack.c.b16 %v740, %v738
      %v759 = vpack.c.b16 %v743, %v741
      %v760 = vpack.c.b16 %v744, %v742
      %777 = vmatprep.subr.bf16.mxu0 %v746
      %778 = vmatpush1.bf16.msra.mxu0 %v745
      %779 = vmatprep.subr.bf16.mxu0 %v748
      %780 = vmatpush1.bf16.msra.mxu0 %v747
      %781 = vmatprep.subr.bf16.mxu0 %v750
      %782 = vmatpush1.bf16.msra.mxu0 %v749
      %783 = vmatprep.subr.bf16.mxu0 %v752
      %784 = vmatpush1.bf16.msra.mxu0 %v751
      %785 = vmatprep.subr.bf16.mxu0 %v754
      %786 = vmatpush1.bf16.msra.mxu0 %v753
      %787 = vmatprep.subr.bf16.mxu0 %v756
      %788 = vmatpush1.bf16.msra.mxu0 %v755
      %789 = vmatprep.subr.bf16.mxu0 %v758
      %790 = vmatpush1.bf16.msra.mxu0 %v757
      %791 = vmatprep.subr.bf16.mxu0 %v760
      %792 = vmatpush1.bf16.msra.mxu0 %v759
      %793 = vmatprep.subr.bf16.mxu0 0
      %794 = vmatpush1.bf16.msra.mxu0 0
      %795 = vmatprep.subr.bf16.mxu0 0
      %796 = vmatpush1.bf16.msra.mxu0 0
      %797 = vmatprep.subr.bf16.mxu0 0
      %798 = vmatpush1.bf16.msra.mxu0 0
      %799 = vmatprep.subr.bf16.mxu0 0
      %800 = vmatpush1.bf16.msra.mxu0 0
      %801 = vmatprep.subr.bf16.mxu0 0
      %802 = vmatpush1.bf16.msra.mxu0 0
      %803 = vmatprep.subr.bf16.mxu0 0
      %804 = vmatpush1.bf16.msra.mxu0 0
      %805 = vmatprep.subr.bf16.mxu0 0
      %806 = vmatpush1.bf16.msra.mxu0 0
      %807 = vmatprep.subr.bf16.mxu0 0
      %808 = vmatpush1.bf16.msra.mxu0 0
      %809 = vmatprep.mubr.bf16.mxu0 0
      %810 = vmatmul.mubr.bf16.gmra.mrb[0].mxu0 %v694
      %v811 = vpop.f32.mrb[0].mxu0
      %v812 = vadd.f32 0.0, %v811
      %v813 = vpop.f32.mrb[0].mxu0
      %v814 = vadd.f32 0.0, %v813
      %v815 = vpop.f32.mrb[0].mxu0
      %v816 = vadd.f32 0.0, %v815
      %v817 = vpop.f32.mrb[0].mxu0
      %v818 = vadd.f32 0.0, %v817
      %819 = vmatprep.mubr.bf16.mxu0 0
      %820 = vmatmul.mubr.bf16.gmra.mrb[0].mxu0 %v693
      %v821 = vpop.f32.mrb[0].mxu0
      %v822 = vadd.f32 0.0, %v821
      %v823 = vpop.f32.mrb[0].mxu0
      %v824 = vadd.f32 0.0, %v823
      %v825 = vpop.f32.mrb[0].mxu0
      %v826 = vpop.f32.mrb[0].mxu0
      %827 = vdwg.mxu0
      %v828 = vadd.f32 %v660, %v812
      %v829 = vadd.f32 %v661, %v814
      %v830 = vadd.f32 %v662, %v816
      %v831 = vadd.f32 %v663, %v818
      %v832 = vadd.f32 %v664, %v822
      %v833 = vadd.f32 %v665, %v824
      %v834 = vld [vmem:[%s165 + $0xc] sm:$0xf]
      %s835 = scalar_lea.vmem %s1, 512
      %v836 = vld [vmem:[%s835] sm:$0xff]
      %v837 = vld [vmem:[%s835 + $0x8] sm:$0xff]
      %v838 = vld [vmem:[%s835 + $0x10] sm:$0xff]
      %v839 = vld [vmem:[%s835 + $0x18] sm:$0xff]
      %v840 = vld [vmem:[%s835 + $0x20] sm:$0xff]
      %v841 = vld [vmem:[%s835 + $0x28] sm:$0xff]
      %v842 = vld [vmem:[%s835 + $0x30] sm:$0xff]
      %v843 = vld [vmem:[%s835 + $0x38] sm:$0xff]
      %v844 = vld [vmem:[%s835 + $0x40] sm:$0xff]
      %v845 = vld [vmem:[%s835 + $0x48] sm:$0xff]
      %v846 = vld [vmem:[%s835 + $0x50] sm:$0xff]
      %v847 = vld [vmem:[%s835 + $0x58] sm:$0xff]
      %v848 = vld [vmem:[%s835 + $0x60] sm:$0xff]
      %v849 = vld [vmem:[%s835 + $0x68] sm:$0xff]
      %v850 = vld [vmem:[%s835 + $0x70] sm:$0xff]
      %v851 = vld [vmem:[%s835 + $0x78] sm:$0xff]
      %v853 = vunpack.c.l.b16 %v834
      %v854 = vpack.c.b16 %v853, %v215
      %vm855 = vsmask.f32 4352
      %v857 = vshrl.u32 %v689, 16
      %v859 = vrot.slane %v857, 3
      %v860 = vshll.u32 %v689, 16
      %v862 = vrot.slane %v860, 4
      %v863 = vor.u32 %v859, %v862
      %v865 = vshrl.u32 %v854, 16
      %v867 = vrot.slane %v865, 3
      %v868 = vshll.u32 %v854, 16
      %v870 = vrot.slane %v868, 4
      %v871 = vor.u32 %v867, %v870
      %v872 = vsel %vm855, %v863, %v871
      %v891 = vunpack.c.l.b16 %v836
      %v892 = vunpack.c.h.b16 %v836
      %v893 = vunpack.c.l.b16 %v837
      %v894 = vunpack.c.h.b16 %v837
      %v895 = vunpack.c.l.b16 %v838
      %v896 = vunpack.c.h.b16 %v838
      %v897 = vunpack.c.l.b16 %v839
      %v898 = vunpack.c.h.b16 %v839
      %v899 = vunpack.c.l.b16 %v840
      %v900 = vunpack.c.h.b16 %v840
      %v901 = vunpack.c.l.b16 %v841
      %v902 = vunpack.c.h.b16 %v841
      %v903 = vunpack.c.l.b16 %v842
      %v904 = vunpack.c.h.b16 %v842
      %v905 = vunpack.c.l.b16 %v843
      %v906 = vunpack.c.h.b16 %v843
      %v907 = vunpack.c.l.b16 %v844
      %v908 = vunpack.c.h.b16 %v844
      %v909 = vunpack.c.l.b16 %v845
      %v910 = vunpack.c.h.b16 %v845
      %v911 = vunpack.c.l.b16 %v846
      %v912 = vunpack.c.h.b16 %v846
      %v913 = vunpack.c.l.b16 %v847
      %v914 = vunpack.c.h.b16 %v847
      %v915 = vunpack.c.l.b16 %v848
      %v916 = vunpack.c.h.b16 %v848
      %v917 = vunpack.c.l.b16 %v849
      %v918 = vunpack.c.h.b16 %v849
      %v919 = vunpack.c.l.b16 %v850
      %v920 = vunpack.c.h.b16 %v850
      %v921 = vunpack.c.l.b16 %v851
      %v922 = vunpack.c.h.b16 %v851
      %v923 = vpack.c.b16 %v893, %v891
      %v924 = vpack.c.b16 %v894, %v892
      %v925 = vpack.c.b16 %v897, %v895
      %v926 = vpack.c.b16 %v898, %v896
      %v927 = vpack.c.b16 %v901, %v899
      %v928 = vpack.c.b16 %v902, %v900
      %v929 = vpack.c.b16 %v905, %v903
      %v930 = vpack.c.b16 %v906, %v904
      %v931 = vpack.c.b16 %v909, %v907
      %v932 = vpack.c.b16 %v910, %v908
      %v933 = vpack.c.b16 %v913, %v911
      %v934 = vpack.c.b16 %v914, %v912
      %v935 = vpack.c.b16 %v917, %v915
      %v936 = vpack.c.b16 %v918, %v916
      %v937 = vpack.c.b16 %v921, %v919
      %v938 = vpack.c.b16 %v922, %v920
      %955 = vmatprep.subr.bf16.mxu0 %v924
      %956 = vmatpush1.bf16.msra.mxu0 %v923
      %957 = vmatprep.subr.bf16.mxu0 %v926
      %958 = vmatpush1.bf16.msra.mxu0 %v925
      %959 = vmatprep.subr.bf16.mxu0 %v928
      %960 = vmatpush1.bf16.msra.mxu0 %v927
      %961 = vmatprep.subr.bf16.mxu0 %v930
      %962 = vmatpush1.bf16.msra.mxu0 %v929
      %963 = vmatprep.subr.bf16.mxu0 %v932
      %964 = vmatpush1.bf16.msra.mxu0 %v931
      %965 = vmatprep.subr.bf16.mxu0 %v934
      %966 = vmatpush1.bf16.msra.mxu0 %v933
      %967 = vmatprep.subr.bf16.mxu0 %v936
      %968 = vmatpush1.bf16.msra.mxu0 %v935
      %969 = vmatprep.subr.bf16.mxu0 %v938
      %970 = vmatpush1.bf16.msra.mxu0 %v937
      %971 = vmatprep.subr.bf16.mxu0 0
      %972 = vmatpush1.bf16.msra.mxu0 0
      %973 = vmatprep.subr.bf16.mxu0 0
      %974 = vmatpush1.bf16.msra.mxu0 0
      %975 = vmatprep.subr.bf16.mxu0 0
      %976 = vmatpush1.bf16.msra.mxu0 0
      %977 = vmatprep.subr.bf16.mxu0 0
      %978 = vmatpush1.bf16.msra.mxu0 0
      %979 = vmatprep.subr.bf16.mxu0 0
      %980 = vmatpush1.bf16.msra.mxu0 0
      %981 = vmatprep.subr.bf16.mxu0 0
      %982 = vmatpush1.bf16.msra.mxu0 0
      %983 = vmatprep.subr.bf16.mxu0 0
      %984 = vmatpush1.bf16.msra.mxu0 0
      %985 = vmatprep.subr.bf16.mxu0 0
      %986 = vmatpush1.bf16.msra.mxu0 0
      %987 = vmatprep.mubr.bf16.mxu0 0
      %988 = vmatmul.mubr.bf16.gmra.mrb[0].mxu0 %v872
      %v989 = vpop.f32.mrb[0].mxu0
      %v990 = vadd.f32 0.0, %v989
      %v991 = vpop.f32.mrb[0].mxu0
      %v992 = vadd.f32 0.0, %v991
      %v993 = vpop.f32.mrb[0].mxu0
      %v994 = vadd.f32 0.0, %v993
      %v995 = vpop.f32.mrb[0].mxu0
      %v996 = vadd.f32 0.0, %v995
      %997 = vmatprep.mubr.bf16.mxu0 0
      %998 = vmatmul.mubr.bf16.gmra.mrb[0].mxu0 %v871
      %v999 = vpop.f32.mrb[0].mxu0
      %v1000 = vadd.f32 0.0, %v999
      %v1001 = vpop.f32.mrb[0].mxu0
      %v1002 = vadd.f32 0.0, %v1001
      %v1003 = vpop.f32.mrb[0].mxu0
      %v1004 = vpop.f32.mrb[0].mxu0
      %1005 = vdwg.mxu0
      %v1006 = vadd.f32 %v828, %v990
      %v1007 = vadd.f32 %v829, %v992
      %v1008 = vadd.f32 %v830, %v994
      %v1009 = vadd.f32 %v831, %v996
      %v1010 = vadd.f32 %v832, %v1000
      %v1011 = vadd.f32 %v833, %v1002
      %s1012 = scalar_lea.vmem %s1, 640
      %v1013 = vld [vmem:[%s1012] sm:$0xff]
      %v1014 = vld [vmem:[%s1012 + $0x8] sm:$0xff]
      %v1015 = vld [vmem:[%s1012 + $0x10] sm:$0xff]
      %v1016 = vld [vmem:[%s1012 + $0x18] sm:$0xff]
      %v1017 = vld [vmem:[%s1012 + $0x20] sm:$0xff]
      %v1018 = vld [vmem:[%s1012 + $0x28] sm:$0xff]
      %v1019 = vld [vmem:[%s1012 + $0x30] sm:$0xff]
      %v1020 = vld [vmem:[%s1012 + $0x38] sm:$0xff]
      %v1021 = vld [vmem:[%s1012 + $0x40] sm:$0xff]
      %v1022 = vld [vmem:[%s1012 + $0x48] sm:$0xff]
      %v1023 = vld [vmem:[%s1012 + $0x50] sm:$0xff]
      %v1024 = vld [vmem:[%s1012 + $0x58] sm:$0xff]
      %v1025 = vld [vmem:[%s1012 + $0x60] sm:$0xff]
      %v1026 = vld [vmem:[%s1012 + $0x68] sm:$0xff]
      %v1027 = vld [vmem:[%s1012 + $0x70] sm:$0xff]
      %v1028 = vld [vmem:[%s1012 + $0x78] sm:$0xff]
      %v1029 = vpack.c.b16 %v215, %v214
      %v1030 = vpack.c.b16 %v853, %v853
      %v1049 = vunpack.c.l.b16 %v1013
      %v1050 = vunpack.c.h.b16 %v1013
      %v1051 = vunpack.c.l.b16 %v1014
      %v1052 = vunpack.c.h.b16 %v1014
      %v1053 = vunpack.c.l.b16 %v1015
      %v1054 = vunpack.c.h.b16 %v1015
      %v1055 = vunpack.c.l.b16 %v1016
      %v1056 = vunpack.c.h.b16 %v1016
      %v1057 = vunpack.c.l.b16 %v1017
      %v1058 = vunpack.c.h.b16 %v1017
      %v1059 = vunpack.c.l.b16 %v1018
      %v1060 = vunpack.c.h.b16 %v1018
      %v1061 = vunpack.c.l.b16 %v1019
      %v1062 = vunpack.c.h.b16 %v1019
      %v1063 = vunpack.c.l.b16 %v1020
      %v1064 = vunpack.c.h.b16 %v1020
      %v1065 = vunpack.c.l.b16 %v1021
      %v1066 = vunpack.c.h.b16 %v1021
      %v1067 = vunpack.c.l.b16 %v1022
      %v1068 = vunpack.c.h.b16 %v1022
      %v1069 = vunpack.c.l.b16 %v1023
      %v1070 = vunpack.c.h.b16 %v1023
      %v1071 = vunpack.c.l.b16 %v1024
      %v1072 = vunpack.c.h.b16 %v1024
      %v1073 = vunpack.c.l.b16 %v1025
      %v1074 = vunpack.c.h.b16 %v1025
      %v1075 = vunpack.c.l.b16 %v1026
      %v1076 = vunpack.c.h.b16 %v1026
      %v1077 = vunpack.c.l.b16 %v1027
      %v1078 = vunpack.c.h.b16 %v1027
      %v1079 = vunpack.c.l.b16 %v1028
      %v1080 = vunpack.c.h.b16 %v1028
      %v1081 = vpack.c.b16 %v1051, %v1049
      %v1082 = vpack.c.b16 %v1052, %v1050
      %v1083 = vpack.c.b16 %v1055, %v1053
      %v1084 = vpack.c.b16 %v1056, %v1054
      %v1085 = vpack.c.b16 %v1059, %v1057
      %v1086 = vpack.c.b16 %v1060, %v1058
      %v1087 = vpack.c.b16 %v1063, %v1061
      %v1088 = vpack.c.b16 %v1064, %v1062
      %v1089 = vpack.c.b16 %v1067, %v1065
      %v1090 = vpack.c.b16 %v1068, %v1066
      %v1091 = vpack.c.b16 %v1071, %v1069
      %v1092 = vpack.c.b16 %v1072, %v1070
      %v1093 = vpack.c.b16 %v1075, %v1073
      %v1094 = vpack.c.b16 %v1076, %v1074
      %v1095 = vpack.c.b16 %v1079, %v1077
      %v1096 = vpack.c.b16 %v1080, %v1078
      %1113 = vmatprep.subr.bf16.mxu0 %v1082
      %1114 = vmatpush1.bf16.msra.mxu0 %v1081
      %1115 = vmatprep.subr.bf16.mxu0 %v1084
      %1116 = vmatpush1.bf16.msra.mxu0 %v1083
      %1117 = vmatprep.subr.bf16.mxu0 %v1086
      %1118 = vmatpush1.bf16.msra.mxu0 %v1085
      %1119 = vmatprep.subr.bf16.mxu0 %v1088
      %1120 = vmatpush1.bf16.msra.mxu0 %v1087
      %1121 = vmatprep.subr.bf16.mxu0 %v1090
      %1122 = vmatpush1.bf16.msra.mxu0 %v1089
      %1123 = vmatprep.subr.bf16.mxu0 %v1092
      %1124 = vmatpush1.bf16.msra.mxu0 %v1091
      %1125 = vmatprep.subr.bf16.mxu0 %v1094
      %1126 = vmatpush1.bf16.msra.mxu0 %v1093
      %1127 = vmatprep.subr.bf16.mxu0 %v1096
      %1128 = vmatpush1.bf16.msra.mxu0 %v1095
      %1129 = vmatprep.subr.bf16.mxu0 0
      %1130 = vmatpush1.bf16.msra.mxu0 0
      %1131 = vmatprep.subr.bf16.mxu0 0
      %1132 = vmatpush1.bf16.msra.mxu0 0
      %1133 = vmatprep.subr.bf16.mxu0 0
      %1134 = vmatpush1.bf16.msra.mxu0 0
      %1135 = vmatprep.subr.bf16.mxu0 0
      %1136 = vmatpush1.bf16.msra.mxu0 0
      %1137 = vmatprep.subr.bf16.mxu0 0
      %1138 = vmatpush1.bf16.msra.mxu0 0
      %1139 = vmatprep.subr.bf16.mxu0 0
      %1140 = vmatpush1.bf16.msra.mxu0 0
      %1141 = vmatprep.subr.bf16.mxu0 0
      %1142 = vmatpush1.bf16.msra.mxu0 0
      %1143 = vmatprep.subr.bf16.mxu0 0
      %1144 = vmatpush1.bf16.msra.mxu0 0
      %1145 = vmatprep.mubr.bf16.mxu0 0
      %1146 = vmatmul.mubr.bf16.gmra.mrb[0].mxu0 %v1029
      %v1147 = vpop.f32.mrb[0].mxu0
      %v1148 = vadd.f32 0.0, %v1147
      %v1149 = vpop.f32.mrb[0].mxu0
      %v1150 = vadd.f32 0.0, %v1149
      %v1151 = vpop.f32.mrb[0].mxu0
      %v1152 = vadd.f32 0.0, %v1151
      %v1153 = vpop.f32.mrb[0].mxu0
      %v1154 = vadd.f32 0.0, %v1153
      %1155 = vmatprep.mubr.bf16.mxu0 0
      %1156 = vmatmul.mubr.bf16.gmra.mrb[0].mxu0 %v1030
      %v1157 = vpop.f32.mrb[0].mxu0
      %v1158 = vadd.f32 0.0, %v1157
      %v1159 = vpop.f32.mrb[0].mxu0
      %v1160 = vadd.f32 0.0, %v1159
      %v1161 = vpop.f32.mrb[0].mxu0
      %v1162 = vpop.f32.mrb[0].mxu0
      %1163 = vdwg.mxu0
      %v1164 = vadd.f32 %v1006, %v1148
      %v1165 = vadd.f32 %v1007, %v1150
      %v1166 = vadd.f32 %v1008, %v1152
      %v1167 = vadd.f32 %v1009, %v1154
      %v1168 = vadd.f32 %v1010, %v1158
      %v1169 = vadd.f32 %v1011, %v1160
      %v1170 = vld [vmem:[%s165 + $0x4] sm:$0xc]
      %v1171 = vld [vmem:[%s165 + $0x8] sm:$0xf]
      %v1172 = vld [vmem:[%s165 + $0xc] sm:$0xf]
      %v1173 = vld [vmem:[%s165 + $0x10] sm:$0x3]
      %s1174 = scalar_lea.vmem %s1, 768
      %v1175 = vld [vmem:[%s1174] sm:$0xff]
      %v1176 = vld [vmem:[%s1174 + $0x8] sm:$0xff]
      %v1177 = vld [vmem:[%s1174 + $0x10] sm:$0xff]
      %v1178 = vld [vmem:[%s1174 + $0x18] sm:$0xff]
      %v1179 = vld [vmem:[%s1174 + $0x20] sm:$0xff]
      %v1180 = vld [vmem:[%s1174 + $0x28] sm:$0xff]
      %v1181 = vld [vmem:[%s1174 + $0x30] sm:$0xff]
      %v1182 = vld [vmem:[%s1174 + $0x38] sm:$0xff]
      %v1183 = vld [vmem:[%s1174 + $0x40] sm:$0xff]
      %v1184 = vld [vmem:[%s1174 + $0x48] sm:$0xff]
      %v1185 = vld [vmem:[%s1174 + $0x50] sm:$0xff]
      %v1186 = vld [vmem:[%s1174 + $0x58] sm:$0xff]
      %v1187 = vld [vmem:[%s1174 + $0x60] sm:$0xff]
      %v1188 = vld [vmem:[%s1174 + $0x68] sm:$0xff]
      %v1189 = vld [vmem:[%s1174 + $0x70] sm:$0xff]
      %v1190 = vld [vmem:[%s1174 + $0x78] sm:$0xff]
      %v1195 = vunpack.c.l.b16 %v1170
      %v1196 = vunpack.c.l.b16 %v1171
      %v1197 = vunpack.c.l.b16 %v1172
      %v1198 = vunpack.c.l.b16 %v1173
      %v1199 = vpack.c.b16 %v1196, %v1195
      %v1200 = vpack.c.b16 %v1198, %v1197
      %vm1201 = vcmask 1045504
      %v1202 = vrot.slane %v1199, 2
      %v1203 = vrot.slane %v1200, 2
      %v1204 = vsel %vm1201, %v1202, %v1203
      %v1223 = vunpack.c.l.b16 %v1175
      %v1224 = vunpack.c.h.b16 %v1175
      %v1225 = vunpack.c.l.b16 %v1176
      %v1226 = vunpack.c.h.b16 %v1176
      %v1227 = vunpack.c.l.b16 %v1177
      %v1228 = vunpack.c.h.b16 %v1177
      %v1229 = vunpack.c.l.b16 %v1178
      %v1230 = vunpack.c.h.b16 %v1178
      %v1231 = vunpack.c.l.b16 %v1179
      %v1232 = vunpack.c.h.b16 %v1179
      %v1233 = vunpack.c.l.b16 %v1180
      %v1234 = vunpack.c.h.b16 %v1180
      %v1235 = vunpack.c.l.b16 %v1181
      %v1236 = vunpack.c.h.b16 %v1181
      %v1237 = vunpack.c.l.b16 %v1182
      %v1238 = vunpack.c.h.b16 %v1182
      %v1239 = vunpack.c.l.b16 %v1183
      %v1240 = vunpack.c.h.b16 %v1183
      %v1241 = vunpack.c.l.b16 %v1184
      %v1242 = vunpack.c.h.b16 %v1184
      %v1243 = vunpack.c.l.b16 %v1185
      %v1244 = vunpack.c.h.b16 %v1185
      %v1245 = vunpack.c.l.b16 %v1186
      %v1246 = vunpack.c.h.b16 %v1186
      %v1247 = vunpack.c.l.b16 %v1187
      %v1248 = vunpack.c.h.b16 %v1187
      %v1249 = vunpack.c.l.b16 %v1188
      %v1250 = vunpack.c.h.b16 %v1188
      %v1251 = vunpack.c.l.b16 %v1189
      %v1252 = vunpack.c.h.b16 %v1189
      %v1253 = vunpack.c.l.b16 %v1190
      %v1254 = vunpack.c.h.b16 %v1190
      %v1255 = vpack.c.b16 %v1225, %v1223
      %v1256 = vpack.c.b16 %v1226, %v1224
      %v1257 = vpack.c.b16 %v1229, %v1227
      %v1258 = vpack.c.b16 %v1230, %v1228
      %v1259 = vpack.c.b16 %v1233, %v1231
      %v1260 = vpack.c.b16 %v1234, %v1232
      %v1261 = vpack.c.b16 %v1237, %v1235
      %v1262 = vpack.c.b16 %v1238, %v1236
      %v1263 = vpack.c.b16 %v1241, %v1239
      %v1264 = vpack.c.b16 %v1242, %v1240
      %v1265 = vpack.c.b16 %v1245, %v1243
      %v1266 = vpack.c.b16 %v1246, %v1244
      %v1267 = vpack.c.b16 %v1249, %v1247
      %v1268 = vpack.c.b16 %v1250, %v1248
      %v1269 = vpack.c.b16 %v1253, %v1251
      %v1270 = vpack.c.b16 %v1254, %v1252
      %1287 = vmatprep.subr.bf16.mxu0 %v1256
      %1288 = vmatpush1.bf16.msra.mxu0 %v1255
      %1289 = vmatprep.subr.bf16.mxu0 %v1258
      %1290 = vmatpush1.bf16.msra.mxu0 %v1257
      %1291 = vmatprep.subr.bf16.mxu0 %v1260
      %1292 = vmatpush1.bf16.msra.mxu0 %v1259
      %1293 = vmatprep.subr.bf16.mxu0 %v1262
      %1294 = vmatpush1.bf16.msra.mxu0 %v1261
      %1295 = vmatprep.subr.bf16.mxu0 %v1264
      %1296 = vmatpush1.bf16.msra.mxu0 %v1263
      %1297 = vmatprep.subr.bf16.mxu0 %v1266
      %1298 = vmatpush1.bf16.msra.mxu0 %v1265
      %1299 = vmatprep.subr.bf16.mxu0 %v1268
      %1300 = vmatpush1.bf16.msra.mxu0 %v1267
      %1301 = vmatprep.subr.bf16.mxu0 %v1270
      %1302 = vmatpush1.bf16.msra.mxu0 %v1269
      %1303 = vmatprep.subr.bf16.mxu0 0
      %1304 = vmatpush1.bf16.msra.mxu0 0
      %1305 = vmatprep.subr.bf16.mxu0 0
      %1306 = vmatpush1.bf16.msra.mxu0 0
      %1307 = vmatprep.subr.bf16.mxu0 0
      %1308 = vmatpush1.bf16.msra.mxu0 0
      %1309 = vmatprep.subr.bf16.mxu0 0
      %1310 = vmatpush1.bf16.msra.mxu0 0
      %1311 = vmatprep.subr.bf16.mxu0 0
      %1312 = vmatpush1.bf16.msra.mxu0 0
      %1313 = vmatprep.subr.bf16.mxu0 0
      %1314 = vmatpush1.bf16.msra.mxu0 0
      %1315 = vmatprep.subr.bf16.mxu0 0
      %1316 = vmatpush1.bf16.msra.mxu0 0
      %1317 = vmatprep.subr.bf16.mxu0 0
      %1318 = vmatpush1.bf16.msra.mxu0 0
      %1319 = vmatprep.mubr.bf16.mxu0 0
      %1320 = vmatmul.mubr.bf16.gmra.mrb[0].mxu0 %v1204
      %v1321 = vpop.f32.mrb[0].mxu0
      %v1322 = vadd.f32 0.0, %v1321
      %v1323 = vpop.f32.mrb[0].mxu0
      %v1324 = vadd.f32 0.0, %v1323
      %v1325 = vpop.f32.mrb[0].mxu0
      %v1326 = vadd.f32 0.0, %v1325
      %v1327 = vpop.f32.mrb[0].mxu0
      %v1328 = vadd.f32 0.0, %v1327
      %1329 = vmatprep.mubr.bf16.mxu0 0
      %1330 = vmatmul.mubr.bf16.gmra.mrb[0].mxu0 %v1203
      %v1331 = vpop.f32.mrb[0].mxu0
      %v1332 = vadd.f32 0.0, %v1331
      %v1333 = vpop.f32.mrb[0].mxu0
      %v1334 = vadd.f32 0.0, %v1333
      %v1335 = vpop.f32.mrb[0].mxu0
      %v1336 = vpop.f32.mrb[0].mxu0
      %1337 = vdwg.mxu0
      %v1338 = vadd.f32 %v1164, %v1322
      %v1339 = vadd.f32 %v1165, %v1324
      %v1340 = vadd.f32 %v1166, %v1326
      %v1341 = vadd.f32 %v1167, %v1328
      %v1342 = vadd.f32 %v1168, %v1332
      %v1343 = vadd.f32 %v1169, %v1334
      %v1344 = vld [vmem:[%s165 + $0x10] sm:$0x7]
      %s1345 = scalar_lea.vmem %s1, 896
      %v1346 = vld [vmem:[%s1345] sm:$0xff]
      %v1347 = vld [vmem:[%s1345 + $0x8] sm:$0xff]
      %v1348 = vld [vmem:[%s1345 + $0x10] sm:$0xff]
      %v1349 = vld [vmem:[%s1345 + $0x18] sm:$0xff]
      %v1350 = vld [vmem:[%s1345 + $0x20] sm:$0xff]
      %v1351 = vld [vmem:[%s1345 + $0x28] sm:$0xff]
      %v1352 = vld [vmem:[%s1345 + $0x30] sm:$0xff]
      %v1353 = vld [vmem:[%s1345 + $0x38] sm:$0xff]
      %v1354 = vld [vmem:[%s1345 + $0x40] sm:$0xff]
      %v1355 = vld [vmem:[%s1345 + $0x48] sm:$0xff]
      %v1356 = vld [vmem:[%s1345 + $0x50] sm:$0xff]
      %v1357 = vld [vmem:[%s1345 + $0x58] sm:$0xff]
      %v1358 = vld [vmem:[%s1345 + $0x60] sm:$0xff]
      %v1359 = vld [vmem:[%s1345 + $0x68] sm:$0xff]
      %v1360 = vld [vmem:[%s1345 + $0x70] sm:$0xff]
      %v1361 = vld [vmem:[%s1345 + $0x78] sm:$0xff]
      %v1363 = vunpack.c.l.b16 %v1344
      %v1364 = vpack.c.b16 %v1363, %v1197
      %vm1365 = vsmask.f32 5376
      %v1367 = vshrl.u32 %v1199, 16
      %v1369 = vrot.slane %v1367, 2
      %v1370 = vshll.u32 %v1199, 16
      %v1372 = vrot.slane %v1370, 3
      %v1373 = vor.u32 %v1369, %v1372
      %v1375 = vshrl.u32 %v1364, 16
      %v1377 = vrot.slane %v1375, 2
      %v1378 = vshll.u32 %v1364, 16
      %v1380 = vrot.slane %v1378, 3
      %v1381 = vor.u32 %v1377, %v1380
      %v1382 = vsel %vm1365, %v1373, %v1381
      %v1401 = vunpack.c.l.b16 %v1346
      %v1402 = vunpack.c.h.b16 %v1346
      %v1403 = vunpack.c.l.b16 %v1347
      %v1404 = vunpack.c.h.b16 %v1347
      %v1405 = vunpack.c.l.b16 %v1348
      %v1406 = vunpack.c.h.b16 %v1348
      %v1407 = vunpack.c.l.b16 %v1349
      %v1408 = vunpack.c.h.b16 %v1349
      %v1409 = vunpack.c.l.b16 %v1350
      %v1410 = vunpack.c.h.b16 %v1350
      %v1411 = vunpack.c.l.b16 %v1351
      %v1412 = vunpack.c.h.b16 %v1351
      %v1413 = vunpack.c.l.b16 %v1352
      %v1414 = vunpack.c.h.b16 %v1352
      %v1415 = vunpack.c.l.b16 %v1353
      %v1416 = vunpack.c.h.b16 %v1353
      %v1417 = vunpack.c.l.b16 %v1354
      %v1418 = vunpack.c.h.b16 %v1354
      %v1419 = vunpack.c.l.b16 %v1355
      %v1420 = vunpack.c.h.b16 %v1355
      %v1421 = vunpack.c.l.b16 %v1356
      %v1422 = vunpack.c.h.b16 %v1356
      %v1423 = vunpack.c.l.b16 %v1357
      %v1424 = vunpack.c.h.b16 %v1357
      %v1425 = vunpack.c.l.b16 %v1358
      %v1426 = vunpack.c.h.b16 %v1358
      %v1427 = vunpack.c.l.b16 %v1359
      %v1428 = vunpack.c.h.b16 %v1359
      %v1429 = vunpack.c.l.b16 %v1360
      %v1430 = vunpack.c.h.b16 %v1360
      %v1431 = vunpack.c.l.b16 %v1361
      %v1432 = vunpack.c.h.b16 %v1361
      %v1433 = vpack.c.b16 %v1403, %v1401
      %v1434 = vpack.c.b16 %v1404, %v1402
      %v1435 = vpack.c.b16 %v1407, %v1405
      %v1436 = vpack.c.b16 %v1408, %v1406
      %v1437 = vpack.c.b16 %v1411, %v1409
      %v1438 = vpack.c.b16 %v1412, %v1410
      %v1439 = vpack.c.b16 %v1415, %v1413
      %v1440 = vpack.c.b16 %v1416, %v1414
      %v1441 = vpack.c.b16 %v1419, %v1417
      %v1442 = vpack.c.b16 %v1420, %v1418
      %v1443 = vpack.c.b16 %v1423, %v1421
      %v1444 = vpack.c.b16 %v1424, %v1422
      %v1445 = vpack.c.b16 %v1427, %v1425
      %v1446 = vpack.c.b16 %v1428, %v1426
      %v1447 = vpack.c.b16 %v1431, %v1429
      %v1448 = vpack.c.b16 %v1432, %v1430
      %1465 = vmatprep.subr.bf16.mxu0 %v1434
      %1466 = vmatpush1.bf16.msra.mxu0 %v1433
      %1467 = vmatprep.subr.bf16.mxu0 %v1436
      %1468 = vmatpush1.bf16.msra.mxu0 %v1435
      %1469 = vmatprep.subr.bf16.mxu0 %v1438
      %1470 = vmatpush1.bf16.msra.mxu0 %v1437
      %1471 = vmatprep.subr.bf16.mxu0 %v1440
      %1472 = vmatpush1.bf16.msra.mxu0 %v1439
      %1473 = vmatprep.subr.bf16.mxu0 %v1442
      %1474 = vmatpush1.bf16.msra.mxu0 %v1441
      %1475 = vmatprep.subr.bf16.mxu0 %v1444
      %1476 = vmatpush1.bf16.msra.mxu0 %v1443
      %1477 = vmatprep.subr.bf16.mxu0 %v1446
      %1478 = vmatpush1.bf16.msra.mxu0 %v1445
      %1479 = vmatprep.subr.bf16.mxu0 %v1448
      %1480 = vmatpush1.bf16.msra.mxu0 %v1447
      %1481 = vmatprep.subr.bf16.mxu0 0
      %1482 = vmatpush1.bf16.msra.mxu0 0
      %1483 = vmatprep.subr.bf16.mxu0 0
      %1484 = vmatpush1.bf16.msra.mxu0 0
      %1485 = vmatprep.subr.bf16.mxu0 0
      %1486 = vmatpush1.bf16.msra.mxu0 0
      %1487 = vmatprep.subr.bf16.mxu0 0
      %1488 = vmatpush1.bf16.msra.mxu0 0
      %1489 = vmatprep.subr.bf16.mxu0 0
      %1490 = vmatpush1.bf16.msra.mxu0 0
      %1491 = vmatprep.subr.bf16.mxu0 0
      %1492 = vmatpush1.bf16.msra.mxu0 0
      %1493 = vmatprep.subr.bf16.mxu0 0
      %1494 = vmatpush1.bf16.msra.mxu0 0
      %1495 = vmatprep.subr.bf16.mxu0 0
      %1496 = vmatpush1.bf16.msra.mxu0 0
      %1497 = vmatprep.mubr.bf16.mxu0 0
      %1498 = vmatmul.mubr.bf16.gmra.mrb[0].mxu0 %v1382
      %v1499 = vpop.f32.mrb[0].mxu0
      %v1500 = vadd.f32 0.0, %v1499
      %v1501 = vpop.f32.mrb[0].mxu0
      %v1502 = vadd.f32 0.0, %v1501
      %v1503 = vpop.f32.mrb[0].mxu0
      %v1504 = vadd.f32 0.0, %v1503
      %v1505 = vpop.f32.mrb[0].mxu0
      %v1506 = vadd.f32 0.0, %v1505
      %1507 = vmatprep.mubr.bf16.mxu0 0
      %1508 = vmatmul.mubr.bf16.gmra.mrb[0].mxu0 %v1381
      %v1509 = vpop.f32.mrb[0].mxu0
      %v1510 = vadd.f32 0.0, %v1509
      %v1511 = vpop.f32.mrb[0].mxu0
      %v1512 = vadd.f32 0.0, %v1511
      %v1513 = vpop.f32.mrb[0].mxu0
      %v1514 = vpop.f32.mrb[0].mxu0
      %1515 = vdwg.mxu0
      %v1516 = vadd.f32 %v1338, %v1500
      %v1517 = vadd.f32 %v1339, %v1502
      %v1518 = vadd.f32 %v1340, %v1504
      %v1519 = vadd.f32 %v1341, %v1506
      %v1520 = vadd.f32 %v1342, %v1510
      %v1521 = vadd.f32 %v1343, %v1512
      %v1522 = vld [vmem:[%s165 + $0x4] sm:$0x8]
      %s1523 = scalar_lea.vmem %s1, 1024
      %v1524 = vld [vmem:[%s1523] sm:$0xff]
      %v1525 = vld [vmem:[%s1523 + $0x8] sm:$0xff]
      %v1526 = vld [vmem:[%s1523 + $0x10] sm:$0xff]
      %v1527 = vld [vmem:[%s1523 + $0x18] sm:$0xff]
      %v1528 = vld [vmem:[%s1523 + $0x20] sm:$0xff]
      %v1529 = vld [vmem:[%s1523 + $0x28] sm:$0xff]
      %v1530 = vld [vmem:[%s1523 + $0x30] sm:$0xff]
      %v1531 = vld [vmem:[%s1523 + $0x38] sm:$0xff]
      %v1532 = vld [vmem:[%s1523 + $0x40] sm:$0xff]
      %v1533 = vld [vmem:[%s1523 + $0x48] sm:$0xff]
      %v1534 = vld [vmem:[%s1523 + $0x50] sm:$0xff]
      %v1535 = vld [vmem:[%s1523 + $0x58] sm:$0xff]
      %v1536 = vld [vmem:[%s1523 + $0x60] sm:$0xff]
      %v1537 = vld [vmem:[%s1523 + $0x68] sm:$0xff]
      %v1538 = vld [vmem:[%s1523 + $0x70] sm:$0xff]
      %v1539 = vld [vmem:[%s1523 + $0x78] sm:$0xff]
      %v1541 = vunpack.c.l.b16 %v1522
      %v1542 = vpack.c.b16 %v1196, %v1541
      %v1543 = vrot.slane %v1542, 3
      %v1544 = vrot.slane %v1364, 3
      %v1545 = vsel %vm691, %v1543, %v1544
      %v1564 = vunpack.c.l.b16 %v1524
      %v1565 = vunpack.c.h.b16 %v1524
      %v1566 = vunpack.c.l.b16 %v1525
      %v1567 = vunpack.c.h.b16 %v1525
      %v1568 = vunpack.c.l.b16 %v1526
      %v1569 = vunpack.c.h.b16 %v1526
      %v1570 = vunpack.c.l.b16 %v1527
      %v1571 = vunpack.c.h.b16 %v1527
      %v1572 = vunpack.c.l.b16 %v1528
      %v1573 = vunpack.c.h.b16 %v1528
      %v1574 = vunpack.c.l.b16 %v1529
      %v1575 = vunpack.c.h.b16 %v1529
      %v1576 = vunpack.c.l.b16 %v1530
      %v1577 = vunpack.c.h.b16 %v1530
      %v1578 = vunpack.c.l.b16 %v1531
      %v1579 = vunpack.c.h.b16 %v1531
      %v1580 = vunpack.c.l.b16 %v1532
      %v1581 = vunpack.c.h.b16 %v1532
      %v1582 = vunpack.c.l.b16 %v1533
      %v1583 = vunpack.c.h.b16 %v1533
      %v1584 = vunpack.c.l.b16 %v1534
      %v1585 = vunpack.c.h.b16 %v1534
      %v1586 = vunpack.c.l.b16 %v1535
      %v1587 = vunpack.c.h.b16 %v1535
      %v1588 = vunpack.c.l.b16 %v1536
      %v1589 = vunpack.c.h.b16 %v1536
      %v1590 = vunpack.c.l.b16 %v1537
      %v1591 = vunpack.c.h.b16 %v1537
      %v1592 = vunpack.c.l.b16 %v1538
      %v1593 = vunpack.c.h.b16 %v1538
      %v1594 = vunpack.c.l.b16 %v1539
      %v1595 = vunpack.c.h.b16 %v1539
      %v1596 = vpack.c.b16 %v1566, %v1564
      %v1597 = vpack.c.b16 %v1567, %v1565
      %v1598 = vpack.c.b16 %v1570, %v1568
      %v1599 = vpack.c.b16 %v1571, %v1569
      %v1600 = vpack.c.b16 %v1574, %v1572
      %v1601 = vpack.c.b16 %v1575, %v1573
      %v1602 = vpack.c.b16 %v1578, %v1576
      %v1603 = vpack.c.b16 %v1579, %v1577
      %v1604 = vpack.c.b16 %v1582, %v1580
      %v1605 = vpack.c.b16 %v1583, %v1581
      %v1606 = vpack.c.b16 %v1586, %v1584
      %v1607 = vpack.c.b16 %v1587, %v1585
      %v1608 = vpack.c.b16 %v1590, %v1588
      %v1609 = vpack.c.b16 %v1591, %v1589
      %v1610 = vpack.c.b16 %v1594, %v1592
      %v1611 = vpack.c.b16 %v1595, %v1593
      %1628 = vmatprep.subr.bf16.mxu0 %v1597
      %1629 = vmatpush1.bf16.msra.mxu0 %v1596
      %1630 = vmatprep.subr.bf16.mxu0 %v1599
      %1631 = vmatpush1.bf16.msra.mxu0 %v1598
      %1632 = vmatprep.subr.bf16.mxu0 %v1601
      %1633 = vmatpush1.bf16.msra.mxu0 %v1600
      %1634 = vmatprep.subr.bf16.mxu0 %v1603
      %1635 = vmatpush1.bf16.msra.mxu0 %v1602
      %1636 = vmatprep.subr.bf16.mxu0 %v1605
      %1637 = vmatpush1.bf16.msra.mxu0 %v1604
      %1638 = vmatprep.subr.bf16.mxu0 %v1607
      %1639 = vmatpush1.bf16.msra.mxu0 %v1606
      %1640 = vmatprep.subr.bf16.mxu0 %v1609
      %1641 = vmatpush1.bf16.msra.mxu0 %v1608
      %1642 = vmatprep.subr.bf16.mxu0 %v1611
      %1643 = vmatpush1.bf16.msra.mxu0 %v1610
      %1644 = vmatprep.subr.bf16.mxu0 0
      %1645 = vmatpush1.bf16.msra.mxu0 0
      %1646 = vmatprep.subr.bf16.mxu0 0
      %1647 = vmatpush1.bf16.msra.mxu0 0
      %1648 = vmatprep.subr.bf16.mxu0 0
      %1649 = vmatpush1.bf16.msra.mxu0 0
      %1650 = vmatprep.subr.bf16.mxu0 0
      %1651 = vmatpush1.bf16.msra.mxu0 0
      %1652 = vmatprep.subr.bf16.mxu0 0
      %1653 = vmatpush1.bf16.msra.mxu0 0
      %1654 = vmatprep.subr.bf16.mxu0 0
      %1655 = vmatpush1.bf16.msra.mxu0 0
      %1656 = vmatprep.subr.bf16.mxu0 0
      %1657 = vmatpush1.bf16.msra.mxu0 0
      %1658 = vmatprep.subr.bf16.mxu0 0
      %1659 = vmatpush1.bf16.msra.mxu0 0
      %1660 = vmatprep.mubr.bf16.mxu0 0
      %1661 = vmatmul.mubr.bf16.gmra.mrb[0].mxu0 %v1545
      %v1662 = vpop.f32.mrb[0].mxu0
      %v1663 = vadd.f32 0.0, %v1662
      %v1664 = vpop.f32.mrb[0].mxu0
      %v1665 = vadd.f32 0.0, %v1664
      %v1666 = vpop.f32.mrb[0].mxu0
      %v1667 = vadd.f32 0.0, %v1666
      %v1668 = vpop.f32.mrb[0].mxu0
      %v1669 = vadd.f32 0.0, %v1668
      %1670 = vmatprep.mubr.bf16.mxu0 0
      %1671 = vmatmul.mubr.bf16.gmra.mrb[0].mxu0 %v1544
      %v1672 = vpop.f32.mrb[0].mxu0
      %v1673 = vadd.f32 0.0, %v1672
      %v1674 = vpop.f32.mrb[0].mxu0
      %v1675 = vadd.f32 0.0, %v1674
      %v1676 = vpop.f32.mrb[0].mxu0
      %v1677 = vpop.f32.mrb[0].mxu0
      %1678 = vdwg.mxu0
      %v1679 = vadd.f32 %v1516, %v1663
      %v1680 = vadd.f32 %v1517, %v1665
      %v1681 = vadd.f32 %v1518, %v1667
      %v1682 = vadd.f32 %v1519, %v1669
      %v1683 = vadd.f32 %v1520, %v1673
      %v1684 = vadd.f32 %v1521, %v1675
      %v1685 = vld [vmem:[%s2] sm:$0x3]
      %v1687 = vlaneseq
      %v1688 = vshrl.u32 %v1687, 7
      %v1689 = vsub.s32 0, %v1688
      %v1690 = vrot.slane %v1685, %v1689
      %v1691 = vlaneseq
      %v1692 = vshrl.u32 %v1691, 7
      %v1693 = vsub.s32 1, %v1692
      %v1694 = vrot.slane %v1685, %v1693
      %v1697 = vadd.f32 %v1679, %v1690
      %v1698 = vadd.f32 %v1680, %v1694
      %v1699 = vadd.f32 %v1681, %v1690
      %v1700 = vadd.f32 %v1682, %v1694
      %v1701 = vadd.f32 %v1683, %v1690
      %v1702 = vadd.f32 %v1684, %v1694
      %v1703 = vmax.f32 %v1697, 0.0
      %v1704 = vmax.f32 %v1698, 0.0
      %v1705 = vmax.f32 %v1699, 0.0
      %v1706 = vmax.f32 %v1700, 0.0
      %v1707 = vmax.f32 %v1701, 0.0
      %v1708 = vmax.f32 %v1702, 0.0
      %v1709 = vpack.c.bf16 %v1705, %v1703
      %v1710 = vpack.c.bf16 %v1706, %v1704
      %v1711 = vpack.c.bf16 %v1707, %v1707
      %v1712 = vpack.c.bf16 %v1708, %v1708
      %v1717 = vunpack.c.l.b16 %v1709
      %v1718 = vunpack.c.l.b16 %v1710
      %v1719 = vunpack.c.h.b16 %v1709
      %v1720 = vunpack.c.h.b16 %v1710
      %v1721 = vunpack.c.l.b16 %v1711
      %v1722 = vunpack.c.l.b16 %v1712
      %v1723 = vpack.c.b16 %v1718, %v1717
      %v1724 = vpack.c.b16 %v1720, %v1719
      %v1725 = vpack.c.b16 %v1722, %v1721
      %1729 = vst [vmem:[%s170] sm:$0xff] %v1723
      %1730 = vst [vmem:[%s170 + $0x8] sm:$0xff] %v1724
      %1731 = vst [vmem:[%s170 + $0x10] sm:$0xff] %v1725
      %p1732 = scmp.lt.s32.totalorder %s14, 1
      %s1733 = scalar_select %p1732, %s14, 1
      %s1734 = smul.addr %s1733, 6
      %s1735 = smul.addr %s1734, 4
      %s1736 = scalar_lea.vmem %s3, %s1735
      // Predicated region
      $region33: #{dkvb_bin_forward.4} parent=31 // pred_check
        %p1737 = pneg %p100
      $region34: #{dkvb_bin_forward.4} parent=31 // pred_check_branch
        %1739 = sbr.rel (%p1737) target = $region36
      $region35: #{dkvb_bin_forward.4} parent=31 // pred_region
        _
      $region36: #{dkvb_bin_forward.4} parent=31 // pred_fallthru
        _
    $region32: #{dkvb_bin_forward.4} parent=5 // pred_fallthru
      _
    %p1740 = scmp.le.s32.totalorder 2, %s9
    // Predicated region
    $region37: #{dkvb_bin_forward.4} parent=5 // pred_check
      %p1741 = pneg %p1740
    $region38: #{dkvb_bin_forward.4} parent=5 // pred_check_branch
      %1743 = sbr.rel (%p1741) target = $region40
    $region39: #{dkvb_bin_forward.4} parent=5 // pred_region
      %s1744 = ssub.s32 %s9, 2
      // Predicated region
      $region41: #{dkvb_bin_forward.4} parent=39 // pred_check
        %p1745 = pneg %p106
      $region42: #{dkvb_bin_forward.4} parent=39 // pred_check_branch
        %1747 = sbr.rel (%p1745) target = $region44
      $region43: #{dkvb_bin_forward.4} parent=39 // pred_region
        %p1748 = scmp.lt.s32.totalorder %s15, 1
        %s1749 = scalar_select %p1748, %s15, 1
        %s1750 = smul.addr %s1749, 6
        %s1751 = smul.addr %s1750, 4
        %s1752 = scalar_lea.vmem %s3, %s1751
      $region44: #{dkvb_bin_forward.4} parent=39 // pred_fallthru
        _
    $region40: #{dkvb_bin_forward.4} parent=5 // pred_fallthru
      _
  $region6: #{dkvb_bin_forward.4} parent=0 // loop_footer
    %s13 = sadd.s32 1, %s9
  $region7: #{dkvb_bin_forward.4} parent=0 // loop_footer_branch
    %8 = sbr.rel target = $region3
  $region8: #{dkvb_bin_forward.4} parent=0 // loop_exit
    _

// kernel: dkvb_bin_forward.5
$region0: #{dkvb_bin_forward.5}
  #allocation0 [shape = 'u32[]', space=smem, size = 0x4, offset = 0x4, fixed_abs, tag = 'smem constant byte address 0x4 - core index']
  #allocation1 [shape = 'u32[144,128]{1,0:T(1,128)}', space=vmem, size = 0x12000, scoped, tag = 'internal scratch']
  %s0 = inlined_call_operand.vmem [shape: bf16[2,110,64], index: 0, kind: input, shape index: {}]
  %s1 = inlined_call_operand.vmem [shape: bf16[9,64,128], index: 1, kind: input, shape index: {}]
  %s2 = inlined_call_operand.vmem [shape: f32[1,128], index: 2, kind: input, shape index: {}]
  %s3 = inlined_call_operand.vmem [shape: bf16[2,80,128], index: 3, kind: output, shape index: {}]
  %s4 = sld [smem:[#allocation0]]
  $region45: #{dkvb_bin_forward.5} parent=0
    _
  %s6 = ssub.s32 1, %s4
  %s7 = scalar_select 0, %s6, %s4
  loop: start=0, step=1, limit=4
  $region2: #{dkvb_bin_forward.5} parent=0 // loop_pre_header
    _
  $region3: #{dkvb_bin_forward.5} parent=0 // loop_header
    %s9 = sphi 0, %s13
    %p10 = scmp.ge.s32.totalorder %s9, 4
    %s19 = sphi 0, %s21
    %s22 = sphi 0, %s19
    %s23 = sphi 0, %s22
    %s39 = sphi 0, %s23
    %s43 = sphi 0, %s43
    %s45 = sphi 0, %s43
    %s46 = sphi 0, %s45
    %s60 = sphi 0, %s46
    %s64 = sphi 0, %s64
    %s66 = sphi 0, %s64
    %s67 = sphi 0, %s66
    %s81 = sphi 0, %s67
    %s87 = sphi 0, %s89
    %s90 = sphi 0, %s87
    %s91 = sphi 0, %s90
    %s107 = sphi 0, %s91
  $region4: #{dkvb_bin_forward.5} parent=0 // loop_header_branch
    %12 = sbr.rel (%p10) target = $region8
  $region5: #{dkvb_bin_forward.5} parent=0 // loop_body
    %s14 = ssub.s32 %s9, 1
    %s15 = ssub.s32 %s9, 2
    %s16 = sadd.s32 %s9, 1
    %s17 = ssub.s32 %s9, %s16
    %p18 = scmp.eq.s32.totalorder %s17, 0
    %s20 = sadd.s32 %s19, 1
    %s21 = scalar_select %p18, %s19, %s20
    %p24 = pneg %p18
    %p25 = scmp.eq.s32.totalorder %s9, 1
    %p26 = por %p24, %p25
    %p27 = scmp.ne.s32.totalorder %s19, %s22
    %p28 = scmp.eq.s32.totalorder %s9, 0
    %p29 = por %p27, %p28
    %p30 = scmp.ne.s32.totalorder %s19, %s22
    %p31 = scmp.eq.s32.totalorder %s14, 1
    %p32 = por %p30, %p31
    %p33 = scmp.ne.s32.totalorder %s22, %s23
    %p34 = scmp.eq.s32.totalorder %s14, 0
    %p35 = por %p33, %p34
    %p36 = scmp.ne.s32.totalorder %s22, %s23
    %p37 = scmp.eq.s32.totalorder %s15, 1
    %p38 = por %p36, %p37
    %p40 = scmp.ne.s32.totalorder %s23, %s39
    %p41 = scmp.eq.s32.totalorder %s15, 0
    %p42 = por %p40, %p41
    %s44 = sadd.s32 %s43, 1
    %p47 = scmp.eq.s32.totalorder %s9, 1
    %p48 = scmp.ne.s32.totalorder %s43, %s45
    %p49 = scmp.eq.s32.totalorder %s9, 0
    %p50 = por %p48, %p49
    %p51 = scmp.ne.s32.totalorder %s43, %s45
    %p52 = scmp.eq.s32.totalorder %s14, 1
    %p53 = por %p51, %p52
    %p54 = scmp.ne.s32.totalorder %s45, %s46
    %p55 = scmp.eq.s32.totalorder %s14, 0
    %p56 = por %p54, %p55
    %p57 = scmp.ne.s32.totalorder %s45, %s46
    %p58 = scmp.eq.s32.totalorder %s15, 1
    %p59 = por %p57, %p58
    %p61 = scmp.ne.s32.totalorder %s46, %s60
    %p62 = scmp.eq.s32.totalorder %s15, 0
    %p63 = por %p61, %p62
    %s65 = sadd.s32 %s64, 1
    %p68 = scmp.eq.s32.totalorder %s9, 1
    %p69 = scmp.ne.s32.totalorder %s64, %s66
    %p70 = scmp.eq.s32.totalorder %s9, 0
    %p71 = por %p69, %p70
    %p72 = scmp.ne.s32.totalorder %s64, %s66
    %p73 = scmp.eq.s32.totalorder %s14, 1
    %p74 = por %p72, %p73
    %p75 = scmp.ne.s32.totalorder %s66, %s67
    %p76 = scmp.eq.s32.totalorder %s14, 0
    %p77 = por %p75, %p76
    %p78 = scmp.ne.s32.totalorder %s66, %s67
    %p79 = scmp.eq.s32.totalorder %s15, 1
    %p80 = por %p78, %p79
    %p82 = scmp.ne.s32.totalorder %s67, %s81
    %p83 = scmp.eq.s32.totalorder %s15, 0
    %p84 = por %p82, %p83
    %s85 = ssub.s32 %s9, %s16
    %p86 = scmp.eq.s32.totalorder %s85, 0
    %s88 = sadd.s32 %s87, 1
    %s89 = scalar_select %p86, %s87, %s88
    %p92 = pneg %p86
    %p93 = scmp.eq.s32.totalorder %s9, 1
    %p94 = por %p92, %p93
    %p95 = scmp.ne.s32.totalorder %s87, %s90
    %p96 = scmp.eq.s32.totalorder %s9, 0
    %p97 = por %p95, %p96
    %p98 = scmp.ne.s32.totalorder %s87, %s90
    %p99 = scmp.eq.s32.totalorder %s14, 1
    %p100 = por %p98, %p99
    %p101 = scmp.ne.s32.totalorder %s90, %s91
    %p102 = scmp.eq.s32.totalorder %s14, 0
    %p103 = por %p101, %p102
    %p104 = scmp.ne.s32.totalorder %s90, %s91
    %p105 = scmp.eq.s32.totalorder %s15, 1
    %p106 = por %p104, %p105
    %p108 = scmp.ne.s32.totalorder %s91, %s107
    %p109 = scmp.eq.s32.totalorder %s15, 0
    %p110 = por %p108, %p109
    %p111 = scmp.le.s32.totalorder 1, %s9
    %p112 = scmp.lt.s32.totalorder %s9, 3
    %p113 = pnand %p111, %p112
    %p114 = pneg %p113
    // Predicated region
    $region9: #{dkvb_bin_forward.5} parent=5 // pred_check
      _
    $region10: #{dkvb_bin_forward.5} parent=5 // pred_check_branch
      %116 = sbr.rel (%p113) target = $region12
    $region11: #{dkvb_bin_forward.5} parent=5 // pred_region
      %s117 = ssub.s32 %s9, 1
      // Predicated region
      $region13: #{dkvb_bin_forward.5} parent=11 // pred_check
        %p118 = pneg %p56
      $region14: #{dkvb_bin_forward.5} parent=11 // pred_check_branch
        %120 = sbr.rel (%p118) target = $region16
      $region15: #{dkvb_bin_forward.5} parent=11 // pred_region
        _
      $region16: #{dkvb_bin_forward.5} parent=11 // pred_fallthru
        _
      // Predicated region
      $region17: #{dkvb_bin_forward.5} parent=11 // pred_check
        %p121 = pneg %p77
      $region18: #{dkvb_bin_forward.5} parent=11 // pred_check_branch
        %123 = sbr.rel (%p121) target = $region20
      $region19: #{dkvb_bin_forward.5} parent=11 // pred_region
        _
      $region20: #{dkvb_bin_forward.5} parent=11 // pred_fallthru
        _
    $region12: #{dkvb_bin_forward.5} parent=5 // pred_fallthru
      _
    %p124 = scmp.lt.s32.totalorder %s9, 2
    // Predicated region
    $region21: #{dkvb_bin_forward.5} parent=5 // pred_check
      %p125 = pneg %p124
    $region22: #{dkvb_bin_forward.5} parent=5 // pred_check_branch
      %127 = sbr.rel (%p125) target = $region24
    $region23: #{dkvb_bin_forward.5} parent=5 // pred_region
      // Predicated region
      $region25: #{dkvb_bin_forward.5} parent=23 // pred_check
        %p128 = pneg %p29
      $region26: #{dkvb_bin_forward.5} parent=23 // pred_check_branch
        %130 = sbr.rel (%p128) target = $region28
      $region27: #{dkvb_bin_forward.5} parent=23 // pred_region
        %p131 = scmp.lt.s32.totalorder %s9, 1
        %s132 = scalar_select %p131, %s9, 1
        %s133 = smul.addr %s132, 14
        %s134 = smul.addr %s133, 4
        %s135 = scalar_lea.vmem %s0, %s134
      $region28: #{dkvb_bin_forward.5} parent=23 // pred_fallthru
        _
    $region24: #{dkvb_bin_forward.5} parent=5 // pred_fallthru
      _
    %p136 = scmp.le.s32.totalorder 1, %s9
    %p137 = scmp.lt.s32.totalorder %s9, 3
    %p138 = pnand %p136, %p137
    %p139 = pneg %p138
    // Predicated region
    $region29: #{dkvb_bin_forward.5} parent=5 // pred_check
      _
    $region30: #{dkvb_bin_forward.5} parent=5 // pred_check_branch
      %141 = sbr.rel (%p138) target = $region32
    $region31: #{dkvb_bin_forward.5} parent=5 // pred_region
      %s142 = ssub.s32 %s9, 1
      %p143 = scmp.lt.s32.totalorder %s14, 1
      %s144 = scalar_select %p143, %s14, 1
      %s145 = smul.addr %s144, 14
      %s146 = smul.addr %s145, 4
      %s147 = scalar_lea.vmem %s0, %s146
      %p148 = pneg %p35
      %p149 = pneg %p32
      %p150 = pneg %p56
      %p151 = pneg %p53
      %p152 = pneg %p77
      %p153 = pneg %p74
      %p154 = pneg %p103
      %p155 = pneg %p100
      %p156 = scmp.lt.s32.totalorder %s14, 1
      %s157 = scalar_select %p156, %s14, 1
      %s158 = smul.addr %s157, 10
      %s159 = smul.addr %s158, 4
      %s160 = scalar_lea.vmem %s3, %s159
      %p161 = scmp.lt.s32.totalorder %s14, 1
      %s162 = scalar_select %p161, %s14, 1
      %s163 = smul.addr %s162, 14
      %s164 = smul.addr %s163, 4
      %s165 = scalar_lea.vmem %s0, %s164
      %p166 = scmp.lt.s32.totalorder %s14, 1
      %s167 = scalar_select %p166, %s14, 1
      %s168 = smul.addr %s167, 10
      %s169 = smul.addr %s168, 4
      %s170 = scalar_lea.vmem %s3, %s169
      %v172 = vld [vmem:[%s165] sm:$0xf]
      %v173 = vld [vmem:[%s165 + $0x4] sm:$0xf]
      %v174 = vld [vmem:[%s165 + $0x8] sm:$0xf]
      %v175 = vld [vmem:[%s165 + $0xc] sm:$0xf]
      %v176 = vld [vmem:[%s165 + $0x10] sm:$0xf]
      %v177 = vld [vmem:[%s165 + $0x14] sm:$0xf]
      %v178 = vld [vmem:[%s165 + $0x18] sm:$0xf]
      %v179 = vld [vmem:[%s165 + $0x1c] sm:$0xf]
      %v180 = vld [vmem:[%s165 + $0x20] sm:$0xf]
      %v181 = vld [vmem:[%s165 + $0x24] sm:$0xf]
      %v182 = vld [vmem:[%s1] sm:$0xf]
      %v183 = vld [vmem:[%s1 + $0x4] sm:$0xf]
      %v184 = vld [vmem:[%s1 + $0x8] sm:$0xf]
      %v185 = vld [vmem:[%s1 + $0xc] sm:$0xf]
      %v186 = vld [vmem:[%s1 + $0x10] sm:$0xf]
      %v187 = vld [vmem:[%s1 + $0x14] sm:$0xf]
      %v188 = vld [vmem:[%s1 + $0x18] sm:$0xf]
      %v189 = vld [vmem:[%s1 + $0x1c] sm:$0xf]
      %v190 = vld [vmem:[%s165 + $0x28] sm:$0x1]
      %s191 = scalar_lea.vmem %s1, 32
      %v192 = vld [vmem:[%s191] sm:$0xf]
      %v193 = vld [vmem:[%s191 + $0x4] sm:$0xf]
      %v194 = vld [vmem:[%s191 + $0x8] sm:$0xf]
      %v195 = vld [vmem:[%s191 + $0xc] sm:$0xf]
      %v196 = vld [vmem:[%s191 + $0x10] sm:$0xf]
      %v197 = vld [vmem:[%s191 + $0x14] sm:$0xf]
      %v198 = vld [vmem:[%s191 + $0x18] sm:$0xf]
      %v199 = vld [vmem:[%s191 + $0x1c] sm:$0xf]
      %v211 = vunpack.c.l.b16 %v172
      %v212 = vunpack.c.l.b16 %v173
      %v213 = vunpack.c.l.b16 %v174
      %v214 = vunpack.c.l.b16 %v175
      %v215 = vunpack.c.l.b16 %v176
      %v216 = vunpack.c.l.b16 %v177
      %v217 = vunpack.c.l.b16 %v178
      %v218 = vunpack.c.l.b16 %v179
      %v219 = vunpack.c.l.b16 %v180
      %v220 = vunpack.c.l.b16 %v181
      %v221 = vunpack.c.l.b16 %v190
      %v222 = vpack.c.b16 %v212, %v211
      %v223 = vpack.c.b16 %v214, %v213
      %v224 = vpack.c.b16 %v216, %v215
      %v225 = vpack.c.b16 %v218, %v217
      %v226 = vpack.c.b16 %v220, %v219
      %v227 = vpack.c.b16 %v221, %v221
      %vm228 = vsmask.f32 7424
      %v230 = vshrl.u32 %v222, 16
      %v232 = vshll.u32 %v222, 16
      %v234 = vrot.slane %v232, 1
      %v235 = vor.u32 %v230, %v234
      %v237 = vshll.u32 %v223, 16
      %v239 = vrot.slane %v237, 1
      %v240 = vsel %vm228, %v235, %v239
      %v241 = vshrl.u32 %v223, 16
      %v243 = vor.u32 %v241, %v239
      %v245 = vshll.u32 %v224, 16
      %v247 = vrot.slane %v245, 1
      %v248 = vsel %vm228, %v243, %v247
      %v249 = vshrl.u32 %v224, 16
      %v251 = vor.u32 %v249, %v247
      %v253 = vshll.u32 %v225, 16
      %v255 = vrot.slane %v253, 1
      %v256 = vsel %vm228, %v251, %v255
      %v257 = vshrl.u32 %v225, 16
      %v259 = vor.u32 %v257, %v255
      %v261 = vshll.u32 %v226, 16
      %v263 = vrot.slane %v261, 1
      %v264 = vsel %vm228, %v259, %v263
      %v265 = vshrl.u32 %v226, 16
      %v267 = vor.u32 %v265, %v263
      %v269 = vshll.u32 %v227, 16
      %v271 = vrot.slane %v269, 1
      %v272 = vsel %vm228, %v267, %v271
      %v281 = vunpack.c.l.b16 %v192
      %v282 = vunpack.c.l.b16 %v193
      %v283 = vunpack.c.l.b16 %v194
      %v284 = vunpack.c.l.b16 %v195
      %v285 = vunpack.c.l.b16 %v196
      %v286 = vunpack.c.l.b16 %v197
      %v287 = vunpack.c.l.b16 %v198
      %v288 = vunpack.c.l.b16 %v199
      %v289 = vpack.c.b16 %v282, %v281
      %v290 = vpack.c.b16 %v284, %v283
      %v291 = vpack.c.b16 %v286, %v285
      %v292 = vpack.c.b16 %v288, %v287
      %vm297 = vcmask 523264
      %v299 = vsel %vm297, %v240, 0
      %v302 = vsel %vm297, %v248, 0
      %v305 = vsel %vm297, %v256, 0
      %v308 = vsel %vm297, %v264, 0
      %v311 = vsel %vm297, %v272, 0
      %313 = vmatprep.subr.bf16.mxu0 0
      %314 = vmatpush1.bf16.msra.mxu0 %v289
      %315 = vmatprep.subr.bf16.mxu0 0
      %316 = vmatpush1.bf16.msra.mxu0 %v290
      %317 = vmatprep.subr.bf16.mxu0 0
      %318 = vmatpush1.bf16.msra.mxu0 %v291
      %319 = vmatprep.subr.bf16.mxu0 0
      %320 = vmatpush1.bf16.msra.mxu0 %v292
      %321 = vmatprep.subr.bf16.mxu0 0
      %322 = vmatpush1.bf16.msra.mxu0 0
      %323 = vmatprep.subr.bf16.mxu0 0
      %324 = vmatpush1.bf16.msra.mxu0 0
      %325 = vmatprep.subr.bf16.mxu0 0
      %326 = vmatpush1.bf16.msra.mxu0 0
      %327 = vmatprep.subr.bf16.mxu0 0
      %328 = vmatpush1.bf16.msra.mxu0 0
      %329 = vmatprep.subr.bf16.mxu0 0
      %330 = vmatpush1.bf16.msra.mxu0 0
      %331 = vmatprep.subr.bf16.mxu0 0
      %332 = vmatpush1.bf16.msra.mxu0 0
      %333 = vmatprep.subr.bf16.mxu0 0
      %334 = vmatpush1.bf16.msra.mxu0 0
      %335 = vmatprep.subr.bf16.mxu0 0
      %336 = vmatpush1.bf16.msra.mxu0 0
      %337 = vmatprep.subr.bf16.mxu0 0
      %338 = vmatpush1.bf16.msra.mxu0 0
      %339 = vmatprep.subr.bf16.mxu0 0
      %340 = vmatpush1.bf16.msra.mxu0 0
      %341 = vmatprep.subr.bf16.mxu0 0
      %342 = vmatpush1.bf16.msra.mxu0 0
      %343 = vmatprep.subr.bf16.mxu0 0
      %344 = vmatpush1.bf16.msra.mxu0 0
      %345 = vmatprep.mubr.bf16.mxu0 0
      %346 = vmatmul.mubr.bf16.gmra.mrb[0].mxu0 %v299
      %v347 = vpop.f32.mrb[0].mxu0
      %v348 = vadd.f32 0.0, %v347
      %v349 = vpop.f32.mrb[0].mxu0
      %v350 = vpop.f32.mrb[0].mxu0
      %v351 = vadd.f32 0.0, %v350
      %v352 = vpop.f32.mrb[0].mxu0
      %353 = vmatprep.mubr.bf16.mxu0 0
      %354 = vmatmul.mubr.bf16.gmra.mrb[0].mxu0 %v302
      %v355 = vpop.f32.mrb[0].mxu0
      %v356 = vadd.f32 0.0, %v355
      %v357 = vpop.f32.mrb[0].mxu0
      %v358 = vpop.f32.mrb[0].mxu0
      %v359 = vadd.f32 0.0, %v358
      %v360 = vpop.f32.mrb[0].mxu0
      %361 = vmatprep.mubr.bf16.mxu0 0
      %362 = vmatmul.mubr.bf16.gmra.mrb[0].mxu0 %v305
      %v363 = vpop.f32.mrb[0].mxu0
      %v364 = vadd.f32 0.0, %v363
      %v365 = vpop.f32.mrb[0].mxu0
      %v366 = vpop.f32.mrb[0].mxu0
      %v367 = vadd.f32 0.0, %v366
      %v368 = vpop.f32.mrb[0].mxu0
      %369 = vmatprep.mubr.bf16.mxu0 0
      %370 = vmatmul.mubr.bf16.gmra.mrb[0].mxu0 %v308
      %v371 = vpop.f32.mrb[0].mxu0
      %v372 = vadd.f32 0.0, %v371
      %v373 = vpop.f32.mrb[0].mxu0
      %v374 = vpop.f32.mrb[0].mxu0
      %v375 = vadd.f32 0.0, %v374
      %v376 = vpop.f32.mrb[0].mxu0
      %377 = vmatprep.mubr.bf16.mxu0 0
      %378 = vmatmul.mubr.bf16.gmra.mrb[0].mxu0 %v311
      %v379 = vpop.f32.mrb[0].mxu0
      %v380 = vadd.f32 0.0, %v379
      %v381 = vpop.f32.mrb[0].mxu0
      %v382 = vpop.f32.mrb[0].mxu0
      %v383 = vadd.f32 0.0, %v382
      %v384 = vpop.f32.mrb[0].mxu0
      %385 = vdwg.mxu0
      %v394 = vunpack.c.l.b16 %v182
      %v395 = vunpack.c.l.b16 %v183
      %v396 = vunpack.c.l.b16 %v184
      %v397 = vunpack.c.l.b16 %v185
      %v398 = vunpack.c.l.b16 %v186
      %v399 = vunpack.c.l.b16 %v187
      %v400 = vunpack.c.l.b16 %v188
      %v401 = vunpack.c.l.b16 %v189
      %v402 = vpack.c.b16 %v395, %v394
      %v403 = vpack.c.b16 %v397, %v396
      %v404 = vpack.c.b16 %v399, %v398
      %v405 = vpack.c.b16 %v401, %v400
      %v410 = vsel %vm297, %v222, 0
      %v412 = vsel %vm297, %v223, 0
      %v414 = vsel %vm297, %v224, 0
      %v416 = vsel %vm297, %v225, 0
      %v418 = vsel %vm297, %v226, 0
      %420 = vmatprep.subr.bf16.mxu0 0
      %421 = vmatpush1.bf16.msra.mxu0 %v402
      %422 = vmatprep.subr.bf16.mxu0 0
      %423 = vmatpush1.bf16.msra.mxu0 %v403
      %424 = vmatprep.subr.bf16.mxu0 0
      %425 = vmatpush1.bf16.msra.mxu0 %v404
      %426 = vmatprep.subr.bf16.mxu0 0
      %427 = vmatpush1.bf16.msra.mxu0 %v405
      %428 = vmatprep.subr.bf16.mxu0 0
      %429 = vmatpush1.bf16.msra.mxu0 0
      %430 = vmatprep.subr.bf16.mxu0 0
      %431 = vmatpush1.bf16.msra.mxu0 0
      %432 = vmatprep.subr.bf16.mxu0 0
      %433 = vmatpush1.bf16.msra.mxu0 0
      %434 = vmatprep.subr.bf16.mxu0 0
      %435 = vmatpush1.bf16.msra.mxu0 0
      %436 = vmatprep.subr.bf16.mxu0 0
      %437 = vmatpush1.bf16.msra.mxu0 0
      %438 = vmatprep.subr.bf16.mxu0 0
      %439 = vmatpush1.bf16.msra.mxu0 0
      %440 = vmatprep.subr.bf16.mxu0 0
      %441 = vmatpush1.bf16.msra.mxu0 0
      %442 = vmatprep.subr.bf16.mxu0 0
      %443 = vmatpush1.bf16.msra.mxu0 0
      %444 = vmatprep.subr.bf16.mxu0 0
      %445 = vmatpush1.bf16.msra.mxu0 0
      %446 = vmatprep.subr.bf16.mxu0 0
      %447 = vmatpush1.bf16.msra.mxu0 0
      %448 = vmatprep.subr.bf16.mxu0 0
      %449 = vmatpush1.bf16.msra.mxu0 0
      %450 = vmatprep.subr.bf16.mxu0 0
      %451 = vmatpush1.bf16.msra.mxu0 0
      %452 = vmatprep.mubr.bf16.mxu0 0
      %453 = vmatmul.mubr.bf16.gmra.mrb[0].mxu0 %v410
      %v454 = vpop.f32.mrb[0].mxu0
      %v455 = vadd.f32 %v348, %v454
      %v456 = vpop.f32.mrb[0].mxu0
      %v457 = vpop.f32.mrb[0].mxu0
      %v458 = vadd.f32 %v351, %v457
      %v459 = vpop.f32.mrb[0].mxu0
      %460 = vmatprep.mubr.bf16.mxu0 0
      %461 = vmatmul.mubr.bf16.gmra.mrb[0].mxu0 %v412
      %v462 = vpop.f32.mrb[0].mxu0
      %v463 = vadd.f32 %v356, %v462
      %v464 = vpop.f32.mrb[0].mxu0
      %v465 = vpop.f32.mrb[0].mxu0
      %v466 = vadd.f32 %v359, %v465
      %v467 = vpop.f32.mrb[0].mxu0
      %468 = vmatprep.mubr.bf16.mxu0 0
      %469 = vmatmul.mubr.bf16.gmra.mrb[0].mxu0 %v414
      %v470 = vpop.f32.mrb[0].mxu0
      %v471 = vadd.f32 %v364, %v470
      %v472 = vpop.f32.mrb[0].mxu0
      %v473 = vpop.f32.mrb[0].mxu0
      %v474 = vadd.f32 %v367, %v473
      %v475 = vpop.f32.mrb[0].mxu0
      %476 = vmatprep.mubr.bf16.mxu0 0
      %477 = vmatmul.mubr.bf16.gmra.mrb[0].mxu0 %v416
      %v478 = vpop.f32.mrb[0].mxu0
      %v479 = vadd.f32 %v372, %v478
      %v480 = vpop.f32.mrb[0].mxu0
      %v481 = vpop.f32.mrb[0].mxu0
      %v482 = vadd.f32 %v375, %v481
      %v483 = vpop.f32.mrb[0].mxu0
      %484 = vmatprep.mubr.bf16.mxu0 0
      %485 = vmatmul.mubr.bf16.gmra.mrb[0].mxu0 %v418
      %v486 = vpop.f32.mrb[0].mxu0
      %v487 = vadd.f32 %v380, %v486
      %v488 = vpop.f32.mrb[0].mxu0
      %v489 = vpop.f32.mrb[0].mxu0
      %v490 = vadd.f32 %v383, %v489
      %v491 = vpop.f32.mrb[0].mxu0
      %492 = vdwg.mxu0
      %v493 = vld [vmem:[%s165] sm:$0xe]
      %s494 = scalar_lea.vmem %s1, 64
      %v495 = vld [vmem:[%s494] sm:$0xf]
      %v496 = vld [vmem:[%s494 + $0x4] sm:$0xf]
      %v497 = vld [vmem:[%s494 + $0x8] sm:$0xf]
      %v498 = vld [vmem:[%s494 + $0xc] sm:$0xf]
      %v499 = vld [vmem:[%s494 + $0x10] sm:$0xf]
      %v500 = vld [vmem:[%s494 + $0x14] sm:$0xf]
      %v501 = vld [vmem:[%s494 + $0x18] sm:$0xf]
      %v502 = vld [vmem:[%s494 + $0x1c] sm:$0xf]
      %v504 = vunpack.c.l.b16 %v493
      %v505 = vpack.c.b16 %v212, %v504
      %vm506 = vcmask 1046528
      %v507 = vrot.slane %v505, 1
      %v508 = vrot.slane %v223, 1
      %v509 = vsel %vm506, %v507, %v508
      %v510 = vrot.slane %v224, 1
      %v511 = vsel %vm506, %v508, %v510
      %v512 = vrot.slane %v225, 1
      %v513 = vsel %vm506, %v510, %v512
      %v514 = vrot.slane %v226, 1
      %v515 = vsel %vm506, %v512, %v514
      %v516 = vrot.slane %v227, 1
      %v517 = vsel %vm506, %v514, %v516
      %v526 = vunpack.c.l.b16 %v495
      %v527 = vunpack.c.l.b16 %v496
      %v528 = vunpack.c.l.b16 %v497
      %v529 = vunpack.c.l.b16 %v498
      %v530 = vunpack.c.l.b16 %v499
      %v531 = vunpack.c.l.b16 %v500
      %v532 = vunpack.c.l.b16 %v501
      %v533 = vunpack.c.l.b16 %v502
      %v534 = vpack.c.b16 %v527, %v526
      %v535 = vpack.c.b16 %v529, %v528
      %v536 = vpack.c.b16 %v531, %v530
      %v537 = vpack.c.b16 %v533, %v532
      %v543 = vsel %vm297, %v509, 0
      %v546 = vsel %vm297, %v511, 0
      %v549 = vsel %vm297, %v513, 0
      %v552 = vsel %vm297, %v515, 0
      %v555 = vsel %vm297, %v517, 0
      %557 = vmatprep.subr.bf16.mxu0 0
      %558 = vmatpush1.bf16.msra.mxu0 %v534
      %559 = vmatprep.subr.bf16.mxu0 0
      %560 = vmatpush1.bf16.msra.mxu0 %v535
      %561 = vmatprep.subr.bf16.mxu0 0
      %562 = vmatpush1.bf16.msra.mxu0 %v536
      %563 = vmatprep.subr.bf16.mxu0 0
      %564 = vmatpush1.bf16.msra.mxu0 %v537
      %565 = vmatprep.subr.bf16.mxu0 0
      %566 = vmatpush1.bf16.msra.mxu0 0
      %567 = vmatprep.subr.bf16.mxu0 0
      %568 = vmatpush1.bf16.msra.mxu0 0
      %569 = vmatprep.subr.bf16.mxu0 0
      %570 = vmatpush1.bf16.msra.mxu0 0
      %571 = vmatprep.subr.bf16.mxu0 0
      %572 = vmatpush1.bf16.msra.mxu0 0
      %573 = vmatprep.subr.bf16.mxu0 0
      %574 = vmatpush1.bf16.msra.mxu0 0
      %575 = vmatprep.subr.bf16.mxu0 0
      %576 = vmatpush1.bf16.msra.mxu0 0
      %577 = vmatprep.subr.bf16.mxu0 0
      %578 = vmatpush1.bf16.msra.mxu0 0
      %579 = vmatprep.subr.bf16.mxu0 0
      %580 = vmatpush1.bf16.msra.mxu0 0
      %581 = vmatprep.subr.bf16.mxu0 0
      %582 = vmatpush1.bf16.msra.mxu0 0
      %583 = vmatprep.subr.bf16.mxu0 0
      %584 = vmatpush1.bf16.msra.mxu0 0
      %585 = vmatprep.subr.bf16.mxu0 0
      %586 = vmatpush1.bf16.msra.mxu0 0
      %587 = vmatprep.subr.bf16.mxu0 0
      %588 = vmatpush1.bf16.msra.mxu0 0
      %589 = vmatprep.mubr.bf16.mxu0 0
      %590 = vmatmul.mubr.bf16.gmra.mrb[0].mxu0 %v543
      %v591 = vpop.f32.mrb[0].mxu0
      %v592 = vadd.f32 0.0, %v591
      %v593 = vpop.f32.mrb[0].mxu0
      %v594 = vpop.f32.mrb[0].mxu0
      %v595 = vadd.f32 0.0, %v594
      %v596 = vpop.f32.mrb[0].mxu0
      %597 = vmatprep.mubr.bf16.mxu0 0
      %598 = vmatmul.mubr.bf16.gmra.mrb[0].mxu0 %v546
      %v599 = vpop.f32.mrb[0].mxu0
      %v600 = vadd.f32 0.0, %v599
      %v601 = vpop.f32.mrb[0].mxu0
      %v602 = vpop.f32.mrb[0].mxu0
      %v603 = vadd.f32 0.0, %v602
      %v604 = vpop.f32.mrb[0].mxu0
      %605 = vmatprep.mubr.bf16.mxu0 0
      %606 = vmatmul.mubr.bf16.gmra.mrb[0].mxu0 %v549
      %v607 = vpop.f32.mrb[0].mxu0
      %v608 = vadd.f32 0.0, %v607
      %v609 = vpop.f32.mrb[0].mxu0
      %v610 = vpop.f32.mrb[0].mxu0
      %v611 = vadd.f32 0.0, %v610
      %v612 = vpop.f32.mrb[0].mxu0
      %613 = vmatprep.mubr.bf16.mxu0 0
      %614 = vmatmul.mubr.bf16.gmra.mrb[0].mxu0 %v552
      %v615 = vpop.f32.mrb[0].mxu0
      %v616 = vadd.f32 0.0, %v615
      %v617 = vpop.f32.mrb[0].mxu0
      %v618 = vpop.f32.mrb[0].mxu0
      %v619 = vadd.f32 0.0, %v618
      %v620 = vpop.f32.mrb[0].mxu0
      %621 = vmatprep.mubr.bf16.mxu0 0
      %622 = vmatmul.mubr.bf16.gmra.mrb[0].mxu0 %v555
      %v623 = vpop.f32.mrb[0].mxu0
      %v624 = vadd.f32 0.0, %v623
      %v625 = vpop.f32.mrb[0].mxu0
      %v626 = vpop.f32.mrb[0].mxu0
      %v627 = vadd.f32 0.0, %v626
      %v628 = vpop.f32.mrb[0].mxu0
      %629 = vdwg.mxu0
      %v630 = vadd.f32 %v455, %v592
      %v631 = vadd.f32 %v458, %v595
      %v632 = vadd.f32 %v463, %v600
      %v633 = vadd.f32 %v466, %v603
      %v634 = vadd.f32 %v471, %v608
      %v635 = vadd.f32 %v474, %v611
      %v636 = vadd.f32 %v479, %v616
      %v637 = vadd.f32 %v482, %v619
      %v638 = vadd.f32 %v487, %v624
      %v639 = vadd.f32 %v490, %v627
      %v640 = vld [vmem:[%s165 + $0x4] sm:$0xe]
      %v641 = vld [vmem:[%s165 + $0x8] sm:$0xf]
      %v642 = vld [vmem:[%s165 + $0xc] sm:$0xf]
      %v643 = vld [vmem:[%s165 + $0x10] sm:$0xf]
      %v644 = vld [vmem:[%s165 + $0x14] sm:$0xf]
      %v645 = vld [vmem:[%s165 + $0x18] sm:$0xf]
      %v646 = vld [vmem:[%s165 + $0x1c] sm:$0xf]
      %v647 = vld [vmem:[%s165 + $0x20] sm:$0xf]
      %v648 = vld [vmem:[%s165 + $0x24] sm:$0xf]
      %v649 = vld [vmem:[%s165 + $0x28] sm:$0xf]
      %v650 = vld [vmem:[%s165 + $0x2c] sm:$0x1]
      %s651 = scalar_lea.vmem %s1, 96
      %v652 = vld [vmem:[%s651] sm:$0xf]
      %v653 = vld [vmem:[%s651 + $0x4] sm:$0xf]
      %v654 = vld [vmem:[%s651 + $0x8] sm:$0xf]
      %v655 = vld [vmem:[%s651 + $0xc] sm:$0xf]
      %v656 = vld [vmem:[%s651 + $0x10] sm:$0xf]
      %v657 = vld [vmem:[%s651 + $0x14] sm:$0xf]
      %v658 = vld [vmem:[%s651 + $0x18] sm:$0xf]
      %v659 = vld [vmem:[%s651 + $0x1c] sm:$0xf]
      %v671 = vunpack.c.l.b16 %v640
      %v672 = vunpack.c.l.b16 %v641
      %v673 = vunpack.c.l.b16 %v642
      %v674 = vunpack.c.l.b16 %v643
      %v675 = vunpack.c.l.b16 %v644
      %v676 = vunpack.c.l.b16 %v645
      %v677 = vunpack.c.l.b16 %v646
      %v678 = vunpack.c.l.b16 %v647
      %v679 = vunpack.c.l.b16 %v648
      %v680 = vunpack.c.l.b16 %v649
      %v681 = vunpack.c.l.b16 %v650
      %v682 = vpack.c.b16 %v672, %v671
      %v683 = vpack.c.b16 %v674, %v673
      %v684 = vpack.c.b16 %v676, %v675
      %v685 = vpack.c.b16 %v678, %v677
      %v686 = vpack.c.b16 %v680, %v679
      %v687 = vpack.c.b16 %v681, %v681
      %v688 = vrot.slane %v682, 1
      %v689 = vrot.slane %v683, 1
      %v690 = vsel %vm506, %v688, %v689
      %v691 = vrot.slane %v684, 1
      %v692 = vsel %vm506, %v689, %v691
      %v693 = vrot.slane %v685, 1
      %v694 = vsel %vm506, %v691, %v693
      %v695 = vrot.slane %v686, 1
      %v696 = vsel %vm506, %v693, %v695
      %v697 = vrot.slane %v687, 1
      %v698 = vsel %vm506, %v695, %v697
      %v707 = vunpack.c.l.b16 %v652
      %v708 = vunpack.c.l.b16 %v653
      %v709 = vunpack.c.l.b16 %v654
      %v710 = vunpack.c.l.b16 %v655
      %v711 = vunpack.c.l.b16 %v656
      %v712 = vunpack.c.l.b16 %v657
      %v713 = vunpack.c.l.b16 %v658
      %v714 = vunpack.c.l.b16 %v659
      %v715 = vpack.c.b16 %v708, %v707
      %v716 = vpack.c.b16 %v710, %v709
      %v717 = vpack.c.b16 %v712, %v711
      %v718 = vpack.c.b16 %v714, %v713
      %v724 = vsel %vm297, %v690, 0
      %v727 = vsel %vm297, %v692, 0
      %v730 = vsel %vm297, %v694, 0
      %v733 = vsel %vm297, %v696, 0
      %v736 = vsel %vm297, %v698, 0
      %738 = vmatprep.subr.bf16.mxu0 0
      %739 = vmatpush1.bf16.msra.mxu0 %v715
      %740 = vmatprep.subr.bf16.mxu0 0
      %741 = vmatpush1.bf16.msra.mxu0 %v716
      %742 = vmatprep.subr.bf16.mxu0 0
      %743 = vmatpush1.bf16.msra.mxu0 %v717
      %744 = vmatprep.subr.bf16.mxu0 0
      %745 = vmatpush1.bf16.msra.mxu0 %v718
      %746 = vmatprep.subr.bf16.mxu0 0
      %747 = vmatpush1.bf16.msra.mxu0 0
      %748 = vmatprep.subr.bf16.mxu0 0
      %749 = vmatpush1.bf16.msra.mxu0 0
      %750 = vmatprep.subr.bf16.mxu0 0
      %751 = vmatpush1.bf16.msra.mxu0 0
      %752 = vmatprep.subr.bf16.mxu0 0
      %753 = vmatpush1.bf16.msra.mxu0 0
      %754 = vmatprep.subr.bf16.mxu0 0
      %755 = vmatpush1.bf16.msra.mxu0 0
      %756 = vmatprep.subr.bf16.mxu0 0
      %757 = vmatpush1.bf16.msra.mxu0 0
      %758 = vmatprep.subr.bf16.mxu0 0
      %759 = vmatpush1.bf16.msra.mxu0 0
      %760 = vmatprep.subr.bf16.mxu0 0
      %761 = vmatpush1.bf16.msra.mxu0 0
      %762 = vmatprep.subr.bf16.mxu0 0
      %763 = vmatpush1.bf16.msra.mxu0 0
      %764 = vmatprep.subr.bf16.mxu0 0
      %765 = vmatpush1.bf16.msra.mxu0 0
      %766 = vmatprep.subr.bf16.mxu0 0
      %767 = vmatpush1.bf16.msra.mxu0 0
      %768 = vmatprep.subr.bf16.mxu0 0
      %769 = vmatpush1.bf16.msra.mxu0 0
      %770 = vmatprep.mubr.bf16.mxu0 0
      %771 = vmatmul.mubr.bf16.gmra.mrb[0].mxu0 %v724
      %v772 = vpop.f32.mrb[0].mxu0
      %v773 = vadd.f32 0.0, %v772
      %v774 = vpop.f32.mrb[0].mxu0
      %v775 = vpop.f32.mrb[0].mxu0
      %v776 = vadd.f32 0.0, %v775
      %v777 = vpop.f32.mrb[0].mxu0
      %778 = vmatprep.mubr.bf16.mxu0 0
      %779 = vmatmul.mubr.bf16.gmra.mrb[0].mxu0 %v727
      %v780 = vpop.f32.mrb[0].mxu0
      %v781 = vadd.f32 0.0, %v780
      %v782 = vpop.f32.mrb[0].mxu0
      %v783 = vpop.f32.mrb[0].mxu0
      %v784 = vadd.f32 0.0, %v783
      %v785 = vpop.f32.mrb[0].mxu0
      %786 = vmatprep.mubr.bf16.mxu0 0
      %787 = vmatmul.mubr.bf16.gmra.mrb[0].mxu0 %v730
      %v788 = vpop.f32.mrb[0].mxu0
      %v789 = vadd.f32 0.0, %v788
      %v790 = vpop.f32.mrb[0].mxu0
      %v791 = vpop.f32.mrb[0].mxu0
      %v792 = vadd.f32 0.0, %v791
      %v793 = vpop.f32.mrb[0].mxu0
      %794 = vmatprep.mubr.bf16.mxu0 0
      %795 = vmatmul.mubr.bf16.gmra.mrb[0].mxu0 %v733
      %v796 = vpop.f32.mrb[0].mxu0
      %v797 = vadd.f32 0.0, %v796
      %v798 = vpop.f32.mrb[0].mxu0
      %v799 = vpop.f32.mrb[0].mxu0
      %v800 = vadd.f32 0.0, %v799
      %v801 = vpop.f32.mrb[0].mxu0
      %802 = vmatprep.mubr.bf16.mxu0 0
      %803 = vmatmul.mubr.bf16.gmra.mrb[0].mxu0 %v736
      %v804 = vpop.f32.mrb[0].mxu0
      %v805 = vadd.f32 0.0, %v804
      %v806 = vpop.f32.mrb[0].mxu0
      %v807 = vpop.f32.mrb[0].mxu0
      %v808 = vadd.f32 0.0, %v807
      %v809 = vpop.f32.mrb[0].mxu0
      %810 = vdwg.mxu0
      %v811 = vadd.f32 %v630, %v773
      %v812 = vadd.f32 %v631, %v776
      %v813 = vadd.f32 %v632, %v781
      %v814 = vadd.f32 %v633, %v784
      %v815 = vadd.f32 %v634, %v789
      %v816 = vadd.f32 %v635, %v792
      %v817 = vadd.f32 %v636, %v797
      %v818 = vadd.f32 %v637, %v800
      %v819 = vadd.f32 %v638, %v805
      %v820 = vadd.f32 %v639, %v808
      %v821 = vld [vmem:[%s165 + $0x2c] sm:$0x3]
      %s822 = scalar_lea.vmem %s1, 128
      %v823 = vld [vmem:[%s822] sm:$0xf]
      %v824 = vld [vmem:[%s822 + $0x4] sm:$0xf]
      %v825 = vld [vmem:[%s822 + $0x8] sm:$0xf]
      %v826 = vld [vmem:[%s822 + $0xc] sm:$0xf]
      %v827 = vld [vmem:[%s822 + $0x10] sm:$0xf]
      %v828 = vld [vmem:[%s822 + $0x14] sm:$0xf]
      %v829 = vld [vmem:[%s822 + $0x18] sm:$0xf]
      %v830 = vld [vmem:[%s822 + $0x1c] sm:$0xf]
      %v832 = vunpack.c.l.b16 %v821
      %v833 = vpack.c.b16 %v832, %v832
      %vm834 = vsmask.f32 6400
      %v836 = vshrl.u32 %v682, 16
      %v838 = vrot.slane %v836, 1
      %v839 = vshll.u32 %v682, 16
      %v841 = vrot.slane %v839, 2
      %v842 = vor.u32 %v838, %v841
      %v844 = vshrl.u32 %v683, 16
      %v846 = vrot.slane %v844, 1
      %v847 = vshll.u32 %v683, 16
      %v849 = vrot.slane %v847, 2
      %v850 = vor.u32 %v846, %v849
      %v851 = vsel %vm834, %v842, %v850
      %v853 = vshrl.u32 %v684, 16
      %v855 = vrot.slane %v853, 1
      %v856 = vshll.u32 %v684, 16
      %v858 = vrot.slane %v856, 2
      %v859 = vor.u32 %v855, %v858
      %v860 = vsel %vm834, %v850, %v859
      %v862 = vshrl.u32 %v685, 16
      %v864 = vrot.slane %v862, 1
      %v865 = vshll.u32 %v685, 16
      %v867 = vrot.slane %v865, 2
      %v868 = vor.u32 %v864, %v867
      %v869 = vsel %vm834, %v859, %v868
      %v871 = vshrl.u32 %v686, 16
      %v873 = vrot.slane %v871, 1
      %v874 = vshll.u32 %v686, 16
      %v876 = vrot.slane %v874, 2
      %v877 = vor.u32 %v873, %v876
      %v878 = vsel %vm834, %v868, %v877
      %v880 = vshrl.u32 %v833, 16
      %v882 = vrot.slane %v880, 1
      %v883 = vshll.u32 %v833, 16
      %v885 = vrot.slane %v883, 2
      %v886 = vor.u32 %v882, %v885
      %v887 = vsel %vm834, %v877, %v886
      %v896 = vunpack.c.l.b16 %v823
      %v897 = vunpack.c.l.b16 %v824
      %v898 = vunpack.c.l.b16 %v825
      %v899 = vunpack.c.l.b16 %v826
      %v900 = vunpack.c.l.b16 %v827
      %v901 = vunpack.c.l.b16 %v828
      %v902 = vunpack.c.l.b16 %v829
      %v903 = vunpack.c.l.b16 %v830
      %v904 = vpack.c.b16 %v897, %v896
      %v905 = vpack.c.b16 %v899, %v898
      %v906 = vpack.c.b16 %v901, %v900
      %v907 = vpack.c.b16 %v903, %v902
      %v913 = vsel %vm297, %v851, 0
      %v916 = vsel %vm297, %v860, 0
      %v919 = vsel %vm297, %v869, 0
      %v922 = vsel %vm297, %v878, 0
      %v925 = vsel %vm297, %v887, 0
      %927 = vmatprep.subr.bf16.mxu0 0
      %928 = vmatpush1.bf16.msra.mxu0 %v904
      %929 = vmatprep.subr.bf16.mxu0 0
      %930 = vmatpush1.bf16.msra.mxu0 %v905
      %931 = vmatprep.subr.bf16.mxu0 0
      %932 = vmatpush1.bf16.msra.mxu0 %v906
      %933 = vmatprep.subr.bf16.mxu0 0
      %934 = vmatpush1.bf16.msra.mxu0 %v907
      %935 = vmatprep.subr.bf16.mxu0 0
      %936 = vmatpush1.bf16.msra.mxu0 0
      %937 = vmatprep.subr.bf16.mxu0 0
      %938 = vmatpush1.bf16.msra.mxu0 0
      %939 = vmatprep.subr.bf16.mxu0 0
      %940 = vmatpush1.bf16.msra.mxu0 0
      %941 = vmatprep.subr.bf16.mxu0 0
      %942 = vmatpush1.bf16.msra.mxu0 0
      %943 = vmatprep.subr.bf16.mxu0 0
      %944 = vmatpush1.bf16.msra.mxu0 0
      %945 = vmatprep.subr.bf16.mxu0 0
      %946 = vmatpush1.bf16.msra.mxu0 0
      %947 = vmatprep.subr.bf16.mxu0 0
      %948 = vmatpush1.bf16.msra.mxu0 0
      %949 = vmatprep.subr.bf16.mxu0 0
      %950 = vmatpush1.bf16.msra.mxu0 0
      %951 = vmatprep.subr.bf16.mxu0 0
      %952 = vmatpush1.bf16.msra.mxu0 0
      %953 = vmatprep.subr.bf16.mxu0 0
      %954 = vmatpush1.bf16.msra.mxu0 0
      %955 = vmatprep.subr.bf16.mxu0 0
      %956 = vmatpush1.bf16.msra.mxu0 0
      %957 = vmatprep.subr.bf16.mxu0 0
      %958 = vmatpush1.bf16.msra.mxu0 0
      %959 = vmatprep.mubr.bf16.mxu0 0
      %960 = vmatmul.mubr.bf16.gmra.mrb[0].mxu0 %v913
      %v961 = vpop.f32.mrb[0].mxu0
      %v962 = vadd.f32 0.0, %v961
      %v963 = vpop.f32.mrb[0].mxu0
      %v964 = vpop.f32.mrb[0].mxu0
      %v965 = vadd.f32 0.0, %v964
      %v966 = vpop.f32.mrb[0].mxu0
      %967 = vmatprep.mubr.bf16.mxu0 0
      %968 = vmatmul.mubr.bf16.gmra.mrb[0].mxu0 %v916
      %v969 = vpop.f32.mrb[0].mxu0
      %v970 = vadd.f32 0.0, %v969
      %v971 = vpop.f32.mrb[0].mxu0
      %v972 = vpop.f32.mrb[0].mxu0
      %v973 = vadd.f32 0.0, %v972
      %v974 = vpop.f32.mrb[0].mxu0
      %975 = vmatprep.mubr.bf16.mxu0 0
      %976 = vmatmul.mubr.bf16.gmra.mrb[0].mxu0 %v919
      %v977 = vpop.f32.mrb[0].mxu0
      %v978 = vadd.f32 0.0, %v977
      %v979 = vpop.f32.mrb[0].mxu0
      %v980 = vpop.f32.mrb[0].mxu0
      %v981 = vadd.f32 0.0, %v980
      %v982 = vpop.f32.mrb[0].mxu0
      %983 = vmatprep.mubr.bf16.mxu0 0
      %984 = vmatmul.mubr.bf16.gmra.mrb[0].mxu0 %v922
      %v985 = vpop.f32.mrb[0].mxu0
      %v986 = vadd.f32 0.0, %v985
      %v987 = vpop.f32.mrb[0].mxu0
      %v988 = vpop.f32.mrb[0].mxu0
      %v989 = vadd.f32 0.0, %v988
      %v990 = vpop.f32.mrb[0].mxu0
      %991 = vmatprep.mubr.bf16.mxu0 0
      %992 = vmatmul.mubr.bf16.gmra.mrb[0].mxu0 %v925
      %v993 = vpop.f32.mrb[0].mxu0
      %v994 = vadd.f32 0.0, %v993
      %v995 = vpop.f32.mrb[0].mxu0
      %v996 = vpop.f32.mrb[0].mxu0
      %v997 = vadd.f32 0.0, %v996
      %v998 = vpop.f32.mrb[0].mxu0
      %999 = vdwg.mxu0
      %v1000 = vadd.f32 %v811, %v962
      %v1001 = vadd.f32 %v812, %v965
      %v1002 = vadd.f32 %v813, %v970
      %v1003 = vadd.f32 %v814, %v973
      %v1004 = vadd.f32 %v815, %v978
      %v1005 = vadd.f32 %v816, %v981
      %v1006 = vadd.f32 %v817, %v986
      %v1007 = vadd.f32 %v818, %v989
      %v1008 = vadd.f32 %v819, %v994
      %v1009 = vadd.f32 %v820, %v997
      %v1010 = vld [vmem:[%s165 + $0x4] sm:$0xc]
      %s1011 = scalar_lea.vmem %s1, 160
      %v1012 = vld [vmem:[%s1011] sm:$0xf]
      %v1013 = vld [vmem:[%s1011 + $0x4] sm:$0xf]
      %v1014 = vld [vmem:[%s1011 + $0x8] sm:$0xf]
      %v1015 = vld [vmem:[%s1011 + $0xc] sm:$0xf]
      %v1016 = vld [vmem:[%s1011 + $0x10] sm:$0xf]
      %v1017 = vld [vmem:[%s1011 + $0x14] sm:$0xf]
      %v1018 = vld [vmem:[%s1011 + $0x18] sm:$0xf]
      %v1019 = vld [vmem:[%s1011 + $0x1c] sm:$0xf]
      %v1021 = vunpack.c.l.b16 %v1010
      %v1022 = vpack.c.b16 %v672, %v1021
      %vm1023 = vcmask 1045504
      %v1024 = vrot.slane %v1022, 2
      %v1025 = vrot.slane %v683, 2
      %v1026 = vsel %vm1023, %v1024, %v1025
      %v1027 = vrot.slane %v684, 2
      %v1028 = vsel %vm1023, %v1025, %v1027
      %v1029 = vrot.slane %v685, 2
      %v1030 = vsel %vm1023, %v1027, %v1029
      %v1031 = vrot.slane %v686, 2
      %v1032 = vsel %vm1023, %v1029, %v1031
      %v1033 = vrot.slane %v833, 2
      %v1034 = vsel %vm1023, %v1031, %v1033
      %v1043 = vunpack.c.l.b16 %v1012
      %v1044 = vunpack.c.l.b16 %v1013
      %v1045 = vunpack.c.l.b16 %v1014
      %v1046 = vunpack.c.l.b16 %v1015
      %v1047 = vunpack.c.l.b16 %v1016
      %v1048 = vunpack.c.l.b16 %v1017
      %v1049 = vunpack.c.l.b16 %v1018
      %v1050 = vunpack.c.l.b16 %v1019
      %v1051 = vpack.c.b16 %v1044, %v1043
      %v1052 = vpack.c.b16 %v1046, %v1045
      %v1053 = vpack.c.b16 %v1048, %v1047
      %v1054 = vpack.c.b16 %v1050, %v1049
      %v1060 = vsel %vm297, %v1026, 0
      %v1063 = vsel %vm297, %v1028, 0
      %v1066 = vsel %vm297, %v1030, 0
      %v1069 = vsel %vm297, %v1032, 0
      %v1072 = vsel %vm297, %v1034, 0
      %1074 = vmatprep.subr.bf16.mxu0 0
      %1075 = vmatpush1.bf16.msra.mxu0 %v1051
      %1076 = vmatprep.subr.bf16.mxu0 0
      %1077 = vmatpush1.bf16.msra.mxu0 %v1052
      %1078 = vmatprep.subr.bf16.mxu0 0
      %1079 = vmatpush1.bf16.msra.mxu0 %v1053
      %1080 = vmatprep.subr.bf16.mxu0 0
      %1081 = vmatpush1.bf16.msra.mxu0 %v1054
      %1082 = vmatprep.subr.bf16.mxu0 0
      %1083 = vmatpush1.bf16.msra.mxu0 0
      %1084 = vmatprep.subr.bf16.mxu0 0
      %1085 = vmatpush1.bf16.msra.mxu0 0
      %1086 = vmatprep.subr.bf16.mxu0 0
      %1087 = vmatpush1.bf16.msra.mxu0 0
      %1088 = vmatprep.subr.bf16.mxu0 0
      %1089 = vmatpush1.bf16.msra.mxu0 0
      %1090 = vmatprep.subr.bf16.mxu0 0
      %1091 = vmatpush1.bf16.msra.mxu0 0
      %1092 = vmatprep.subr.bf16.mxu0 0
      %1093 = vmatpush1.bf16.msra.mxu0 0
      %1094 = vmatprep.subr.bf16.mxu0 0
      %1095 = vmatpush1.bf16.msra.mxu0 0
      %1096 = vmatprep.subr.bf16.mxu0 0
      %1097 = vmatpush1.bf16.msra.mxu0 0
      %1098 = vmatprep.subr.bf16.mxu0 0
      %1099 = vmatpush1.bf16.msra.mxu0 0
      %1100 = vmatprep.subr.bf16.mxu0 0
      %1101 = vmatpush1.bf16.msra.mxu0 0
      %1102 = vmatprep.subr.bf16.mxu0 0
      %1103 = vmatpush1.bf16.msra.mxu0 0
      %1104 = vmatprep.subr.bf16.mxu0 0
      %1105 = vmatpush1.bf16.msra.mxu0 0
      %1106 = vmatprep.mubr.bf16.mxu0 0
      %1107 = vmatmul.mubr.bf16.gmra.mrb[0].mxu0 %v1060
      %v1108 = vpop.f32.mrb[0].mxu0
      %v1109 = vadd.f32 0.0, %v1108
      %v1110 = vpop.f32.mrb[0].mxu0
      %v1111 = vpop.f32.mrb[0].mxu0
      %v1112 = vadd.f32 0.0, %v1111
      %v1113 = vpop.f32.mrb[0].mxu0
      %1114 = vmatprep.mubr.bf16.mxu0 0
      %1115 = vmatmul.mubr.bf16.gmra.mrb[0].mxu0 %v1063
      %v1116 = vpop.f32.mrb[0].mxu0
      %v1117 = vadd.f32 0.0, %v1116
      %v1118 = vpop.f32.mrb[0].mxu0
      %v1119 = vpop.f32.mrb[0].mxu0
      %v1120 = vadd.f32 0.0, %v1119
      %v1121 = vpop.f32.mrb[0].mxu0
      %1122 = vmatprep.mubr.bf16.mxu0 0
      %1123 = vmatmul.mubr.bf16.gmra.mrb[0].mxu0 %v1066
      %v1124 = vpop.f32.mrb[0].mxu0
      %v1125 = vadd.f32 0.0, %v1124
      %v1126 = vpop.f32.mrb[0].mxu0
      %v1127 = vpop.f32.mrb[0].mxu0
      %v1128 = vadd.f32 0.0, %v1127
      %v1129 = vpop.f32.mrb[0].mxu0
      %1130 = vmatprep.mubr.bf16.mxu0 0
      %1131 = vmatmul.mubr.bf16.gmra.mrb[0].mxu0 %v1069
      %v1132 = vpop.f32.mrb[0].mxu0
      %v1133 = vadd.f32 0.0, %v1132
      %v1134 = vpop.f32.mrb[0].mxu0
      %v1135 = vpop.f32.mrb[0].mxu0
      %v1136 = vadd.f32 0.0, %v1135
      %v1137 = vpop.f32.mrb[0].mxu0
      %1138 = vmatprep.mubr.bf16.mxu0 0
      %1139 = vmatmul.mubr.bf16.gmra.mrb[0].mxu0 %v1072
      %v1140 = vpop.f32.mrb[0].mxu0
      %v1141 = vadd.f32 0.0, %v1140
      %v1142 = vpop.f32.mrb[0].mxu0
      %v1143 = vpop.f32.mrb[0].mxu0
      %v1144 = vadd.f32 0.0, %v1143
      %v1145 = vpop.f32.mrb[0].mxu0
      %1146 = vdwg.mxu0
      %v1147 = vadd.f32 %v1000, %v1109
      %v1148 = vadd.f32 %v1001, %v1112
      %v1149 = vadd.f32 %v1002, %v1117
      %v1150 = vadd.f32 %v1003, %v1120
      %v1151 = vadd.f32 %v1004, %v1125
      %v1152 = vadd.f32 %v1005, %v1128
      %v1153 = vadd.f32 %v1006, %v1133
      %v1154 = vadd.f32 %v1007, %v1136
      %v1155 = vadd.f32 %v1008, %v1141
      %v1156 = vadd.f32 %v1009, %v1144
      %v1157 = vld [vmem:[%s165 + $0x8] sm:$0xc]
      %v1158 = vld [vmem:[%s165 + $0xc] sm:$0xf]
      %v1159 = vld [vmem:[%s165 + $0x10] sm:$0xf]
      %v1160 = vld [vmem:[%s165 + $0x14] sm:$0xf]
      %v1161 = vld [vmem:[%s165 + $0x18] sm:$0xf]
      %v1162 = vld [vmem:[%s165 + $0x1c] sm:$0xf]
      %v1163 = vld [vmem:[%s165 + $0x20] sm:$0xf]
      %v1164 = vld [vmem:[%s165 + $0x24] sm:$0xf]
      %v1165 = vld [vmem:[%s165 + $0x28] sm:$0xf]
      %v1166 = vld [vmem:[%s165 + $0x2c] sm:$0xf]
      %v1167 = vld [vmem:[%s165 + $0x30] sm:$0x3]
      %s1168 = scalar_lea.vmem %s1, 192
      %v1169 = vld [vmem:[%s1168] sm:$0xf]
      %v1170 = vld [vmem:[%s1168 + $0x4] sm:$0xf]
      %v1171 = vld [vmem:[%s1168 + $0x8] sm:$0xf]
      %v1172 = vld [vmem:[%s1168 + $0xc] sm:$0xf]
      %v1173 = vld [vmem:[%s1168 + $0x10] sm:$0xf]
      %v1174 = vld [vmem:[%s1168 + $0x14] sm:$0xf]
      %v1175 = vld [vmem:[%s1168 + $0x18] sm:$0xf]
      %v1176 = vld [vmem:[%s1168 + $0x1c] sm:$0xf]
      %v1188 = vunpack.c.l.b16 %v1157
      %v1189 = vunpack.c.l.b16 %v1158
      %v1190 = vunpack.c.l.b16 %v1159
      %v1191 = vunpack.c.l.b16 %v1160
      %v1192 = vunpack.c.l.b16 %v1161
      %v1193 = vunpack.c.l.b16 %v1162
      %v1194 = vunpack.c.l.b16 %v1163
      %v1195 = vunpack.c.l.b16 %v1164
      %v1196 = vunpack.c.l.b16 %v1165
      %v1197 = vunpack.c.l.b16 %v1166
      %v1198 = vunpack.c.l.b16 %v1167
      %v1199 = vpack.c.b16 %v1189, %v1188
      %v1200 = vpack.c.b16 %v1191, %v1190
      %v1201 = vpack.c.b16 %v1193, %v1192
      %v1202 = vpack.c.b16 %v1195, %v1194
      %v1203 = vpack.c.b16 %v1197, %v1196
      %v1204 = vpack.c.b16 %v1198, %v1198
      %v1205 = vrot.slane %v1199, 2
      %v1206 = vrot.slane %v1200, 2
      %v1207 = vsel %vm1023, %v1205, %v1206
      %v1208 = vrot.slane %v1201, 2
      %v1209 = vsel %vm1023, %v1206, %v1208
      %v1210 = vrot.slane %v1202, 2
      %v1211 = vsel %vm1023, %v1208, %v1210
      %v1212 = vrot.slane %v1203, 2
      %v1213 = vsel %vm1023, %v1210, %v1212
      %v1214 = vrot.slane %v1204, 2
      %v1215 = vsel %vm1023, %v1212, %v1214
      %v1224 = vunpack.c.l.b16 %v1169
      %v1225 = vunpack.c.l.b16 %v1170
      %v1226 = vunpack.c.l.b16 %v1171
      %v1227 = vunpack.c.l.b16 %v1172
      %v1228 = vunpack.c.l.b16 %v1173
      %v1229 = vunpack.c.l.b16 %v1174
      %v1230 = vunpack.c.l.b16 %v1175
      %v1231 = vunpack.c.l.b16 %v1176
      %v1232 = vpack.c.b16 %v1225, %v1224
      %v1233 = vpack.c.b16 %v1227, %v1226
      %v1234 = vpack.c.b16 %v1229, %v1228
      %v1235 = vpack.c.b16 %v1231, %v1230
      %v1241 = vsel %vm297, %v1207, 0
      %v1244 = vsel %vm297, %v1209, 0
      %v1247 = vsel %vm297, %v1211, 0
      %v1250 = vsel %vm297, %v1213, 0
      %v1253 = vsel %vm297, %v1215, 0
      %1255 = vmatprep.subr.bf16.mxu0 0
      %1256 = vmatpush1.bf16.msra.mxu0 %v1232
      %1257 = vmatprep.subr.bf16.mxu0 0
      %1258 = vmatpush1.bf16.msra.mxu0 %v1233
      %1259 = vmatprep.subr.bf16.mxu0 0
      %1260 = vmatpush1.bf16.msra.mxu0 %v1234
      %1261 = vmatprep.subr.bf16.mxu0 0
      %1262 = vmatpush1.bf16.msra.mxu0 %v1235
      %1263 = vmatprep.subr.bf16.mxu0 0
      %1264 = vmatpush1.bf16.msra.mxu0 0
      %1265 = vmatprep.subr.bf16.mxu0 0
      %1266 = vmatpush1.bf16.msra.mxu0 0
      %1267 = vmatprep.subr.bf16.mxu0 0
      %1268 = vmatpush1.bf16.msra.mxu0 0
      %1269 = vmatprep.subr.bf16.mxu0 0
      %1270 = vmatpush1.bf16.msra.mxu0 0
      %1271 = vmatprep.subr.bf16.mxu0 0
      %1272 = vmatpush1.bf16.msra.mxu0 0
      %1273 = vmatprep.subr.bf16.mxu0 0
      %1274 = vmatpush1.bf16.msra.mxu0 0
      %1275 = vmatprep.subr.bf16.mxu0 0
      %1276 = vmatpush1.bf16.msra.mxu0 0
      %1277 = vmatprep.subr.bf16.mxu0 0
      %1278 = vmatpush1.bf16.msra.mxu0 0
      %1279 = vmatprep.subr.bf16.mxu0 0
      %1280 = vmatpush1.bf16.msra.mxu0 0
      %1281 = vmatprep.subr.bf16.mxu0 0
      %1282 = vmatpush1.bf16.msra.mxu0 0
      %1283 = vmatprep.subr.bf16.mxu0 0
      %1284 = vmatpush1.bf16.msra.mxu0 0
      %1285 = vmatprep.subr.bf16.mxu0 0
      %1286 = vmatpush1.bf16.msra.mxu0 0
      %1287 = vmatprep.mubr.bf16.mxu0 0
      %1288 = vmatmul.mubr.bf16.gmra.mrb[0].mxu0 %v1241
      %v1289 = vpop.f32.mrb[0].mxu0
      %v1290 = vadd.f32 0.0, %v1289
      %v1291 = vpop.f32.mrb[0].mxu0
      %v1292 = vpop.f32.mrb[0].mxu0
      %v1293 = vadd.f32 0.0, %v1292
      %v1294 = vpop.f32.mrb[0].mxu0
      %1295 = vmatprep.mubr.bf16.mxu0 0
      %1296 = vmatmul.mubr.bf16.gmra.mrb[0].mxu0 %v1244
      %v1297 = vpop.f32.mrb[0].mxu0
      %v1298 = vadd.f32 0.0, %v1297
      %v1299 = vpop.f32.mrb[0].mxu0
      %v1300 = vpop.f32.mrb[0].mxu0
      %v1301 = vadd.f32 0.0, %v1300
      %v1302 = vpop.f32.mrb[0].mxu0
      %1303 = vmatprep.mubr.bf16.mxu0 0
      %1304 = vmatmul.mubr.bf16.gmra.mrb[0].mxu0 %v1247
      %v1305 = vpop.f32.mrb[0].mxu0
      %v1306 = vadd.f32 0.0, %v1305
      %v1307 = vpop.f32.mrb[0].mxu0
      %v1308 = vpop.f32.mrb[0].mxu0
      %v1309 = vadd.f32 0.0, %v1308
      %v1310 = vpop.f32.mrb[0].mxu0
      %1311 = vmatprep.mubr.bf16.mxu0 0
      %1312 = vmatmul.mubr.bf16.gmra.mrb[0].mxu0 %v1250
      %v1313 = vpop.f32.mrb[0].mxu0
      %v1314 = vadd.f32 0.0, %v1313
      %v1315 = vpop.f32.mrb[0].mxu0
      %v1316 = vpop.f32.mrb[0].mxu0
      %v1317 = vadd.f32 0.0, %v1316
      %v1318 = vpop.f32.mrb[0].mxu0
      %1319 = vmatprep.mubr.bf16.mxu0 0
      %1320 = vmatmul.mubr.bf16.gmra.mrb[0].mxu0 %v1253
      %v1321 = vpop.f32.mrb[0].mxu0
      %v1322 = vadd.f32 0.0, %v1321
      %v1323 = vpop.f32.mrb[0].mxu0
      %v1324 = vpop.f32.mrb[0].mxu0
      %v1325 = vadd.f32 0.0, %v1324
      %v1326 = vpop.f32.mrb[0].mxu0
      %1327 = vdwg.mxu0
      %v1328 = vadd.f32 %v1147, %v1290
      %v1329 = vadd.f32 %v1148, %v1293
      %v1330 = vadd.f32 %v1149, %v1298
      %v1331 = vadd.f32 %v1150, %v1301
      %v1332 = vadd.f32 %v1151, %v1306
      %v1333 = vadd.f32 %v1152, %v1309
      %v1334 = vadd.f32 %v1153, %v1314
      %v1335 = vadd.f32 %v1154, %v1317
      %v1336 = vadd.f32 %v1155, %v1322
      %v1337 = vadd.f32 %v1156, %v1325
      %v1338 = vld [vmem:[%s165 + $0x30] sm:$0x7]
      %s1339 = scalar_lea.vmem %s1, 224
      %v1340 = vld [vmem:[%s1339] sm:$0xf]
      %v1341 = vld [vmem:[%s1339 + $0x4] sm:$0xf]
      %v1342 = vld [vmem:[%s1339 + $0x8] sm:$0xf]
      %v1343 = vld [vmem:[%s1339 + $0xc] sm:$0xf]
      %v1344 = vld [vmem:[%s1339 + $0x10] sm:$0xf]
      %v1345 = vld [vmem:[%s1339 + $0x14] sm:$0xf]
      %v1346 = vld [vmem:[%s1339 + $0x18] sm:$0xf]
      %v1347 = vld [vmem:[%s1339 + $0x1c] sm:$0xf]
      %v1349 = vunpack.c.l.b16 %v1338
      %v1350 = vpack.c.b16 %v1349, %v1349
      %vm1351 = vsmask.f32 5376
      %v1353 = vshrl.u32 %v1199, 16
      %v1355 = vrot.slane %v1353, 2
      %v1356 = vshll.u32 %v1199, 16
      %v1358 = vrot.slane %v1356, 3
      %v1359 = vor.u32 %v1355, %v1358
      %v1361 = vshrl.u32 %v1200, 16
      %v1363 = vrot.slane %v1361, 2
      %v1364 = vshll.u32 %v1200, 16
      %v1366 = vrot.slane %v1364, 3
      %v1367 = vor.u32 %v1363, %v1366
      %v1368 = vsel %vm1351, %v1359, %v1367
      %v1370 = vshrl.u32 %v1201, 16
      %v1372 = vrot.slane %v1370, 2
      %v1373 = vshll.u32 %v1201, 16
      %v1375 = vrot.slane %v1373, 3
      %v1376 = vor.u32 %v1372, %v1375
      %v1377 = vsel %vm1351, %v1367, %v1376
      %v1379 = vshrl.u32 %v1202, 16
      %v1381 = vrot.slane %v1379, 2
      %v1382 = vshll.u32 %v1202, 16
      %v1384 = vrot.slane %v1382, 3
      %v1385 = vor.u32 %v1381, %v1384
      %v1386 = vsel %vm1351, %v1376, %v1385
      %v1388 = vshrl.u32 %v1203, 16
      %v1390 = vrot.slane %v1388, 2
      %v1391 = vshll.u32 %v1203, 16
      %v1393 = vrot.slane %v1391, 3
      %v1394 = vor.u32 %v1390, %v1393
      %v1395 = vsel %vm1351, %v1385, %v1394
      %v1397 = vshrl.u32 %v1350, 16
      %v1399 = vrot.slane %v1397, 2
      %v1400 = vshll.u32 %v1350, 16
      %v1402 = vrot.slane %v1400, 3
      %v1403 = vor.u32 %v1399, %v1402
      %v1404 = vsel %vm1351, %v1394, %v1403
      %v1413 = vunpack.c.l.b16 %v1340
      %v1414 = vunpack.c.l.b16 %v1341
      %v1415 = vunpack.c.l.b16 %v1342
      %v1416 = vunpack.c.l.b16 %v1343
      %v1417 = vunpack.c.l.b16 %v1344
      %v1418 = vunpack.c.l.b16 %v1345
      %v1419 = vunpack.c.l.b16 %v1346
      %v1420 = vunpack.c.l.b16 %v1347
      %v1421 = vpack.c.b16 %v1414, %v1413
      %v1422 = vpack.c.b16 %v1416, %v1415
      %v1423 = vpack.c.b16 %v1418, %v1417
      %v1424 = vpack.c.b16 %v1420, %v1419
      %v1430 = vsel %vm297, %v1368, 0
      %v1433 = vsel %vm297, %v1377, 0
      %v1436 = vsel %vm297, %v1386, 0
      %v1439 = vsel %vm297, %v1395, 0
      %v1442 = vsel %vm297, %v1404, 0
      %1444 = vmatprep.subr.bf16.mxu0 0
      %1445 = vmatpush1.bf16.msra.mxu0 %v1421
      %1446 = vmatprep.subr.bf16.mxu0 0
      %1447 = vmatpush1.bf16.msra.mxu0 %v1422
      %1448 = vmatprep.subr.bf16.mxu0 0
      %1449 = vmatpush1.bf16.msra.mxu0 %v1423
      %1450 = vmatprep.subr.bf16.mxu0 0
      %1451 = vmatpush1.bf16.msra.mxu0 %v1424
      %1452 = vmatprep.subr.bf16.mxu0 0
      %1453 = vmatpush1.bf16.msra.mxu0 0
      %1454 = vmatprep.subr.bf16.mxu0 0
      %1455 = vmatpush1.bf16.msra.mxu0 0
      %1456 = vmatprep.subr.bf16.mxu0 0
      %1457 = vmatpush1.bf16.msra.mxu0 0
      %1458 = vmatprep.subr.bf16.mxu0 0
      %1459 = vmatpush1.bf16.msra.mxu0 0
      %1460 = vmatprep.subr.bf16.mxu0 0
      %1461 = vmatpush1.bf16.msra.mxu0 0
      %1462 = vmatprep.subr.bf16.mxu0 0
      %1463 = vmatpush1.bf16.msra.mxu0 0
      %1464 = vmatprep.subr.bf16.mxu0 0
      %1465 = vmatpush1.bf16.msra.mxu0 0
      %1466 = vmatprep.subr.bf16.mxu0 0
      %1467 = vmatpush1.bf16.msra.mxu0 0
      %1468 = vmatprep.subr.bf16.mxu0 0
      %1469 = vmatpush1.bf16.msra.mxu0 0
      %1470 = vmatprep.subr.bf16.mxu0 0
      %1471 = vmatpush1.bf16.msra.mxu0 0
      %1472 = vmatprep.subr.bf16.mxu0 0
      %1473 = vmatpush1.bf16.msra.mxu0 0
      %1474 = vmatprep.subr.bf16.mxu0 0
      %1475 = vmatpush1.bf16.msra.mxu0 0
      %1476 = vmatprep.mubr.bf16.mxu0 0
      %1477 = vmatmul.mubr.bf16.gmra.mrb[0].mxu0 %v1430
      %v1478 = vpop.f32.mrb[0].mxu0
      %v1479 = vadd.f32 0.0, %v1478
      %v1480 = vpop.f32.mrb[0].mxu0
      %v1481 = vpop.f32.mrb[0].mxu0
      %v1482 = vadd.f32 0.0, %v1481
      %v1483 = vpop.f32.mrb[0].mxu0
      %1484 = vmatprep.mubr.bf16.mxu0 0
      %1485 = vmatmul.mubr.bf16.gmra.mrb[0].mxu0 %v1433
      %v1486 = vpop.f32.mrb[0].mxu0
      %v1487 = vadd.f32 0.0, %v1486
      %v1488 = vpop.f32.mrb[0].mxu0
      %v1489 = vpop.f32.mrb[0].mxu0
      %v1490 = vadd.f32 0.0, %v1489
      %v1491 = vpop.f32.mrb[0].mxu0
      %1492 = vmatprep.mubr.bf16.mxu0 0
      %1493 = vmatmul.mubr.bf16.gmra.mrb[0].mxu0 %v1436
      %v1494 = vpop.f32.mrb[0].mxu0
      %v1495 = vadd.f32 0.0, %v1494
      %v1496 = vpop.f32.mrb[0].mxu0
      %v1497 = vpop.f32.mrb[0].mxu0
      %v1498 = vadd.f32 0.0, %v1497
      %v1499 = vpop.f32.mrb[0].mxu0
      %1500 = vmatprep.mubr.bf16.mxu0 0
      %1501 = vmatmul.mubr.bf16.gmra.mrb[0].mxu0 %v1439
      %v1502 = vpop.f32.mrb[0].mxu0
      %v1503 = vadd.f32 0.0, %v1502
      %v1504 = vpop.f32.mrb[0].mxu0
      %v1505 = vpop.f32.mrb[0].mxu0
      %v1506 = vadd.f32 0.0, %v1505
      %v1507 = vpop.f32.mrb[0].mxu0
      %1508 = vmatprep.mubr.bf16.mxu0 0
      %1509 = vmatmul.mubr.bf16.gmra.mrb[0].mxu0 %v1442
      %v1510 = vpop.f32.mrb[0].mxu0
      %v1511 = vadd.f32 0.0, %v1510
      %v1512 = vpop.f32.mrb[0].mxu0
      %v1513 = vpop.f32.mrb[0].mxu0
      %v1514 = vadd.f32 0.0, %v1513
      %v1515 = vpop.f32.mrb[0].mxu0
      %1516 = vdwg.mxu0
      %v1517 = vadd.f32 %v1328, %v1479
      %v1518 = vadd.f32 %v1329, %v1482
      %v1519 = vadd.f32 %v1330, %v1487
      %v1520 = vadd.f32 %v1331, %v1490
      %v1521 = vadd.f32 %v1332, %v1495
      %v1522 = vadd.f32 %v1333, %v1498
      %v1523 = vadd.f32 %v1334, %v1503
      %v1524 = vadd.f32 %v1335, %v1506
      %v1525 = vadd.f32 %v1336, %v1511
      %v1526 = vadd.f32 %v1337, %v1514
      %v1527 = vld [vmem:[%s165 + $0x8] sm:$0x8]
      %s1528 = scalar_lea.vmem %s1, 256
      %v1529 = vld [vmem:[%s1528] sm:$0xf]
      %v1530 = vld [vmem:[%s1528 + $0x4] sm:$0xf]
      %v1531 = vld [vmem:[%s1528 + $0x8] sm:$0xf]
      %v1532 = vld [vmem:[%s1528 + $0xc] sm:$0xf]
      %v1533 = vld [vmem:[%s1528 + $0x10] sm:$0xf]
      %v1534 = vld [vmem:[%s1528 + $0x14] sm:$0xf]
      %v1535 = vld [vmem:[%s1528 + $0x18] sm:$0xf]
      %v1536 = vld [vmem:[%s1528 + $0x1c] sm:$0xf]
      %v1538 = vunpack.c.l.b16 %v1527
      %v1539 = vpack.c.b16 %v1189, %v1538
      %vm1540 = vcmask 1044480
      %v1541 = vrot.slane %v1539, 3
      %v1542 = vrot.slane %v1200, 3
      %v1543 = vsel %vm1540, %v1541, %v1542
      %v1544 = vrot.slane %v1201, 3
      %v1545 = vsel %vm1540, %v1542, %v1544
      %v1546 = vrot.slane %v1202, 3
      %v1547 = vsel %vm1540, %v1544, %v1546
      %v1548 = vrot.slane %v1203, 3
      %v1549 = vsel %vm1540, %v1546, %v1548
      %v1550 = vrot.slane %v1350, 3
      %v1551 = vsel %vm1540, %v1548, %v1550
      %v1560 = vunpack.c.l.b16 %v1529
      %v1561 = vunpack.c.l.b16 %v1530
      %v1562 = vunpack.c.l.b16 %v1531
      %v1563 = vunpack.c.l.b16 %v1532
      %v1564 = vunpack.c.l.b16 %v1533
      %v1565 = vunpack.c.l.b16 %v1534
      %v1566 = vunpack.c.l.b16 %v1535
      %v1567 = vunpack.c.l.b16 %v1536
      %v1568 = vpack.c.b16 %v1561, %v1560
      %v1569 = vpack.c.b16 %v1563, %v1562
      %v1570 = vpack.c.b16 %v1565, %v1564
      %v1571 = vpack.c.b16 %v1567, %v1566
      %v1577 = vsel %vm297, %v1543, 0
      %v1580 = vsel %vm297, %v1545, 0
      %v1583 = vsel %vm297, %v1547, 0
      %v1586 = vsel %vm297, %v1549, 0
      %v1589 = vsel %vm297, %v1551, 0
      %1591 = vmatprep.subr.bf16.mxu0 0
      %1592 = vmatpush1.bf16.msra.mxu0 %v1568
      %1593 = vmatprep.subr.bf16.mxu0 0
      %1594 = vmatpush1.bf16.msra.mxu0 %v1569
      %1595 = vmatprep.subr.bf16.mxu0 0
      %1596 = vmatpush1.bf16.msra.mxu0 %v1570
      %1597 = vmatprep.subr.bf16.mxu0 0
      %1598 = vmatpush1.bf16.msra.mxu0 %v1571
      %1599 = vmatprep.subr.bf16.mxu0 0
      %1600 = vmatpush1.bf16.msra.mxu0 0
      %1601 = vmatprep.subr.bf16.mxu0 0
      %1602 = vmatpush1.bf16.msra.mxu0 0
      %1603 = vmatprep.subr.bf16.mxu0 0
      %1604 = vmatpush1.bf16.msra.mxu0 0
      %1605 = vmatprep.subr.bf16.mxu0 0
      %1606 = vmatpush1.bf16.msra.mxu0 0
      %1607 = vmatprep.subr.bf16.mxu0 0
      %1608 = vmatpush1.bf16.msra.mxu0 0
      %1609 = vmatprep.subr.bf16.mxu0 0
      %1610 = vmatpush1.bf16.msra.mxu0 0
      %1611 = vmatprep.subr.bf16.mxu0 0
      %1612 = vmatpush1.bf16.msra.mxu0 0
      %1613 = vmatprep.subr.bf16.mxu0 0
      %1614 = vmatpush1.bf16.msra.mxu0 0
      %1615 = vmatprep.subr.bf16.mxu0 0
      %1616 = vmatpush1.bf16.msra.mxu0 0
      %1617 = vmatprep.subr.bf16.mxu0 0
      %1618 = vmatpush1.bf16.msra.mxu0 0
      %1619 = vmatprep.subr.bf16.mxu0 0
      %1620 = vmatpush1.bf16.msra.mxu0 0
      %1621 = vmatprep.subr.bf16.mxu0 0
      %1622 = vmatpush1.bf16.msra.mxu0 0
      %1623 = vmatprep.mubr.bf16.mxu0 0
      %1624 = vmatmul.mubr.bf16.gmra.mrb[0].mxu0 %v1577
      %v1625 = vpop.f32.mrb[0].mxu0
      %v1626 = vadd.f32 0.0, %v1625
      %v1627 = vpop.f32.mrb[0].mxu0
      %v1628 = vpop.f32.mrb[0].mxu0
      %v1629 = vadd.f32 0.0, %v1628
      %v1630 = vpop.f32.mrb[0].mxu0
      %1631 = vmatprep.mubr.bf16.mxu0 0
      %1632 = vmatmul.mubr.bf16.gmra.mrb[0].mxu0 %v1580
      %v1633 = vpop.f32.mrb[0].mxu0
      %v1634 = vadd.f32 0.0, %v1633
      %v1635 = vpop.f32.mrb[0].mxu0
      %v1636 = vpop.f32.mrb[0].mxu0
      %v1637 = vadd.f32 0.0, %v1636
      %v1638 = vpop.f32.mrb[0].mxu0
      %1639 = vmatprep.mubr.bf16.mxu0 0
      %1640 = vmatmul.mubr.bf16.gmra.mrb[0].mxu0 %v1583
      %v1641 = vpop.f32.mrb[0].mxu0
      %v1642 = vadd.f32 0.0, %v1641
      %v1643 = vpop.f32.mrb[0].mxu0
      %v1644 = vpop.f32.mrb[0].mxu0
      %v1645 = vadd.f32 0.0, %v1644
      %v1646 = vpop.f32.mrb[0].mxu0
      %1647 = vmatprep.mubr.bf16.mxu0 0
      %1648 = vmatmul.mubr.bf16.gmra.mrb[0].mxu0 %v1586
      %v1649 = vpop.f32.mrb[0].mxu0
      %v1650 = vadd.f32 0.0, %v1649
      %v1651 = vpop.f32.mrb[0].mxu0
      %v1652 = vpop.f32.mrb[0].mxu0
      %v1653 = vadd.f32 0.0, %v1652
      %v1654 = vpop.f32.mrb[0].mxu0
      %1655 = vmatprep.mubr.bf16.mxu0 0
      %1656 = vmatmul.mubr.bf16.gmra.mrb[0].mxu0 %v1589
      %v1657 = vpop.f32.mrb[0].mxu0
      %v1658 = vadd.f32 0.0, %v1657
      %v1659 = vpop.f32.mrb[0].mxu0
      %v1660 = vpop.f32.mrb[0].mxu0
      %v1661 = vadd.f32 0.0, %v1660
      %v1662 = vpop.f32.mrb[0].mxu0
      %1663 = vdwg.mxu0
      %v1664 = vadd.f32 %v1517, %v1626
      %v1665 = vadd.f32 %v1518, %v1629
      %v1666 = vadd.f32 %v1519, %v1634
      %v1667 = vadd.f32 %v1520, %v1637
      %v1668 = vadd.f32 %v1521, %v1642
      %v1669 = vadd.f32 %v1522, %v1645
      %v1670 = vadd.f32 %v1523, %v1650
      %v1671 = vadd.f32 %v1524, %v1653
      %v1672 = vadd.f32 %v1525, %v1658
      %v1673 = vadd.f32 %v1526, %v1661
      %v1674 = vld [vmem:[%s2] sm:$0x1]
      %v1676 = vlaneseq
      %v1677 = vshrl.u32 %v1676, 7
      %v1678 = vsub.s32 0, %v1677
      %v1679 = vrot.slane %v1674, %v1678
      %v1681 = vadd.f32 %v1664, %v1679
      %v1682 = vadd.f32 %v1665, %v1679
      %v1683 = vadd.f32 %v1666, %v1679
      %v1684 = vadd.f32 %v1667, %v1679
      %v1685 = vadd.f32 %v1668, %v1679
      %v1686 = vadd.f32 %v1669, %v1679
      %v1687 = vadd.f32 %v1670, %v1679
      %v1688 = vadd.f32 %v1671, %v1679
      %v1689 = vadd.f32 %v1672, %v1679
      %v1690 = vadd.f32 %v1673, %v1679
      %v1691 = vmax.f32 %v1681, 0.0
      %v1692 = vmax.f32 %v1682, 0.0
      %v1693 = vmax.f32 %v1683, 0.0
      %v1694 = vmax.f32 %v1684, 0.0
      %v1695 = vmax.f32 %v1685, 0.0
      %v1696 = vmax.f32 %v1686, 0.0
      %v1697 = vmax.f32 %v1687, 0.0
      %v1698 = vmax.f32 %v1688, 0.0
      %v1699 = vmax.f32 %v1689, 0.0
      %v1700 = vmax.f32 %v1690, 0.0
      %v1701 = vpack.c.bf16 %v1692, %v1691
      %v1702 = vpack.c.bf16 %v1694, %v1693
      %v1703 = vpack.c.bf16 %v1696, %v1695
      %v1704 = vpack.c.bf16 %v1698, %v1697
      %v1705 = vpack.c.bf16 %v1700, %v1699
      %v1711 = vunpack.c.l.b16 %v1701
      %v1712 = vunpack.c.h.b16 %v1701
      %v1713 = vunpack.c.l.b16 %v1702
      %v1714 = vunpack.c.h.b16 %v1702
      %v1715 = vunpack.c.l.b16 %v1703
      %v1716 = vunpack.c.h.b16 %v1703
      %v1717 = vunpack.c.l.b16 %v1704
      %v1718 = vunpack.c.h.b16 %v1704
      %v1719 = vunpack.c.l.b16 %v1705
      %v1720 = vunpack.c.h.b16 %v1705
      %v1721 = vpack.c.b16 %v1711, %v1711
      %v1722 = vpack.c.b16 %v1712, %v1712
      %v1723 = vpack.c.b16 %v1713, %v1713
      %v1724 = vpack.c.b16 %v1714, %v1714
      %v1725 = vpack.c.b16 %v1715, %v1715
      %v1726 = vpack.c.b16 %v1716, %v1716
      %v1727 = vpack.c.b16 %v1717, %v1717
      %v1728 = vpack.c.b16 %v1718, %v1718
      %v1729 = vpack.c.b16 %v1719, %v1719
      %v1730 = vpack.c.b16 %v1720, %v1720
      %1741 = vst [vmem:[%s170] sm:$0xf] %v1721
      %1742 = vst [vmem:[%s170 + $0x4] sm:$0xf] %v1722
      %1743 = vst [vmem:[%s170 + $0x8] sm:$0xf] %v1723
      %1744 = vst [vmem:[%s170 + $0xc] sm:$0xf] %v1724
      %1745 = vst [vmem:[%s170 + $0x10] sm:$0xf] %v1725
      %1746 = vst [vmem:[%s170 + $0x14] sm:$0xf] %v1726
      %1747 = vst [vmem:[%s170 + $0x18] sm:$0xf] %v1727
      %1748 = vst [vmem:[%s170 + $0x1c] sm:$0xf] %v1728
      %1749 = vst [vmem:[%s170 + $0x20] sm:$0xf] %v1729
      %1750 = vst [vmem:[%s170 + $0x24] sm:$0xf] %v1730
      %p1751 = scmp.lt.s32.totalorder %s14, 1
      %s1752 = scalar_select %p1751, %s14, 1
      %s1753 = smul.addr %s1752, 10
      %s1754 = smul.addr %s1753, 4
      %s1755 = scalar_lea.vmem %s3, %s1754
      // Predicated region
      $region33: #{dkvb_bin_forward.5} parent=31 // pred_check
        %p1756 = pneg %p100
      $region34: #{dkvb_bin_forward.5} parent=31 // pred_check_branch
        %1758 = sbr.rel (%p1756) target = $region36
      $region35: #{dkvb_bin_forward.5} parent=31 // pred_region
        _
      $region36: #{dkvb_bin_forward.5} parent=31 // pred_fallthru
        _
    $region32: #{dkvb_bin_forward.5} parent=5 // pred_fallthru
      _
    %p1759 = scmp.le.s32.totalorder 2, %s9
    // Predicated region
    $region37: #{dkvb_bin_forward.5} parent=5 // pred_check
      %p1760 = pneg %p1759
    $region38: #{dkvb_bin_forward.5} parent=5 // pred_check_branch
      %1762 = sbr.rel (%p1760) target = $region40
    $region39: #{dkvb_bin_forward.5} parent=5 // pred_region
      %s1763 = ssub.s32 %s9, 2
      // Predicated region
      $region41: #{dkvb_bin_forward.5} parent=39 // pred_check
        %p1764 = pneg %p106
      $region42: #{dkvb_bin_forward.5} parent=39 // pred_check_branch
        %1766 = sbr.rel (%p1764) target = $region44
      $region43: #{dkvb_bin_forward.5} parent=39 // pred_region
        %p1767 = scmp.lt.s32.totalorder %s15, 1
        %s1768 = scalar_select %p1767, %s15, 1
        %s1769 = smul.addr %s1768, 10
        %s1770 = smul.addr %s1769, 4
        %s1771 = scalar_lea.vmem %s3, %s1770
      $region44: #{dkvb_bin_forward.5} parent=39 // pred_fallthru
        _
    $region40: #{dkvb_bin_forward.5} parent=5 // pred_fallthru
      _
  $region6: #{dkvb_bin_forward.5} parent=0 // loop_footer
    %s13 = sadd.s32 1, %s9
  $region7: #{dkvb_bin_forward.5} parent=0 // loop_footer_branch
    %8 = sbr.rel target = $region3
  $region8: #{dkvb_bin_forward.5} parent=0 // loop_exit
    _

</llo_original>
